<compile_context>
chip_gen: v7x
topology: tpu7x:2x2x1
jax: 0.10.0
libtpu: 0.0.40
codegen_flags: <defaults>
</compile_context>

<pallas_src>
import jax
import jax.numpy as jnp
from jax.experimental import pallas as pl
from jax.experimental.pallas import tpu as pltpu

TRUNK_DIM = 768
ACTION_DIM = 4
HIDDEN_DIMS = (768, 512, 384, 256)
LN_EPS = 1e-5      # PyTorch nn.LayerNorm default
MAX_TB = 512       # max batch-tile rows per grid step (fits v7x 32 MiB scoped VMEM)

# ---- static offsets into the packed (1, VEC_TOTAL) bias/LN-param buffer ----
_VEC_OFFSETS = {}
_off = 0
for _li, _d in enumerate(HIDDEN_DIMS):
    for _name in ("b", "g", "be"):          # bias, gamma, beta per hidden layer
        _VEC_OFFSETS[(_name, _li)] = (_off, _d)
        _off += _d
_VEC_OFFSETS[("b5", 0)] = (_off, 1)         # final bias
VEC_TOTAL = _off + 1                        # 3*(768+512+384+256) + 1 = 5761


def _round_up(x, m):
    return ((x + m - 1) // m) * m


def _ln_relu(y, gamma, beta):
    """LayerNorm -> ReLU.

    Row statistics (mean / variance) are computed in f32 from y using
    var = E[y^2] - mean^2 so both XLU reductions issue straight off y.
    The per-element normalize / affine / ReLU epilogue runs in packed bf16
    (result is already in the dtype the next MXU dot consumes).
    """
    mu = jnp.mean(y, axis=-1, keepdims=True)
    var = jnp.mean(y * y, axis=-1, keepdims=True) - mu * mu
    inv = jax.lax.rsqrt(jnp.maximum(var, 0.0) + LN_EPS)

    yb = y.astype(jnp.bfloat16)
    mu_b = mu.astype(jnp.bfloat16)
    inv_b = inv.astype(jnp.bfloat16)
    g_b = gamma.astype(jnp.bfloat16)
    be_b = beta.astype(jnp.bfloat16)
    h = (yb - mu_b) * inv_b * g_b + be_b
    return jnp.maximum(h, 0.0)              # bf16


def critic_kernel(sf_ref, act_ref,
                  w1s_ref, w1a_ref, w2_ref, w3_ref, w4_ref, w5_ref,
                  vec_ref, o_ref):
    def vec(name, li):
        o, d = _VEC_OFFSETS[(name, li)]
        return vec_ref[:, o:o + d]          # (1, d) f32, broadcasts over rows

    # Layer 1: split-K linear (state K=768 on MXU, action K=4 folded into the
    # same f32 accumulator).
    y = jnp.dot(sf_ref[...].astype(jnp.bfloat16), w1s_ref[...],
                preferred_element_type=jnp.float32)
    y = y + jnp.dot(act_ref[...].astype(jnp.bfloat16), w1a_ref[...],
                    preferred_element_type=jnp.float32)
    h = _ln_relu(y + vec("b", 0), vec("g", 0), vec("be", 0))

    # Layers 2-4: Linear -> LayerNorm -> ReLU. h is already bf16 from _ln_relu,
    # so it feeds the MXU directly with no extra cast.
    for li, w_ref in ((1, w2_ref), (2, w3_ref), (3, w4_ref)):
        y = jnp.dot(h, w_ref[...], preferred_element_type=jnp.float32)
        h = _ln_relu(y + vec("b", li), vec("g", li), vec("be", li))

    # Final Linear(256 -> 1): VPU multiply + cross-lane (XLU) reduce (f32 accum).
    o_ref[...] = jnp.sum(h * w5_ref[...], axis=-1, keepdims=True) + vec("b5", 0)


@jax.jit
def critic_forward(state_features, action, params):
    w1s, w1a, w2, w3, w4, w5, vec = params
    batch = state_features.shape[0]

    # Adaptive tile: >=2 grid steps whenever possible (pipelining / megacore),
    # minimal padding for batches just over a multiple of MAX_TB.
    n_steps = max(pl.cdiv(batch, MAX_TB), 2)
    tb = _round_up(pl.cdiv(batch, n_steps), 8)
    padded = _round_up(batch, tb)
    if padded != batch:
        state_features = jnp.pad(state_features, ((0, padded - batch), (0, 0)))
        action = jnp.pad(action, ((0, padded - batch), (0, 0)))

    def resident(shape):
        # Weights / packed vectors: same block every grid step -> DMA'd once.
        return pl.BlockSpec(shape, lambda i: (0, 0))

    out = pl.pallas_call(
        critic_kernel,
        out_shape=jax.ShapeDtypeStruct((padded, 1), jnp.float32),
        grid=(padded // tb,),
        in_specs=[
            pl.BlockSpec((tb, TRUNK_DIM), lambda i: (i, 0)),
            pl.BlockSpec((tb, ACTION_DIM), lambda i: (i, 0)),
            resident(w1s.shape), resident(w1a.shape), resident(w2.shape),
            resident(w3.shape), resident(w4.shape), resident(w5.shape),
            resident(vec.shape),
        ],
        out_specs=pl.BlockSpec((tb, 1), lambda i: (i, 0)),
        compiler_params=pltpu.CompilerParams(
            dimension_semantics=("parallel",)),
    )(state_features, action, w1s, w1a, w2, w3, w4, w5, vec)
    return out[:batch]


def init_params(key):
    """Synthetic init mimicking PyTorch Linear U[-1/sqrt(fan_in), 1/sqrt(fan_in)]
    and LayerNorm (gamma=1, beta=0). Matmul weights are bf16 (in, out); the small
    packed bias/LN buffer and the w5 row stay f32."""
    dims = [TRUNK_DIM + ACTION_DIM] + list(HIDDEN_DIMS)
    keys = jax.random.split(key, len(dims))
    weights, vec_parts = [], []
    for i, (d_in, d_out) in enumerate(zip(dims[:-1], dims[1:])):
        kw, kb = jax.random.split(keys[i])
        bound = 1.0 / float(d_in) ** 0.5
        weights.append(jax.random.uniform(kw, (d_in, d_out), jnp.float32, -bound, bound))
        vec_parts += [jax.random.uniform(kb, (1, d_out), jnp.float32, -bound, bound),
                      jnp.ones((1, d_out), jnp.float32),
                      jnp.zeros((1, d_out), jnp.float32)]
    d_in = dims[-1]
    kw, kb = jax.random.split(keys[-1])
    bound = 1.0 / float(d_in) ** 0.5
    w5 = jax.random.uniform(kw, (1, d_in), jnp.float32, -bound, bound)   # (1, 256) row
    vec_parts.append(jax.random.uniform(kb, (1, 1), jnp.float32, -bound, bound))
    vec = jnp.concatenate(vec_parts, axis=1)                             # (1, 5761)
    assert vec.shape == (1, VEC_TOTAL)

    w1 = weights[0]
    w1s = w1[:TRUNK_DIM].astype(jnp.bfloat16)       # (768, 768)
    w1a = w1[TRUNK_DIM:].astype(jnp.bfloat16)       # (4, 768)
    w2, w3, w4 = (w.astype(jnp.bfloat16) for w in weights[1:])
    return (w1s, w1a, w2, w3, w4, w5, vec)


def critic_reference(state_features, action, params):
    """Pure-JAX reference (f32 LayerNorm/activations, same bf16 weights upcast)."""
    w1s, w1a, w2, w3, w4, w5, vec = params

    def vslice(name, li):
        o, d = _VEC_OFFSETS[(name, li)]
        return vec[:, o:o + d]

    def ln_relu(y, li):
        mu = jnp.mean(y, axis=-1, keepdims=True)
        var = jnp.mean(jnp.square(y - mu), axis=-1, keepdims=True)
        yn = (y - mu) * jax.lax.rsqrt(var + LN_EPS)
        return jnp.maximum(yn * vslice("g", li) + vslice("be", li), 0.0)

    h = ln_relu(state_features @ w1s.astype(jnp.float32)
                + action @ w1a.astype(jnp.float32) + vslice("b", 0), 0)
    for li, w in ((1, w2), (2, w3), (3, w4)):
        h = ln_relu(h @ w.astype(jnp.float32) + vslice("b", li), li)
    return jnp.sum(h * w5, axis=-1, keepdims=True) + vslice("b5", 0)


if __name__ == "__main__":
    key = jax.random.PRNGKey(0)
    k_state, k_action, k_params = jax.random.split(key, 3)

    batch = 8
    state_features = jax.random.normal(k_state, (batch, TRUNK_DIM), jnp.float32)
    action = jax.random.normal(k_action, (batch, ACTION_DIM), jnp.float32)
    params = init_params(k_params)

    q = jax.block_until_ready(critic_forward(state_features, action, params))
    assert q.shape == (batch, 1) and q.dtype == jnp.float32
    assert bool(jnp.all(jnp.isfinite(q)))

    q_ref = critic_reference(state_features, action, params)
    assert bool(jnp.allclose(q, q_ref, rtol=5e-2, atol=5e-2)), (q, q_ref)
    print("KERNEL_OK")
</pallas_src>

<mosaic_0001>
module attributes {stable_mosaic.version = 11 : i64} {
  func.func @critic_kernel(%arg0: i32, %arg1: memref<8x768xf32, #tpu.memory_space<vmem>>, %arg2: memref<8x4xf32, #tpu.memory_space<vmem>>, %arg3: memref<768x768xbf16, #tpu.memory_space<vmem>>, %arg4: memref<4x768xbf16, #tpu.memory_space<vmem>>, %arg5: memref<768x512xbf16, #tpu.memory_space<vmem>>, %arg6: memref<512x384xbf16, #tpu.memory_space<vmem>>, %arg7: memref<384x256xbf16, #tpu.memory_space<vmem>>, %arg8: memref<1x256xf32, #tpu.memory_space<vmem>>, %arg9: memref<1x5761xf32, #tpu.memory_space<vmem>>, %arg10: memref<8x1xf32, #tpu.memory_space<vmem>>) attributes {dimension_semantics = [#tpu.dimension_semantics<parallel>], iteration_bounds = array<i64: 1>, scalar_prefetch = 0 : i64, scratch_operands = 0 : i64, tpu.core_type = #tpu.core_type<tc>, window_params = [{transform_indices = @transform_0, window_bounds = array<i64: 8, 768>}, {transform_indices = @transform_1, window_bounds = array<i64: 8, 4>}, {pipeline_mode = #tpu.pipeline_mode<synchronous>, transform_indices = @transform_2, window_bounds = array<i64: 768, 768>}, {pipeline_mode = #tpu.pipeline_mode<synchronous>, transform_indices = @transform_3, window_bounds = array<i64: 4, 768>}, {pipeline_mode = #tpu.pipeline_mode<synchronous>, transform_indices = @transform_4, window_bounds = array<i64: 768, 512>}, {pipeline_mode = #tpu.pipeline_mode<synchronous>, transform_indices = @transform_5, window_bounds = array<i64: 512, 384>}, {pipeline_mode = #tpu.pipeline_mode<synchronous>, transform_indices = @transform_6, window_bounds = array<i64: 384, 256>}, {pipeline_mode = #tpu.pipeline_mode<synchronous>, transform_indices = @transform_7, window_bounds = array<i64: 1, 256>}, {pipeline_mode = #tpu.pipeline_mode<synchronous>, transform_indices = @transform_8, window_bounds = array<i64: 1, 5761>}, {transform_indices = @transform_9, window_bounds = array<i64: 8, 1>}]} {
    %c0 = arith.constant 0 : index
    %c0_0 = arith.constant 0 : index
    %0 = vector.load %arg1[%c0, %c0_0] : memref<8x768xf32, #tpu.memory_space<vmem>>, vector<8x768xf32>
    %1 = arith.truncf %0 : vector<8x768xf32> to vector<8x768xbf16>
    %c0_1 = arith.constant 0 : index
    %c0_2 = arith.constant 0 : index
    %2 = vector.load %arg3[%c0_1, %c0_2] : memref<768x768xbf16, #tpu.memory_space<vmem>>, vector<768x768xbf16>
    %cst = arith.constant dense<0.000000e+00> : vector<8x768xf32>
    %3 = tpu.matmul %1, %2, %cst {dimension_numbers = #tpu.dot_dimension_numbers<[1], [0], [0], [1], [0, 0, 1, 1], [], []>} : vector<8x768xbf16>, vector<768x768xbf16>, vector<8x768xf32> -> vector<8x768xf32>
    %c0_3 = arith.constant 0 : index
    %c0_4 = arith.constant 0 : index
    %4 = vector.load %arg2[%c0_3, %c0_4] : memref<8x4xf32, #tpu.memory_space<vmem>>, vector<8x4xf32>
    %5 = arith.truncf %4 : vector<8x4xf32> to vector<8x4xbf16>
    %c0_5 = arith.constant 0 : index
    %c0_6 = arith.constant 0 : index
    %6 = vector.load %arg4[%c0_5, %c0_6] : memref<4x768xbf16, #tpu.memory_space<vmem>>, vector<4x768xbf16>
    %cst_7 = arith.constant dense<0.000000e+00> : vector<8x768xf32>
    %7 = tpu.matmul %5, %6, %cst_7 {dimension_numbers = #tpu.dot_dimension_numbers<[1], [0], [0], [1], [0, 0, 1, 1], [], []>} : vector<8x4xbf16>, vector<4x768xbf16>, vector<8x768xf32> -> vector<8x768xf32>
    %8 = arith.addf %3, %7 : vector<8x768xf32>
    %c0_8 = arith.constant 0 : index
    %c0_9 = arith.constant 0 : index
    %9 = vector.load %arg9[%c0_8, %c0_9] : memref<1x5761xf32, #tpu.memory_space<vmem>>, vector<1x768xf32>
    %10 = vector.broadcast %9 : vector<1x768xf32> to vector<8x768xf32>
    %11 = arith.addf %8, %10 : vector<8x768xf32>
    %c0_10 = arith.constant 0 : index
    %c768 = arith.constant 768 : index
    %12 = vector.load %arg9[%c0_10, %c768] : memref<1x5761xf32, #tpu.memory_space<vmem>>, vector<1x768xf32>
    %c0_11 = arith.constant 0 : index
    %c1536 = arith.constant 1536 : index
    %13 = vector.load %arg9[%c0_11, %c1536] : memref<1x5761xf32, #tpu.memory_space<vmem>>, vector<1x768xf32>
    %cst_12 = arith.constant dense<0.000000e+00> : vector<8xf32>
    %14 = vector.multi_reduction <add>, %11, %cst_12 [1] : vector<8x768xf32> to vector<8xf32>
    %15 = vector.shape_cast %14 : vector<8xf32> to vector<8x1xf32>
    %cst_13 = arith.constant 7.680000e+02 : f32
    %16 = vector.broadcast %cst_13 : f32 to vector<8x1xf32>
    %17 = arith.divf %15, %16 : vector<8x1xf32>
    %18 = arith.mulf %11, %11 : vector<8x768xf32>
    %cst_14 = arith.constant dense<0.000000e+00> : vector<8xf32>
    %19 = vector.multi_reduction <add>, %18, %cst_14 [1] : vector<8x768xf32> to vector<8xf32>
    %20 = vector.shape_cast %19 : vector<8xf32> to vector<8x1xf32>
    %cst_15 = arith.constant 7.680000e+02 : f32
    %21 = vector.broadcast %cst_15 : f32 to vector<8x1xf32>
    %22 = arith.divf %20, %21 : vector<8x1xf32>
    %23 = arith.mulf %17, %17 : vector<8x1xf32>
    %24 = arith.subf %22, %23 : vector<8x1xf32>
    %cst_16 = arith.constant 0.000000e+00 : f32
    %25 = vector.broadcast %cst_16 : f32 to vector<8x1xf32>
    %26 = arith.maximumf %24, %25 : vector<8x1xf32>
    %cst_17 = arith.constant 9.99999974E-6 : f32
    %27 = vector.broadcast %cst_17 : f32 to vector<8x1xf32>
    %28 = arith.addf %26, %27 : vector<8x1xf32>
    %29 = math.rsqrt %28 : vector<8x1xf32>
    %30 = arith.truncf %11 : vector<8x768xf32> to vector<8x768xbf16>
    %31 = arith.truncf %17 : vector<8x1xf32> to vector<8x1xbf16>
    %32 = arith.truncf %29 : vector<8x1xf32> to vector<8x1xbf16>
    %33 = arith.truncf %12 : vector<1x768xf32> to vector<1x768xbf16>
    %34 = arith.truncf %13 : vector<1x768xf32> to vector<1x768xbf16>
    %35 = vector.broadcast %31 : vector<8x1xbf16> to vector<8x768xbf16>
    %36 = arith.subf %30, %35 : vector<8x768xbf16>
    %37 = vector.broadcast %32 : vector<8x1xbf16> to vector<8x768xbf16>
    %38 = arith.mulf %36, %37 : vector<8x768xbf16>
    %39 = vector.broadcast %33 : vector<1x768xbf16> to vector<8x768xbf16>
    %40 = arith.mulf %38, %39 : vector<8x768xbf16>
    %41 = vector.broadcast %34 : vector<1x768xbf16> to vector<8x768xbf16>
    %42 = arith.addf %40, %41 : vector<8x768xbf16>
    %cst_18 = arith.constant 0.000000e+00 : bf16
    %43 = vector.broadcast %cst_18 : bf16 to vector<8x768xbf16>
    %44 = arith.maximumf %42, %43 : vector<8x768xbf16>
    %c0_19 = arith.constant 0 : index
    %c0_20 = arith.constant 0 : index
    %45 = vector.load %arg5[%c0_19, %c0_20] : memref<768x512xbf16, #tpu.memory_space<vmem>>, vector<768x512xbf16>
    %cst_21 = arith.constant dense<0.000000e+00> : vector<8x512xf32>
    %46 = tpu.matmul %44, %45, %cst_21 {dimension_numbers = #tpu.dot_dimension_numbers<[1], [0], [0], [1], [0, 0, 1, 1], [], []>} : vector<8x768xbf16>, vector<768x512xbf16>, vector<8x512xf32> -> vector<8x512xf32>
    %c0_22 = arith.constant 0 : index
    %c2304 = arith.constant 2304 : index
    %47 = vector.load %arg9[%c0_22, %c2304] : memref<1x5761xf32, #tpu.memory_space<vmem>>, vector<1x512xf32>
    %48 = vector.broadcast %47 : vector<1x512xf32> to vector<8x512xf32>
    %49 = arith.addf %46, %48 : vector<8x512xf32>
    %c0_23 = arith.constant 0 : index
    %c2816 = arith.constant 2816 : index
    %50 = vector.load %arg9[%c0_23, %c2816] : memref<1x5761xf32, #tpu.memory_space<vmem>>, vector<1x512xf32>
    %c0_24 = arith.constant 0 : index
    %c3328 = arith.constant 3328 : index
    %51 = vector.load %arg9[%c0_24, %c3328] : memref<1x5761xf32, #tpu.memory_space<vmem>>, vector<1x512xf32>
    %cst_25 = arith.constant dense<0.000000e+00> : vector<8xf32>
    %52 = vector.multi_reduction <add>, %49, %cst_25 [1] : vector<8x512xf32> to vector<8xf32>
    %53 = vector.shape_cast %52 : vector<8xf32> to vector<8x1xf32>
    %cst_26 = arith.constant 5.120000e+02 : f32
    %54 = vector.broadcast %cst_26 : f32 to vector<8x1xf32>
    %55 = arith.divf %53, %54 : vector<8x1xf32>
    %56 = arith.mulf %49, %49 : vector<8x512xf32>
    %cst_27 = arith.constant dense<0.000000e+00> : vector<8xf32>
    %57 = vector.multi_reduction <add>, %56, %cst_27 [1] : vector<8x512xf32> to vector<8xf32>
    %58 = vector.shape_cast %57 : vector<8xf32> to vector<8x1xf32>
    %cst_28 = arith.constant 5.120000e+02 : f32
    %59 = vector.broadcast %cst_28 : f32 to vector<8x1xf32>
    %60 = arith.divf %58, %59 : vector<8x1xf32>
    %61 = arith.mulf %55, %55 : vector<8x1xf32>
    %62 = arith.subf %60, %61 : vector<8x1xf32>
    %cst_29 = arith.constant 0.000000e+00 : f32
    %63 = vector.broadcast %cst_29 : f32 to vector<8x1xf32>
    %64 = arith.maximumf %62, %63 : vector<8x1xf32>
    %cst_30 = arith.constant 9.99999974E-6 : f32
    %65 = vector.broadcast %cst_30 : f32 to vector<8x1xf32>
    %66 = arith.addf %64, %65 : vector<8x1xf32>
    %67 = math.rsqrt %66 : vector<8x1xf32>
    %68 = arith.truncf %49 : vector<8x512xf32> to vector<8x512xbf16>
    %69 = arith.truncf %55 : vector<8x1xf32> to vector<8x1xbf16>
    %70 = arith.truncf %67 : vector<8x1xf32> to vector<8x1xbf16>
    %71 = arith.truncf %50 : vector<1x512xf32> to vector<1x512xbf16>
    %72 = arith.truncf %51 : vector<1x512xf32> to vector<1x512xbf16>
    %73 = vector.broadcast %69 : vector<8x1xbf16> to vector<8x512xbf16>
    %74 = arith.subf %68, %73 : vector<8x512xbf16>
    %75 = vector.broadcast %70 : vector<8x1xbf16> to vector<8x512xbf16>
    %76 = arith.mulf %74, %75 : vector<8x512xbf16>
    %77 = vector.broadcast %71 : vector<1x512xbf16> to vector<8x512xbf16>
    %78 = arith.mulf %76, %77 : vector<8x512xbf16>
    %79 = vector.broadcast %72 : vector<1x512xbf16> to vector<8x512xbf16>
    %80 = arith.addf %78, %79 : vector<8x512xbf16>
    %cst_31 = arith.constant 0.000000e+00 : bf16
    %81 = vector.broadcast %cst_31 : bf16 to vector<8x512xbf16>
    %82 = arith.maximumf %80, %81 : vector<8x512xbf16>
    %c0_32 = arith.constant 0 : index
    %c0_33 = arith.constant 0 : index
    %83 = vector.load %arg6[%c0_32, %c0_33] : memref<512x384xbf16, #tpu.memory_space<vmem>>, vector<512x384xbf16>
    %cst_34 = arith.constant dense<0.000000e+00> : vector<8x384xf32>
    %84 = tpu.matmul %82, %83, %cst_34 {dimension_numbers = #tpu.dot_dimension_numbers<[1], [0], [0], [1], [0, 0, 1, 1], [], []>} : vector<8x512xbf16>, vector<512x384xbf16>, vector<8x384xf32> -> vector<8x384xf32>
    %c0_35 = arith.constant 0 : index
    %c3840 = arith.constant 3840 : index
    %85 = vector.load %arg9[%c0_35, %c3840] : memref<1x5761xf32, #tpu.memory_space<vmem>>, vector<1x384xf32>
    %86 = vector.broadcast %85 : vector<1x384xf32> to vector<8x384xf32>
    %87 = arith.addf %84, %86 : vector<8x384xf32>
    %c0_36 = arith.constant 0 : index
    %c4224 = arith.constant 4224 : index
    %88 = vector.load %arg9[%c0_36, %c4224] : memref<1x5761xf32, #tpu.memory_space<vmem>>, vector<1x384xf32>
    %c0_37 = arith.constant 0 : index
    %c4608 = arith.constant 4608 : index
    %89 = vector.load %arg9[%c0_37, %c4608] : memref<1x5761xf32, #tpu.memory_space<vmem>>, vector<1x384xf32>
    %cst_38 = arith.constant dense<0.000000e+00> : vector<8xf32>
    %90 = vector.multi_reduction <add>, %87, %cst_38 [1] : vector<8x384xf32> to vector<8xf32>
    %91 = vector.shape_cast %90 : vector<8xf32> to vector<8x1xf32>
    %cst_39 = arith.constant 3.840000e+02 : f32
    %92 = vector.broadcast %cst_39 : f32 to vector<8x1xf32>
    %93 = arith.divf %91, %92 : vector<8x1xf32>
    %94 = arith.mulf %87, %87 : vector<8x384xf32>
    %cst_40 = arith.constant dense<0.000000e+00> : vector<8xf32>
    %95 = vector.multi_reduction <add>, %94, %cst_40 [1] : vector<8x384xf32> to vector<8xf32>
    %96 = vector.shape_cast %95 : vector<8xf32> to vector<8x1xf32>
    %cst_41 = arith.constant 3.840000e+02 : f32
    %97 = vector.broadcast %cst_41 : f32 to vector<8x1xf32>
    %98 = arith.divf %96, %97 : vector<8x1xf32>
    %99 = arith.mulf %93, %93 : vector<8x1xf32>
    %100 = arith.subf %98, %99 : vector<8x1xf32>
    %cst_42 = arith.constant 0.000000e+00 : f32
    %101 = vector.broadcast %cst_42 : f32 to vector<8x1xf32>
    %102 = arith.maximumf %100, %101 : vector<8x1xf32>
    %cst_43 = arith.constant 9.99999974E-6 : f32
    %103 = vector.broadcast %cst_43 : f32 to vector<8x1xf32>
    %104 = arith.addf %102, %103 : vector<8x1xf32>
    %105 = math.rsqrt %104 : vector<8x1xf32>
    %106 = arith.truncf %87 : vector<8x384xf32> to vector<8x384xbf16>
    %107 = arith.truncf %93 : vector<8x1xf32> to vector<8x1xbf16>
    %108 = arith.truncf %105 : vector<8x1xf32> to vector<8x1xbf16>
    %109 = arith.truncf %88 : vector<1x384xf32> to vector<1x384xbf16>
    %110 = arith.truncf %89 : vector<1x384xf32> to vector<1x384xbf16>
    %111 = vector.broadcast %107 : vector<8x1xbf16> to vector<8x384xbf16>
    %112 = arith.subf %106, %111 : vector<8x384xbf16>
    %113 = vector.broadcast %108 : vector<8x1xbf16> to vector<8x384xbf16>
    %114 = arith.mulf %112, %113 : vector<8x384xbf16>
    %115 = vector.broadcast %109 : vector<1x384xbf16> to vector<8x384xbf16>
    %116 = arith.mulf %114, %115 : vector<8x384xbf16>
    %117 = vector.broadcast %110 : vector<1x384xbf16> to vector<8x384xbf16>
    %118 = arith.addf %116, %117 : vector<8x384xbf16>
    %cst_44 = arith.constant 0.000000e+00 : bf16
    %119 = vector.broadcast %cst_44 : bf16 to vector<8x384xbf16>
    %120 = arith.maximumf %118, %119 : vector<8x384xbf16>
    %c0_45 = arith.constant 0 : index
    %c0_46 = arith.constant 0 : index
    %121 = vector.load %arg7[%c0_45, %c0_46] : memref<384x256xbf16, #tpu.memory_space<vmem>>, vector<384x256xbf16>
    %cst_47 = arith.constant dense<0.000000e+00> : vector<8x256xf32>
    %122 = tpu.matmul %120, %121, %cst_47 {dimension_numbers = #tpu.dot_dimension_numbers<[1], [0], [0], [1], [0, 0, 1, 1], [], []>} : vector<8x384xbf16>, vector<384x256xbf16>, vector<8x256xf32> -> vector<8x256xf32>
    %c0_48 = arith.constant 0 : index
    %c4992 = arith.constant 4992 : index
    %123 = vector.load %arg9[%c0_48, %c4992] : memref<1x5761xf32, #tpu.memory_space<vmem>>, vector<1x256xf32>
    %124 = vector.broadcast %123 : vector<1x256xf32> to vector<8x256xf32>
    %125 = arith.addf %122, %124 : vector<8x256xf32>
    %c0_49 = arith.constant 0 : index
    %c5248 = arith.constant 5248 : index
    %126 = vector.load %arg9[%c0_49, %c5248] : memref<1x5761xf32, #tpu.memory_space<vmem>>, vector<1x256xf32>
    %c0_50 = arith.constant 0 : index
    %c5504 = arith.constant 5504 : index
    %127 = vector.load %arg9[%c0_50, %c5504] : memref<1x5761xf32, #tpu.memory_space<vmem>>, vector<1x256xf32>
    %cst_51 = arith.constant dense<0.000000e+00> : vector<8xf32>
    %128 = vector.multi_reduction <add>, %125, %cst_51 [1] : vector<8x256xf32> to vector<8xf32>
    %129 = vector.shape_cast %128 : vector<8xf32> to vector<8x1xf32>
    %cst_52 = arith.constant 2.560000e+02 : f32
    %130 = vector.broadcast %cst_52 : f32 to vector<8x1xf32>
    %131 = arith.divf %129, %130 : vector<8x1xf32>
    %132 = arith.mulf %125, %125 : vector<8x256xf32>
    %cst_53 = arith.constant dense<0.000000e+00> : vector<8xf32>
    %133 = vector.multi_reduction <add>, %132, %cst_53 [1] : vector<8x256xf32> to vector<8xf32>
    %134 = vector.shape_cast %133 : vector<8xf32> to vector<8x1xf32>
    %cst_54 = arith.constant 2.560000e+02 : f32
    %135 = vector.broadcast %cst_54 : f32 to vector<8x1xf32>
    %136 = arith.divf %134, %135 : vector<8x1xf32>
    %137 = arith.mulf %131, %131 : vector<8x1xf32>
    %138 = arith.subf %136, %137 : vector<8x1xf32>
    %cst_55 = arith.constant 0.000000e+00 : f32
    %139 = vector.broadcast %cst_55 : f32 to vector<8x1xf32>
    %140 = arith.maximumf %138, %139 : vector<8x1xf32>
    %cst_56 = arith.constant 9.99999974E-6 : f32
    %141 = vector.broadcast %cst_56 : f32 to vector<8x1xf32>
    %142 = arith.addf %140, %141 : vector<8x1xf32>
    %143 = math.rsqrt %142 : vector<8x1xf32>
    %144 = arith.truncf %125 : vector<8x256xf32> to vector<8x256xbf16>
    %145 = arith.truncf %131 : vector<8x1xf32> to vector<8x1xbf16>
    %146 = arith.truncf %143 : vector<8x1xf32> to vector<8x1xbf16>
    %147 = arith.truncf %126 : vector<1x256xf32> to vector<1x256xbf16>
    %148 = arith.truncf %127 : vector<1x256xf32> to vector<1x256xbf16>
    %149 = vector.broadcast %145 : vector<8x1xbf16> to vector<8x256xbf16>
    %150 = arith.subf %144, %149 : vector<8x256xbf16>
    %151 = vector.broadcast %146 : vector<8x1xbf16> to vector<8x256xbf16>
    %152 = arith.mulf %150, %151 : vector<8x256xbf16>
    %153 = vector.broadcast %147 : vector<1x256xbf16> to vector<8x256xbf16>
    %154 = arith.mulf %152, %153 : vector<8x256xbf16>
    %155 = vector.broadcast %148 : vector<1x256xbf16> to vector<8x256xbf16>
    %156 = arith.addf %154, %155 : vector<8x256xbf16>
    %cst_57 = arith.constant 0.000000e+00 : bf16
    %157 = vector.broadcast %cst_57 : bf16 to vector<8x256xbf16>
    %158 = arith.maximumf %156, %157 : vector<8x256xbf16>
    %c0_58 = arith.constant 0 : index
    %c0_59 = arith.constant 0 : index
    %159 = vector.load %arg8[%c0_58, %c0_59] : memref<1x256xf32, #tpu.memory_space<vmem>>, vector<1x256xf32>
    %160 = arith.extf %158 : vector<8x256xbf16> to vector<8x256xf32>
    %161 = vector.broadcast %159 : vector<1x256xf32> to vector<8x256xf32>
    %162 = arith.mulf %160, %161 : vector<8x256xf32>
    %cst_60 = arith.constant dense<0.000000e+00> : vector<8xf32>
    %163 = vector.multi_reduction <add>, %162, %cst_60 [1] : vector<8x256xf32> to vector<8xf32>
    %164 = vector.shape_cast %163 : vector<8xf32> to vector<8x1xf32>
    %c0_61 = arith.constant 0 : index
    %c5760 = arith.constant 5760 : index
    %165 = vector.load %arg9[%c0_61, %c5760] : memref<1x5761xf32, #tpu.memory_space<vmem>>, vector<1x1xf32>
    %166 = vector.broadcast %165 : vector<1x1xf32> to vector<8x1xf32>
    %167 = arith.addf %164, %166 : vector<8x1xf32>
    %c0_62 = arith.constant 0 : index
    %c0_63 = arith.constant 0 : index
    %168 = vector.load %arg10[%c0_62, %c0_63] : memref<8x1xf32, #tpu.memory_space<vmem>>, vector<8x1xf32>
    tpu.vector_store %arg10[%c0_62, %c0_63], %167 {strides = array<i32>} : memref<8x1xf32, #tpu.memory_space<vmem>>, vector<8x1xf32>,
    return
  }
  func.func @transform_0(%arg0: i32) -> (i32, i32) {
    %c0_i32 = arith.constant 0 : i32
    %c0_i32_0 = arith.constant 0 : i32
    return %arg0, %c0_i32 : i32, i32
  }
  func.func @transform_1(%arg0: i32) -> (i32, i32) {
    %c0_i32 = arith.constant 0 : i32
    %c0_i32_0 = arith.constant 0 : i32
    return %arg0, %c0_i32 : i32, i32
  }
  func.func @transform_2(%arg0: i32) -> (i32, i32) {
    %c0_i32 = arith.constant 0 : i32
    %c0_i32_0 = arith.constant 0 : i32
    %c0_i32_1 = arith.constant 0 : i32
    return %c0_i32, %c0_i32_0 : i32, i32
  }
  func.func @transform_3(%arg0: i32) -> (i32, i32) {
    %c0_i32 = arith.constant 0 : i32
    %c0_i32_0 = arith.constant 0 : i32
    %c0_i32_1 = arith.constant 0 : i32
    return %c0_i32, %c0_i32_0 : i32, i32
  }
  func.func @transform_4(%arg0: i32) -> (i32, i32) {
    %c0_i32 = arith.constant 0 : i32
    %c0_i32_0 = arith.constant 0 : i32
    %c0_i32_1 = arith.constant 0 : i32
    return %c0_i32, %c0_i32_0 : i32, i32
  }
  func.func @transform_5(%arg0: i32) -> (i32, i32) {
    %c0_i32 = arith.constant 0 : i32
    %c0_i32_0 = arith.constant 0 : i32
    %c0_i32_1 = arith.constant 0 : i32
    return %c0_i32, %c0_i32_0 : i32, i32
  }
  func.func @transform_6(%arg0: i32) -> (i32, i32) {
    %c0_i32 = arith.constant 0 : i32
    %c0_i32_0 = arith.constant 0 : i32
    %c0_i32_1 = arith.constant 0 : i32
    return %c0_i32, %c0_i32_0 : i32, i32
  }
  func.func @transform_7(%arg0: i32) -> (i32, i32) {
    %c0_i32 = arith.constant 0 : i32
    %c0_i32_0 = arith.constant 0 : i32
    %c0_i32_1 = arith.constant 0 : i32
    return %c0_i32, %c0_i32_0 : i32, i32
  }
  func.func @transform_8(%arg0: i32) -> (i32, i32) {
    %c0_i32 = arith.constant 0 : i32
    %c0_i32_0 = arith.constant 0 : i32
    %c0_i32_1 = arith.constant 0 : i32
    return %c0_i32, %c0_i32_0 : i32, i32
  }
  func.func @transform_9(%arg0: i32) -> (i32, i32) {
    %c0_i32 = arith.constant 0 : i32
    %c0_i32_0 = arith.constant 0 : i32
    return %arg0, %c0_i32 : i32, i32
  }
}

</mosaic_0001>

<llo_original>
// kernel: critic_forward.1
$region0: #{critic_forward.1}
  #allocation0 [shape = 'u32[]', space=smem, size = 0x4, offset = 0x4, fixed_abs, tag = 'smem constant byte address 0x4 - core index']
  #allocation1 [shape = 'u32[144,128]{1,0:T(1,128)}', space=vmem, size = 0x12000, scoped, tag = 'internal scratch']
  %s0 = inlined_call_operand.hbm [shape: f32[8,768], index: 0, kind: input, shape index: {}]
  %s1 = inlined_call_operand.vmem [shape: f32[8,4], index: 1, kind: input, shape index: {}]
  %s2 = inlined_call_operand.hbm [shape: bf16[768,768], index: 2, kind: input, shape index: {}]
  %s3 = inlined_call_operand.hbm [shape: bf16[4,768], index: 3, kind: input, shape index: {}]
  %s4 = inlined_call_operand.hbm [shape: bf16[768,512], index: 4, kind: input, shape index: {}]
  %s5 = inlined_call_operand.hbm [shape: bf16[512,384], index: 5, kind: input, shape index: {}]
  %s6 = inlined_call_operand.hbm [shape: bf16[384,256], index: 6, kind: input, shape index: {}]
  %s7 = inlined_call_operand.hbm [shape: f32[1,256], index: 7, kind: input, shape index: {}]
  %s8 = inlined_call_operand.hbm [shape: f32[1,5761], index: 8, kind: input, shape index: {}]
  %s9 = inlined_call_operand.vmem [shape: f32[8,1], index: 9, kind: output, shape index: {}]
  %s10 = sld [smem:[#allocation0]]
  $region78: #{critic_forward.1} parent=0
    _
  %s12 = ssub.s32 1, %s10
  %s13 = scalar_select 0, %s12, %s10
  $region1: #{critic_forward.1} parent=0
    #allocation2 [shape = 'u8[24576]{0}', space=vmem, size = 0x6000, scoped, tag = 'input window, operand 0, single buffered']
    #allocation3 [shape = 's32[1]{0}', space=sflag, size = 0x4, scoped, tag = 'scoped memory for critic_forward.1']
    #allocation4 [shape = 'u8[1179648]{0}', space=vmem, size = 0x120000, scoped, tag = 'input window, operand 2, single buffered']
    #allocation5 [shape = 's32[1]{0}', space=sflag, size = 0x4, scoped, tag = 'scoped memory for critic_forward.1']
    #allocation6 [shape = 'u8[6144]{0}', space=vmem, size = 0x1800, scoped, tag = 'input window, operand 3, single buffered']
    #allocation7 [shape = 'u8[786432]{0}', space=vmem, size = 0xc0000, scoped, tag = 'input window, operand 4, single buffered']
    #allocation8 [shape = 's32[1]{0}', space=sflag, size = 0x4, scoped, tag = 'scoped memory for critic_forward.1']
    #allocation9 [shape = 'u8[393216]{0}', space=vmem, size = 0x60000, scoped, tag = 'input window, operand 5, single buffered']
    #allocation10 [shape = 'u8[196608]{0}', space=vmem, size = 0x30000, scoped, tag = 'input window, operand 6, single buffered']
    #allocation11 [shape = 's32[1]{0}', space=sflag, size = 0x4, scoped, tag = 'scoped memory for critic_forward.1']
    #allocation12 [shape = 'u8[1024]{0}', space=vmem, size = 0x400, scoped, tag = 'input window, operand 7, single buffered']
    #allocation13 [shape = 'u8[23552]{0}', space=vmem, size = 0x5c00, scoped, tag = 'input window, operand 8, single buffered']
    #allocation14 [shape = 's32[1]{0}', space=sflag, size = 0x4, scoped, tag = 'scoped memory for critic_forward.1']
    %14 = vsyncpa [#allocation3], 0
    %15 = vsyncpa [#allocation5], 0
    %16 = vsyncpa [#allocation8], 0
    %17 = vsyncpa [#allocation11], 0
    %18 = vsyncpa [#allocation14], 0
    // Predicated region
    $region2: #{critic_forward.1} parent=1 // pred_check
      _
    $region3: #{critic_forward.1} parent=1 // pred_check_branch
      %20 = sbr.rel (0) target = $region5
    $region4: #{critic_forward.1} parent=1 // pred_region
      %s22 = ssub.s32 768, 768
      %23 = vsyncadd [#allocation3], %s22
      %s25 = sshll.u32 [#allocation2], 4
      %s26 = int_to_ptr.vmem [resolvable:$true] %s25
      %28 = dma.hbm_to_vmem [thread:$0]  %s0, 768, %s26, [#allocation3]
    $region5: #{critic_forward.1} parent=1 // pred_fallthru
      _
    // Predicated region
    $region6: #{critic_forward.1} parent=1 // pred_check
      _
    $region7: #{critic_forward.1} parent=1 // pred_check_branch
      %30 = sbr.rel (0) target = $region9
    $region8: #{critic_forward.1} parent=1 // pred_region
      _
    $region9: #{critic_forward.1} parent=1 // pred_fallthru
      _
    // Predicated region
    $region10: #{critic_forward.1} parent=1 // pred_check
      _
    $region11: #{critic_forward.1} parent=1 // pred_check_branch
      %32 = sbr.rel (0) target = $region13
    $region12: #{critic_forward.1} parent=1 // pred_region
      %s34 = ssub.s32 36864, 36864
      %35 = vsyncadd [#allocation5], %s34
      %s36 = sshll.u32 [#allocation4], 4
      %s37 = int_to_ptr.vmem [resolvable:$true] %s36
      %42 = dma.hbm_to_vmem [thread:$0]  %s2, 36864, %s37, [#allocation5], 384, 384, 24
    $region13: #{critic_forward.1} parent=1 // pred_fallthru
      _
    // Predicated region
    $region14: #{critic_forward.1} parent=1 // pred_check
      _
    $region15: #{critic_forward.1} parent=1 // pred_check_branch
      %44 = sbr.rel (0) target = $region17
    $region16: #{critic_forward.1} parent=1 // pred_region
      %s46 = ssub.s32 192, 192
      %47 = vsyncadd [#allocation5], %s46
      %s49 = sshll.u32 [#allocation6], 4
      %s50 = int_to_ptr.vmem [resolvable:$true] %s49
      %52 = dma.hbm_to_vmem [thread:$0]  %s3, 192, %s50, [#allocation5]
    $region17: #{critic_forward.1} parent=1 // pred_fallthru
      _
    // Predicated region
    $region18: #{critic_forward.1} parent=1 // pred_check
      _
    $region19: #{critic_forward.1} parent=1 // pred_check_branch
      %54 = sbr.rel (0) target = $region21
    $region20: #{critic_forward.1} parent=1 // pred_region
      %s56 = ssub.s32 24576, 24576
      %57 = vsyncadd [#allocation8], %s56
      %s58 = sshll.u32 [#allocation7], 4
      %s59 = int_to_ptr.vmem [resolvable:$true] %s58
      %64 = dma.hbm_to_vmem [thread:$0]  %s4, 24576, %s59, [#allocation8], 256, 256, 16
    $region21: #{critic_forward.1} parent=1 // pred_fallthru
      _
    // Predicated region
    $region22: #{critic_forward.1} parent=1 // pred_check
      _
    $region23: #{critic_forward.1} parent=1 // pred_check_branch
      %66 = sbr.rel (0) target = $region25
    $region24: #{critic_forward.1} parent=1 // pred_region
      %s68 = ssub.s32 12288, 12288
      %69 = vsyncadd [#allocation8], %s68
      %s70 = sshll.u32 [#allocation9], 4
      %s71 = int_to_ptr.vmem [resolvable:$true] %s70
      %76 = dma.hbm_to_vmem [thread:$0]  %s5, 12288, %s71, [#allocation8], 192, 192, 12
    $region25: #{critic_forward.1} parent=1 // pred_fallthru
      _
    // Predicated region
    $region26: #{critic_forward.1} parent=1 // pred_check
      _
    $region27: #{critic_forward.1} parent=1 // pred_check_branch
      %78 = sbr.rel (0) target = $region29
    $region28: #{critic_forward.1} parent=1 // pred_region
      %s80 = ssub.s32 6144, 6144
      %81 = vsyncadd [#allocation11], %s80
      %s82 = sshll.u32 [#allocation10], 4
      %s83 = int_to_ptr.vmem [resolvable:$true] %s82
      %88 = dma.hbm_to_vmem [thread:$0]  %s6, 6144, %s83, [#allocation11], 128, 128, 8
    $region29: #{critic_forward.1} parent=1 // pred_fallthru
      _
    // Predicated region
    $region30: #{critic_forward.1} parent=1 // pred_check
      _
    $region31: #{critic_forward.1} parent=1 // pred_check_branch
      %90 = sbr.rel (0) target = $region33
    $region32: #{critic_forward.1} parent=1 // pred_region
      %s92 = ssub.s32 32, 32
      %93 = vsyncadd [#allocation11], %s92
      %s95 = sshll.u32 [#allocation12], 4
      %s96 = int_to_ptr.vmem [resolvable:$true] %s95
      %98 = dma.hbm_to_vmem [thread:$0]  %s7, 32, %s96, [#allocation11]
    $region33: #{critic_forward.1} parent=1 // pred_fallthru
      _
    // Predicated region
    $region34: #{critic_forward.1} parent=1 // pred_check
      _
    $region35: #{critic_forward.1} parent=1 // pred_check_branch
      %100 = sbr.rel (0) target = $region37
    $region36: #{critic_forward.1} parent=1 // pred_region
      %s102 = ssub.s32 736, 736
      %103 = vsyncadd [#allocation14], %s102
      %s105 = sshll.u32 [#allocation13], 4
      %s106 = int_to_ptr.vmem [resolvable:$true] %s105
      %108 = dma.hbm_to_vmem [thread:$0]  %s8, 736, %s106, [#allocation14]
    $region37: #{critic_forward.1} parent=1 // pred_fallthru
      _
    // Predicated region
    $region38: #{critic_forward.1} parent=1 // pred_check
      _
    $region39: #{critic_forward.1} parent=1 // pred_check_branch
      %110 = sbr.rel (0) target = $region41
    $region40: #{critic_forward.1} parent=1 // pred_region
      %111 = dma.done [#allocation3], 768
    $region41: #{critic_forward.1} parent=1 // pred_fallthru
      _
    // Predicated region
    $region42: #{critic_forward.1} parent=1 // pred_check
      _
    $region43: #{critic_forward.1} parent=1 // pred_check_branch
      %113 = sbr.rel (0) target = $region45
    $region44: #{critic_forward.1} parent=1 // pred_region
      %114 = dma.done [#allocation5], 36864
    $region45: #{critic_forward.1} parent=1 // pred_fallthru
      _
    // Predicated region
    $region46: #{critic_forward.1} parent=1 // pred_check
      _
    $region47: #{critic_forward.1} parent=1 // pred_check_branch
      %116 = sbr.rel (0) target = $region49
    $region48: #{critic_forward.1} parent=1 // pred_region
      %117 = dma.done [#allocation5], 192
    $region49: #{critic_forward.1} parent=1 // pred_fallthru
      _
    // Predicated region
    $region50: #{critic_forward.1} parent=1 // pred_check
      _
    $region51: #{critic_forward.1} parent=1 // pred_check_branch
      %119 = sbr.rel (0) target = $region53
    $region52: #{critic_forward.1} parent=1 // pred_region
      %120 = dma.done [#allocation8], 24576
    $region53: #{critic_forward.1} parent=1 // pred_fallthru
      _
    // Predicated region
    $region54: #{critic_forward.1} parent=1 // pred_check
      _
    $region55: #{critic_forward.1} parent=1 // pred_check_branch
      %122 = sbr.rel (0) target = $region57
    $region56: #{critic_forward.1} parent=1 // pred_region
      %123 = dma.done [#allocation8], 12288
    $region57: #{critic_forward.1} parent=1 // pred_fallthru
      _
    // Predicated region
    $region58: #{critic_forward.1} parent=1 // pred_check
      _
    $region59: #{critic_forward.1} parent=1 // pred_check_branch
      %125 = sbr.rel (0) target = $region61
    $region60: #{critic_forward.1} parent=1 // pred_region
      %126 = dma.done [#allocation11], 6144
    $region61: #{critic_forward.1} parent=1 // pred_fallthru
      _
    // Predicated region
    $region62: #{critic_forward.1} parent=1 // pred_check
      _
    $region63: #{critic_forward.1} parent=1 // pred_check_branch
      %128 = sbr.rel (0) target = $region65
    $region64: #{critic_forward.1} parent=1 // pred_region
      %129 = dma.done [#allocation11], 32
    $region65: #{critic_forward.1} parent=1 // pred_fallthru
      _
    // Predicated region
    $region66: #{critic_forward.1} parent=1 // pred_check
      _
    $region67: #{critic_forward.1} parent=1 // pred_check_branch
      %131 = sbr.rel (0) target = $region69
    $region68: #{critic_forward.1} parent=1 // pred_region
      %132 = dma.done [#allocation14], 736
    $region69: #{critic_forward.1} parent=1 // pred_fallthru
      _
    %v134 = vld [vmem:[#allocation2] sm:$0xff]
    %v135 = vld [vmem:[#allocation2 + $0x8] sm:$0xff]
    %v136 = vld [vmem:[#allocation2 + $0x10] sm:$0xff]
    %v137 = vld [vmem:[#allocation2 + $0x18] sm:$0xff]
    %v138 = vld [vmem:[#allocation2 + $0x20] sm:$0xff]
    %v139 = vld [vmem:[#allocation2 + $0x28] sm:$0xff]
    %v140 = vpack.c.bf16 %v134, %v134
    %v141 = vpack.c.bf16 %v135, %v135
    %v142 = vpack.c.bf16 %v136, %v136
    %v143 = vpack.c.bf16 %v137, %v137
    %v144 = vpack.c.bf16 %v138, %v138
    %v145 = vpack.c.bf16 %v139, %v139
    %v146 = vld [vmem:[#allocation4] sm:$0xff]
    %v147 = vld [vmem:[#allocation4 + $0x8] sm:$0xff]
    %v148 = vld [vmem:[#allocation4 + $0x10] sm:$0xff]
    %v149 = vld [vmem:[#allocation4 + $0x18] sm:$0xff]
    %v150 = vld [vmem:[#allocation4 + $0x20] sm:$0xff]
    %v151 = vld [vmem:[#allocation4 + $0x28] sm:$0xff]
    %v152 = vld [vmem:[#allocation4 + $0x30] sm:$0xff]
    %v153 = vld [vmem:[#allocation4 + $0x38] sm:$0xff]
    %v154 = vld [vmem:[#allocation4 + $0x40] sm:$0xff]
    %v155 = vld [vmem:[#allocation4 + $0x48] sm:$0xff]
    %v156 = vld [vmem:[#allocation4 + $0x50] sm:$0xff]
    %v157 = vld [vmem:[#allocation4 + $0x58] sm:$0xff]
    %v158 = vld [vmem:[#allocation4 + $0x60] sm:$0xff]
    %v159 = vld [vmem:[#allocation4 + $0x68] sm:$0xff]
    %v160 = vld [vmem:[#allocation4 + $0x70] sm:$0xff]
    %v161 = vld [vmem:[#allocation4 + $0x78] sm:$0xff]
    %v162 = vld [vmem:[#allocation4 + $0x80] sm:$0xff]
    %v163 = vld [vmem:[#allocation4 + $0x88] sm:$0xff]
    %v164 = vld [vmem:[#allocation4 + $0x90] sm:$0xff]
    %v165 = vld [vmem:[#allocation4 + $0x98] sm:$0xff]
    %v166 = vld [vmem:[#allocation4 + $0xa0] sm:$0xff]
    %v167 = vld [vmem:[#allocation4 + $0xa8] sm:$0xff]
    %v168 = vld [vmem:[#allocation4 + $0xb0] sm:$0xff]
    %v169 = vld [vmem:[#allocation4 + $0xb8] sm:$0xff]
    %v170 = vld [vmem:[#allocation4 + $0xc0] sm:$0xff]
    %v171 = vld [vmem:[#allocation4 + $0xc8] sm:$0xff]
    %v172 = vld [vmem:[#allocation4 + $0xd0] sm:$0xff]
    %v173 = vld [vmem:[#allocation4 + $0xd8] sm:$0xff]
    %v174 = vld [vmem:[#allocation4 + $0xe0] sm:$0xff]
    %v175 = vld [vmem:[#allocation4 + $0xe8] sm:$0xff]
    %v176 = vld [vmem:[#allocation4 + $0xf0] sm:$0xff]
    %v177 = vld [vmem:[#allocation4 + $0xf8] sm:$0xff]
    %v178 = vld [vmem:[#allocation4 + $0x100] sm:$0xff]
    %v179 = vld [vmem:[#allocation4 + $0x108] sm:$0xff]
    %v180 = vld [vmem:[#allocation4 + $0x110] sm:$0xff]
    %v181 = vld [vmem:[#allocation4 + $0x118] sm:$0xff]
    %v182 = vld [vmem:[#allocation4 + $0x120] sm:$0xff]
    %v183 = vld [vmem:[#allocation4 + $0x128] sm:$0xff]
    %v184 = vld [vmem:[#allocation4 + $0x130] sm:$0xff]
    %v185 = vld [vmem:[#allocation4 + $0x138] sm:$0xff]
    %v186 = vld [vmem:[#allocation4 + $0x140] sm:$0xff]
    %v187 = vld [vmem:[#allocation4 + $0x148] sm:$0xff]
    %v188 = vld [vmem:[#allocation4 + $0x150] sm:$0xff]
    %v189 = vld [vmem:[#allocation4 + $0x158] sm:$0xff]
    %v190 = vld [vmem:[#allocation4 + $0x160] sm:$0xff]
    %v191 = vld [vmem:[#allocation4 + $0x168] sm:$0xff]
    %v192 = vld [vmem:[#allocation4 + $0x170] sm:$0xff]
    %v193 = vld [vmem:[#allocation4 + $0x178] sm:$0xff]
    %v194 = vld [vmem:[#allocation4 + $0x180] sm:$0xff]
    %v195 = vld [vmem:[#allocation4 + $0x188] sm:$0xff]
    %v196 = vld [vmem:[#allocation4 + $0x190] sm:$0xff]
    %v197 = vld [vmem:[#allocation4 + $0x198] sm:$0xff]
    %v198 = vld [vmem:[#allocation4 + $0x1a0] sm:$0xff]
    %v199 = vld [vmem:[#allocation4 + $0x1a8] sm:$0xff]
    %v200 = vld [vmem:[#allocation4 + $0x1b0] sm:$0xff]
    %v201 = vld [vmem:[#allocation4 + $0x1b8] sm:$0xff]
    %v202 = vld [vmem:[#allocation4 + $0x1c0] sm:$0xff]
    %v203 = vld [vmem:[#allocation4 + $0x1c8] sm:$0xff]
    %v204 = vld [vmem:[#allocation4 + $0x1d0] sm:$0xff]
    %v205 = vld [vmem:[#allocation4 + $0x1d8] sm:$0xff]
    %v206 = vld [vmem:[#allocation4 + $0x1e0] sm:$0xff]
    %v207 = vld [vmem:[#allocation4 + $0x1e8] sm:$0xff]
    %v208 = vld [vmem:[#allocation4 + $0x1f0] sm:$0xff]
    %v209 = vld [vmem:[#allocation4 + $0x1f8] sm:$0xff]
    %v210 = vld [vmem:[#allocation4 + $0x200] sm:$0xff]
    %v211 = vld [vmem:[#allocation4 + $0x208] sm:$0xff]
    %v212 = vld [vmem:[#allocation4 + $0x210] sm:$0xff]
    %v213 = vld [vmem:[#allocation4 + $0x218] sm:$0xff]
    %v214 = vld [vmem:[#allocation4 + $0x220] sm:$0xff]
    %v215 = vld [vmem:[#allocation4 + $0x228] sm:$0xff]
    %v216 = vld [vmem:[#allocation4 + $0x230] sm:$0xff]
    %v217 = vld [vmem:[#allocation4 + $0x238] sm:$0xff]
    %v218 = vld [vmem:[#allocation4 + $0x240] sm:$0xff]
    %v219 = vld [vmem:[#allocation4 + $0x248] sm:$0xff]
    %v220 = vld [vmem:[#allocation4 + $0x250] sm:$0xff]
    %v221 = vld [vmem:[#allocation4 + $0x258] sm:$0xff]
    %v222 = vld [vmem:[#allocation4 + $0x260] sm:$0xff]
    %v223 = vld [vmem:[#allocation4 + $0x268] sm:$0xff]
    %v224 = vld [vmem:[#allocation4 + $0x270] sm:$0xff]
    %v225 = vld [vmem:[#allocation4 + $0x278] sm:$0xff]
    %v226 = vld [vmem:[#allocation4 + $0x280] sm:$0xff]
    %v227 = vld [vmem:[#allocation4 + $0x288] sm:$0xff]
    %v228 = vld [vmem:[#allocation4 + $0x290] sm:$0xff]
    %v229 = vld [vmem:[#allocation4 + $0x298] sm:$0xff]
    %v230 = vld [vmem:[#allocation4 + $0x2a0] sm:$0xff]
    %v231 = vld [vmem:[#allocation4 + $0x2a8] sm:$0xff]
    %v232 = vld [vmem:[#allocation4 + $0x2b0] sm:$0xff]
    %v233 = vld [vmem:[#allocation4 + $0x2b8] sm:$0xff]
    %v234 = vld [vmem:[#allocation4 + $0x2c0] sm:$0xff]
    %v235 = vld [vmem:[#allocation4 + $0x2c8] sm:$0xff]
    %v236 = vld [vmem:[#allocation4 + $0x2d0] sm:$0xff]
    %v237 = vld [vmem:[#allocation4 + $0x2d8] sm:$0xff]
    %v238 = vld [vmem:[#allocation4 + $0x2e0] sm:$0xff]
    %v239 = vld [vmem:[#allocation4 + $0x2e8] sm:$0xff]
    %v240 = vld [vmem:[#allocation4 + $0x2f0] sm:$0xff]
    %v241 = vld [vmem:[#allocation4 + $0x2f8] sm:$0xff]
    %v242 = vld [vmem:[#allocation4 + $0x300] sm:$0xff]
    %v243 = vld [vmem:[#allocation4 + $0x308] sm:$0xff]
    %v244 = vld [vmem:[#allocation4 + $0x310] sm:$0xff]
    %v245 = vld [vmem:[#allocation4 + $0x318] sm:$0xff]
    %v246 = vld [vmem:[#allocation4 + $0x320] sm:$0xff]
    %v247 = vld [vmem:[#allocation4 + $0x328] sm:$0xff]
    %v248 = vld [vmem:[#allocation4 + $0x330] sm:$0xff]
    %v249 = vld [vmem:[#allocation4 + $0x338] sm:$0xff]
    %v250 = vld [vmem:[#allocation4 + $0x340] sm:$0xff]
    %v251 = vld [vmem:[#allocation4 + $0x348] sm:$0xff]
    %v252 = vld [vmem:[#allocation4 + $0x350] sm:$0xff]
    %v253 = vld [vmem:[#allocation4 + $0x358] sm:$0xff]
    %v254 = vld [vmem:[#allocation4 + $0x360] sm:$0xff]
    %v255 = vld [vmem:[#allocation4 + $0x368] sm:$0xff]
    %v256 = vld [vmem:[#allocation4 + $0x370] sm:$0xff]
    %v257 = vld [vmem:[#allocation4 + $0x378] sm:$0xff]
    %v258 = vld [vmem:[#allocation4 + $0x380] sm:$0xff]
    %v259 = vld [vmem:[#allocation4 + $0x388] sm:$0xff]
    %v260 = vld [vmem:[#allocation4 + $0x390] sm:$0xff]
    %v261 = vld [vmem:[#allocation4 + $0x398] sm:$0xff]
    %v262 = vld [vmem:[#allocation4 + $0x3a0] sm:$0xff]
    %v263 = vld [vmem:[#allocation4 + $0x3a8] sm:$0xff]
    %v264 = vld [vmem:[#allocation4 + $0x3b0] sm:$0xff]
    %v265 = vld [vmem:[#allocation4 + $0x3b8] sm:$0xff]
    %v266 = vld [vmem:[#allocation4 + $0x3c0] sm:$0xff]
    %v267 = vld [vmem:[#allocation4 + $0x3c8] sm:$0xff]
    %v268 = vld [vmem:[#allocation4 + $0x3d0] sm:$0xff]
    %v269 = vld [vmem:[#allocation4 + $0x3d8] sm:$0xff]
    %v270 = vld [vmem:[#allocation4 + $0x3e0] sm:$0xff]
    %v271 = vld [vmem:[#allocation4 + $0x3e8] sm:$0xff]
    %v272 = vld [vmem:[#allocation4 + $0x3f0] sm:$0xff]
    %v273 = vld [vmem:[#allocation4 + $0x3f8] sm:$0xff]
    %v274 = vld [vmem:[#allocation4 + $0x400] sm:$0xff]
    %v275 = vld [vmem:[#allocation4 + $0x408] sm:$0xff]
    %v276 = vld [vmem:[#allocation4 + $0x410] sm:$0xff]
    %v277 = vld [vmem:[#allocation4 + $0x418] sm:$0xff]
    %v278 = vld [vmem:[#allocation4 + $0x420] sm:$0xff]
    %v279 = vld [vmem:[#allocation4 + $0x428] sm:$0xff]
    %v280 = vld [vmem:[#allocation4 + $0x430] sm:$0xff]
    %v281 = vld [vmem:[#allocation4 + $0x438] sm:$0xff]
    %v282 = vld [vmem:[#allocation4 + $0x440] sm:$0xff]
    %v283 = vld [vmem:[#allocation4 + $0x448] sm:$0xff]
    %v284 = vld [vmem:[#allocation4 + $0x450] sm:$0xff]
    %v285 = vld [vmem:[#allocation4 + $0x458] sm:$0xff]
    %v286 = vld [vmem:[#allocation4 + $0x460] sm:$0xff]
    %v287 = vld [vmem:[#allocation4 + $0x468] sm:$0xff]
    %v288 = vld [vmem:[#allocation4 + $0x470] sm:$0xff]
    %v289 = vld [vmem:[#allocation4 + $0x478] sm:$0xff]
    %v290 = vld [vmem:[#allocation4 + $0x480] sm:$0xff]
    %v291 = vld [vmem:[#allocation4 + $0x488] sm:$0xff]
    %v292 = vld [vmem:[#allocation4 + $0x490] sm:$0xff]
    %v293 = vld [vmem:[#allocation4 + $0x498] sm:$0xff]
    %v294 = vld [vmem:[#allocation4 + $0x4a0] sm:$0xff]
    %v295 = vld [vmem:[#allocation4 + $0x4a8] sm:$0xff]
    %v296 = vld [vmem:[#allocation4 + $0x4b0] sm:$0xff]
    %v297 = vld [vmem:[#allocation4 + $0x4b8] sm:$0xff]
    %v298 = vld [vmem:[#allocation4 + $0x4c0] sm:$0xff]
    %v299 = vld [vmem:[#allocation4 + $0x4c8] sm:$0xff]
    %v300 = vld [vmem:[#allocation4 + $0x4d0] sm:$0xff]
    %v301 = vld [vmem:[#allocation4 + $0x4d8] sm:$0xff]
    %v302 = vld [vmem:[#allocation4 + $0x4e0] sm:$0xff]
    %v303 = vld [vmem:[#allocation4 + $0x4e8] sm:$0xff]
    %v304 = vld [vmem:[#allocation4 + $0x4f0] sm:$0xff]
    %v305 = vld [vmem:[#allocation4 + $0x4f8] sm:$0xff]
    %v306 = vld [vmem:[#allocation4 + $0x500] sm:$0xff]
    %v307 = vld [vmem:[#allocation4 + $0x508] sm:$0xff]
    %v308 = vld [vmem:[#allocation4 + $0x510] sm:$0xff]
    %v309 = vld [vmem:[#allocation4 + $0x518] sm:$0xff]
    %v310 = vld [vmem:[#allocation4 + $0x520] sm:$0xff]
    %v311 = vld [vmem:[#allocation4 + $0x528] sm:$0xff]
    %v312 = vld [vmem:[#allocation4 + $0x530] sm:$0xff]
    %v313 = vld [vmem:[#allocation4 + $0x538] sm:$0xff]
    %v314 = vld [vmem:[#allocation4 + $0x540] sm:$0xff]
    %v315 = vld [vmem:[#allocation4 + $0x548] sm:$0xff]
    %v316 = vld [vmem:[#allocation4 + $0x550] sm:$0xff]
    %v317 = vld [vmem:[#allocation4 + $0x558] sm:$0xff]
    %v318 = vld [vmem:[#allocation4 + $0x560] sm:$0xff]
    %v319 = vld [vmem:[#allocation4 + $0x568] sm:$0xff]
    %v320 = vld [vmem:[#allocation4 + $0x570] sm:$0xff]
    %v321 = vld [vmem:[#allocation4 + $0x578] sm:$0xff]
    %v322 = vld [vmem:[#allocation4 + $0x580] sm:$0xff]
    %v323 = vld [vmem:[#allocation4 + $0x588] sm:$0xff]
    %v324 = vld [vmem:[#allocation4 + $0x590] sm:$0xff]
    %v325 = vld [vmem:[#allocation4 + $0x598] sm:$0xff]
    %v326 = vld [vmem:[#allocation4 + $0x5a0] sm:$0xff]
    %v327 = vld [vmem:[#allocation4 + $0x5a8] sm:$0xff]
    %v328 = vld [vmem:[#allocation4 + $0x5b0] sm:$0xff]
    %v329 = vld [vmem:[#allocation4 + $0x5b8] sm:$0xff]
    %v330 = vld [vmem:[#allocation4 + $0x5c0] sm:$0xff]
    %v331 = vld [vmem:[#allocation4 + $0x5c8] sm:$0xff]
    %v332 = vld [vmem:[#allocation4 + $0x5d0] sm:$0xff]
    %v333 = vld [vmem:[#allocation4 + $0x5d8] sm:$0xff]
    %v334 = vld [vmem:[#allocation4 + $0x5e0] sm:$0xff]
    %v335 = vld [vmem:[#allocation4 + $0x5e8] sm:$0xff]
    %v336 = vld [vmem:[#allocation4 + $0x5f0] sm:$0xff]
    %v337 = vld [vmem:[#allocation4 + $0x5f8] sm:$0xff]
    %v338 = vld [vmem:[#allocation4 + $0x600] sm:$0xff]
    %v339 = vld [vmem:[#allocation4 + $0x608] sm:$0xff]
    %v340 = vld [vmem:[#allocation4 + $0x610] sm:$0xff]
    %v341 = vld [vmem:[#allocation4 + $0x618] sm:$0xff]
    %v342 = vld [vmem:[#allocation4 + $0x620] sm:$0xff]
    %v343 = vld [vmem:[#allocation4 + $0x628] sm:$0xff]
    %v344 = vld [vmem:[#allocation4 + $0x630] sm:$0xff]
    %v345 = vld [vmem:[#allocation4 + $0x638] sm:$0xff]
    %v346 = vld [vmem:[#allocation4 + $0x640] sm:$0xff]
    %v347 = vld [vmem:[#allocation4 + $0x648] sm:$0xff]
    %v348 = vld [vmem:[#allocation4 + $0x650] sm:$0xff]
    %v349 = vld [vmem:[#allocation4 + $0x658] sm:$0xff]
    %v350 = vld [vmem:[#allocation4 + $0x660] sm:$0xff]
    %v351 = vld [vmem:[#allocation4 + $0x668] sm:$0xff]
    %v352 = vld [vmem:[#allocation4 + $0x670] sm:$0xff]
    %v353 = vld [vmem:[#allocation4 + $0x678] sm:$0xff]
    %v354 = vld [vmem:[#allocation4 + $0x680] sm:$0xff]
    %v355 = vld [vmem:[#allocation4 + $0x688] sm:$0xff]
    %v356 = vld [vmem:[#allocation4 + $0x690] sm:$0xff]
    %v357 = vld [vmem:[#allocation4 + $0x698] sm:$0xff]
    %v358 = vld [vmem:[#allocation4 + $0x6a0] sm:$0xff]
    %v359 = vld [vmem:[#allocation4 + $0x6a8] sm:$0xff]
    %v360 = vld [vmem:[#allocation4 + $0x6b0] sm:$0xff]
    %v361 = vld [vmem:[#allocation4 + $0x6b8] sm:$0xff]
    %v362 = vld [vmem:[#allocation4 + $0x6c0] sm:$0xff]
    %v363 = vld [vmem:[#allocation4 + $0x6c8] sm:$0xff]
    %v364 = vld [vmem:[#allocation4 + $0x6d0] sm:$0xff]
    %v365 = vld [vmem:[#allocation4 + $0x6d8] sm:$0xff]
    %v366 = vld [vmem:[#allocation4 + $0x6e0] sm:$0xff]
    %v367 = vld [vmem:[#allocation4 + $0x6e8] sm:$0xff]
    %v368 = vld [vmem:[#allocation4 + $0x6f0] sm:$0xff]
    %v369 = vld [vmem:[#allocation4 + $0x6f8] sm:$0xff]
    %v370 = vld [vmem:[#allocation4 + $0x700] sm:$0xff]
    %v371 = vld [vmem:[#allocation4 + $0x708] sm:$0xff]
    %v372 = vld [vmem:[#allocation4 + $0x710] sm:$0xff]
    %v373 = vld [vmem:[#allocation4 + $0x718] sm:$0xff]
    %v374 = vld [vmem:[#allocation4 + $0x720] sm:$0xff]
    %v375 = vld [vmem:[#allocation4 + $0x728] sm:$0xff]
    %v376 = vld [vmem:[#allocation4 + $0x730] sm:$0xff]
    %v377 = vld [vmem:[#allocation4 + $0x738] sm:$0xff]
    %v378 = vld [vmem:[#allocation4 + $0x740] sm:$0xff]
    %v379 = vld [vmem:[#allocation4 + $0x748] sm:$0xff]
    %v380 = vld [vmem:[#allocation4 + $0x750] sm:$0xff]
    %v381 = vld [vmem:[#allocation4 + $0x758] sm:$0xff]
    %v382 = vld [vmem:[#allocation4 + $0x760] sm:$0xff]
    %v383 = vld [vmem:[#allocation4 + $0x768] sm:$0xff]
    %v384 = vld [vmem:[#allocation4 + $0x770] sm:$0xff]
    %v385 = vld [vmem:[#allocation4 + $0x778] sm:$0xff]
    %v386 = vld [vmem:[#allocation4 + $0x780] sm:$0xff]
    %v387 = vld [vmem:[#allocation4 + $0x788] sm:$0xff]
    %v388 = vld [vmem:[#allocation4 + $0x790] sm:$0xff]
    %v389 = vld [vmem:[#allocation4 + $0x798] sm:$0xff]
    %v390 = vld [vmem:[#allocation4 + $0x7a0] sm:$0xff]
    %v391 = vld [vmem:[#allocation4 + $0x7a8] sm:$0xff]
    %v392 = vld [vmem:[#allocation4 + $0x7b0] sm:$0xff]
    %v393 = vld [vmem:[#allocation4 + $0x7b8] sm:$0xff]
    %v394 = vld [vmem:[#allocation4 + $0x7c0] sm:$0xff]
    %v395 = vld [vmem:[#allocation4 + $0x7c8] sm:$0xff]
    %v396 = vld [vmem:[#allocation4 + $0x7d0] sm:$0xff]
    %v397 = vld [vmem:[#allocation4 + $0x7d8] sm:$0xff]
    %v398 = vld [vmem:[#allocation4 + $0x7e0] sm:$0xff]
    %v399 = vld [vmem:[#allocation4 + $0x7e8] sm:$0xff]
    %v400 = vld [vmem:[#allocation4 + $0x7f0] sm:$0xff]
    %v401 = vld [vmem:[#allocation4 + $0x7f8] sm:$0xff]
    %v402 = vld [vmem:[#allocation4 + $0x800] sm:$0xff]
    %v403 = vld [vmem:[#allocation4 + $0x808] sm:$0xff]
    %v404 = vld [vmem:[#allocation4 + $0x810] sm:$0xff]
    %v405 = vld [vmem:[#allocation4 + $0x818] sm:$0xff]
    %v406 = vld [vmem:[#allocation4 + $0x820] sm:$0xff]
    %v407 = vld [vmem:[#allocation4 + $0x828] sm:$0xff]
    %v408 = vld [vmem:[#allocation4 + $0x830] sm:$0xff]
    %v409 = vld [vmem:[#allocation4 + $0x838] sm:$0xff]
    %v410 = vld [vmem:[#allocation4 + $0x840] sm:$0xff]
    %v411 = vld [vmem:[#allocation4 + $0x848] sm:$0xff]
    %v412 = vld [vmem:[#allocation4 + $0x850] sm:$0xff]
    %v413 = vld [vmem:[#allocation4 + $0x858] sm:$0xff]
    %v414 = vld [vmem:[#allocation4 + $0x860] sm:$0xff]
    %v415 = vld [vmem:[#allocation4 + $0x868] sm:$0xff]
    %v416 = vld [vmem:[#allocation4 + $0x870] sm:$0xff]
    %v417 = vld [vmem:[#allocation4 + $0x878] sm:$0xff]
    %v418 = vld [vmem:[#allocation4 + $0x880] sm:$0xff]
    %v419 = vld [vmem:[#allocation4 + $0x888] sm:$0xff]
    %v420 = vld [vmem:[#allocation4 + $0x890] sm:$0xff]
    %v421 = vld [vmem:[#allocation4 + $0x898] sm:$0xff]
    %v422 = vld [vmem:[#allocation4 + $0x8a0] sm:$0xff]
    %v423 = vld [vmem:[#allocation4 + $0x8a8] sm:$0xff]
    %v424 = vld [vmem:[#allocation4 + $0x8b0] sm:$0xff]
    %v425 = vld [vmem:[#allocation4 + $0x8b8] sm:$0xff]
    %v426 = vld [vmem:[#allocation4 + $0x8c0] sm:$0xff]
    %v427 = vld [vmem:[#allocation4 + $0x8c8] sm:$0xff]
    %v428 = vld [vmem:[#allocation4 + $0x8d0] sm:$0xff]
    %v429 = vld [vmem:[#allocation4 + $0x8d8] sm:$0xff]
    %v430 = vld [vmem:[#allocation4 + $0x8e0] sm:$0xff]
    %v431 = vld [vmem:[#allocation4 + $0x8e8] sm:$0xff]
    %v432 = vld [vmem:[#allocation4 + $0x8f0] sm:$0xff]
    %v433 = vld [vmem:[#allocation4 + $0x8f8] sm:$0xff]
    %v434 = vld [vmem:[%s1] sm:$0xff]
    %v435 = vpack.c.bf16 %v434, %v434
    %v436 = vld [vmem:[#allocation6] sm:$0xff]
    %v437 = vld [vmem:[#allocation6 + $0x8] sm:$0xf]
    %v440 = vcombine.high %v436, %v436
    %v442 = vunpack.c.l.s4 1983009808
    %v443 = vunpack.c.0.s8 %v442
    %v444 = vlaneseq
    %v445 = vshrl.u32 %v444, 7
    %v446 = vsub.s32 %v443, %v445
    %v447 = vrot.slane %v436, %v446
    %v449 = vunpack.c.l.s4 1983009808
    %v450 = vunpack.c.0.s8 %v449
    %v451 = vlaneseq
    %v452 = vshrl.u32 %v451, 7
    %v453 = vsub.s32 %v450, %v452
    %v454 = vrot.slane %v440, %v453
    %v455 = vcombine.high %v447, %v447
    %v456 = vcombine.high %v454, %v454
    %v458 = vunpack.c.l.s4 1983009808
    %v459 = vunpack.c.0.s8 %v458
    %v460 = vlaneseq
    %v461 = vshrl.u32 %v460, 7
    %v462 = vsub.s32 %v459, %v461
    %v463 = vrot.slane %v437, %v462
    %v464 = vcombine.high %v463, %v463
    %vm465 = vcmask 31744
    %v467 = vsel %vm465, %v435, 0
    %vm469 = vcmask 1041408
    %v471 = vsel %vm469, %v447, 0
    %v474 = vsel %vm469, %v455, 0
    %v477 = vsel %vm469, %v454, 0
    %v480 = vsel %vm469, %v456, 0
    %v483 = vsel %vm469, %v463, 0
    %v486 = vsel %vm469, %v464, 0
    %488 = vmatprep.subr.bf16.mxu0 %v474
    %489 = vmatpush1.bf16.msra.mxu0 %v471
    %490 = vmatprep.subr.bf16.mxu0 0
    %491 = vmatpush1.bf16.msra.mxu0 0
    %492 = vmatprep.subr.bf16.mxu0 0
    %493 = vmatpush1.bf16.msra.mxu0 0
    %494 = vmatprep.subr.bf16.mxu0 0
    %495 = vmatpush1.bf16.msra.mxu0 0
    %496 = vmatprep.subr.bf16.mxu0 0
    %497 = vmatpush1.bf16.msra.mxu0 0
    %498 = vmatprep.subr.bf16.mxu0 0
    %499 = vmatpush1.bf16.msra.mxu0 0
    %500 = vmatprep.subr.bf16.mxu0 0
    %501 = vmatpush1.bf16.msra.mxu0 0
    %502 = vmatprep.subr.bf16.mxu0 0
    %503 = vmatpush1.bf16.msra.mxu0 0
    %504 = vmatprep.subr.bf16.mxu0 0
    %505 = vmatpush1.bf16.msra.mxu0 0
    %506 = vmatprep.subr.bf16.mxu0 0
    %507 = vmatpush1.bf16.msra.mxu0 0
    %508 = vmatprep.subr.bf16.mxu0 0
    %509 = vmatpush1.bf16.msra.mxu0 0
    %510 = vmatprep.subr.bf16.mxu0 0
    %511 = vmatpush1.bf16.msra.mxu0 0
    %512 = vmatprep.subr.bf16.mxu0 0
    %513 = vmatpush1.bf16.msra.mxu0 0
    %514 = vmatprep.subr.bf16.mxu0 0
    %515 = vmatpush1.bf16.msra.mxu0 0
    %516 = vmatprep.subr.bf16.mxu0 0
    %517 = vmatpush1.bf16.msra.mxu0 0
    %518 = vmatprep.subr.bf16.mxu0 0
    %519 = vmatpush1.bf16.msra.mxu0 0
    %520 = vmatprep.mubr.bf16.mxu0 0
    %521 = vmatmul.mubr.bf16.gmra.mrb[0].mxu0 %v467
    %v522 = vpop.f32.mrb[0].mxu0
    %v523 = vadd.f32 0.0, %v522
    %v524 = vpop.f32.mrb[0].mxu0
    %v525 = vadd.f32 0.0, %v524
    %v526 = vpop.f32.mrb[0].mxu0
    %v527 = vpop.f32.mrb[0].mxu0
    %528 = vdwg.mxu0
    %529 = vmatprep.subr.bf16.mxu0 %v480
    %530 = vmatpush1.bf16.msra.mxu0 %v477
    %531 = vmatprep.subr.bf16.mxu0 0
    %532 = vmatpush1.bf16.msra.mxu0 0
    %533 = vmatprep.subr.bf16.mxu0 0
    %534 = vmatpush1.bf16.msra.mxu0 0
    %535 = vmatprep.subr.bf16.mxu0 0
    %536 = vmatpush1.bf16.msra.mxu0 0
    %537 = vmatprep.subr.bf16.mxu0 0
    %538 = vmatpush1.bf16.msra.mxu0 0
    %539 = vmatprep.subr.bf16.mxu0 0
    %540 = vmatpush1.bf16.msra.mxu0 0
    %541 = vmatprep.subr.bf16.mxu0 0
    %542 = vmatpush1.bf16.msra.mxu0 0
    %543 = vmatprep.subr.bf16.mxu0 0
    %544 = vmatpush1.bf16.msra.mxu0 0
    %545 = vmatprep.subr.bf16.mxu0 0
    %546 = vmatpush1.bf16.msra.mxu0 0
    %547 = vmatprep.subr.bf16.mxu0 0
    %548 = vmatpush1.bf16.msra.mxu0 0
    %549 = vmatprep.subr.bf16.mxu0 0
    %550 = vmatpush1.bf16.msra.mxu0 0
    %551 = vmatprep.subr.bf16.mxu0 0
    %552 = vmatpush1.bf16.msra.mxu0 0
    %553 = vmatprep.subr.bf16.mxu0 0
    %554 = vmatpush1.bf16.msra.mxu0 0
    %555 = vmatprep.subr.bf16.mxu0 0
    %556 = vmatpush1.bf16.msra.mxu0 0
    %557 = vmatprep.subr.bf16.mxu0 0
    %558 = vmatpush1.bf16.msra.mxu0 0
    %559 = vmatprep.subr.bf16.mxu0 0
    %560 = vmatpush1.bf16.msra.mxu0 0
    %561 = vmatprep.mubr.bf16.mxu0 0
    %562 = vmatmul.mubr.bf16.gmra.mrb[0].mxu0 %v467
    %v563 = vpop.f32.mrb[0].mxu0
    %v564 = vadd.f32 0.0, %v563
    %v565 = vpop.f32.mrb[0].mxu0
    %v566 = vadd.f32 0.0, %v565
    %v567 = vpop.f32.mrb[0].mxu0
    %v568 = vpop.f32.mrb[0].mxu0
    %569 = vdwg.mxu0
    %570 = vmatprep.subr.bf16.mxu0 %v486
    %571 = vmatpush1.bf16.msra.mxu0 %v483
    %572 = vmatprep.subr.bf16.mxu0 0
    %573 = vmatpush1.bf16.msra.mxu0 0
    %574 = vmatprep.subr.bf16.mxu0 0
    %575 = vmatpush1.bf16.msra.mxu0 0
    %576 = vmatprep.subr.bf16.mxu0 0
    %577 = vmatpush1.bf16.msra.mxu0 0
    %578 = vmatprep.subr.bf16.mxu0 0
    %579 = vmatpush1.bf16.msra.mxu0 0
    %580 = vmatprep.subr.bf16.mxu0 0
    %581 = vmatpush1.bf16.msra.mxu0 0
    %582 = vmatprep.subr.bf16.mxu0 0
    %583 = vmatpush1.bf16.msra.mxu0 0
    %584 = vmatprep.subr.bf16.mxu0 0
    %585 = vmatpush1.bf16.msra.mxu0 0
    %586 = vmatprep.subr.bf16.mxu0 0
    %587 = vmatpush1.bf16.msra.mxu0 0
    %588 = vmatprep.subr.bf16.mxu0 0
    %589 = vmatpush1.bf16.msra.mxu0 0
    %590 = vmatprep.subr.bf16.mxu0 0
    %591 = vmatpush1.bf16.msra.mxu0 0
    %592 = vmatprep.subr.bf16.mxu0 0
    %593 = vmatpush1.bf16.msra.mxu0 0
    %594 = vmatprep.subr.bf16.mxu0 0
    %595 = vmatpush1.bf16.msra.mxu0 0
    %596 = vmatprep.subr.bf16.mxu0 0
    %597 = vmatpush1.bf16.msra.mxu0 0
    %598 = vmatprep.subr.bf16.mxu0 0
    %599 = vmatpush1.bf16.msra.mxu0 0
    %600 = vmatprep.subr.bf16.mxu0 0
    %601 = vmatpush1.bf16.msra.mxu0 0
    %602 = vmatprep.mubr.bf16.mxu0 0
    %603 = vmatmul.mubr.bf16.gmra.mrb[0].mxu0 %v467
    %v604 = vpop.f32.mrb[0].mxu0
    %v605 = vadd.f32 0.0, %v604
    %v606 = vpop.f32.mrb[0].mxu0
    %v607 = vadd.f32 0.0, %v606
    %v608 = vpop.f32.mrb[0].mxu0
    %v609 = vpop.f32.mrb[0].mxu0
    %610 = vdwg.mxu0
    %v899 = vunpack.c.l.b16 %v146
    %v900 = vunpack.c.h.b16 %v146
    %v901 = vunpack.c.l.b16 %v147
    %v902 = vunpack.c.h.b16 %v147
    %v903 = vunpack.c.l.b16 %v148
    %v904 = vunpack.c.h.b16 %v148
    %v905 = vunpack.c.l.b16 %v149
    %v906 = vunpack.c.h.b16 %v149
    %v907 = vunpack.c.l.b16 %v150
    %v908 = vunpack.c.h.b16 %v150
    %v909 = vunpack.c.l.b16 %v151
    %v910 = vunpack.c.h.b16 %v151
    %v911 = vunpack.c.l.b16 %v152
    %v912 = vunpack.c.h.b16 %v152
    %v913 = vunpack.c.l.b16 %v153
    %v914 = vunpack.c.h.b16 %v153
    %v915 = vunpack.c.l.b16 %v154
    %v916 = vunpack.c.h.b16 %v154
    %v917 = vunpack.c.l.b16 %v155
    %v918 = vunpack.c.h.b16 %v155
    %v919 = vunpack.c.l.b16 %v156
    %v920 = vunpack.c.h.b16 %v156
    %v921 = vunpack.c.l.b16 %v157
    %v922 = vunpack.c.h.b16 %v157
    %v923 = vunpack.c.l.b16 %v158
    %v924 = vunpack.c.h.b16 %v158
    %v925 = vunpack.c.l.b16 %v159
    %v926 = vunpack.c.h.b16 %v159
    %v927 = vunpack.c.l.b16 %v160
    %v928 = vunpack.c.h.b16 %v160
    %v929 = vunpack.c.l.b16 %v161
    %v930 = vunpack.c.h.b16 %v161
    %v931 = vunpack.c.l.b16 %v162
    %v932 = vunpack.c.h.b16 %v162
    %v933 = vunpack.c.l.b16 %v163
    %v934 = vunpack.c.h.b16 %v163
    %v935 = vunpack.c.l.b16 %v164
    %v936 = vunpack.c.h.b16 %v164
    %v937 = vunpack.c.l.b16 %v165
    %v938 = vunpack.c.h.b16 %v165
    %v939 = vunpack.c.l.b16 %v166
    %v940 = vunpack.c.h.b16 %v166
    %v941 = vunpack.c.l.b16 %v167
    %v942 = vunpack.c.h.b16 %v167
    %v943 = vunpack.c.l.b16 %v168
    %v944 = vunpack.c.h.b16 %v168
    %v945 = vunpack.c.l.b16 %v169
    %v946 = vunpack.c.h.b16 %v169
    %v947 = vunpack.c.l.b16 %v170
    %v948 = vunpack.c.h.b16 %v170
    %v949 = vunpack.c.l.b16 %v171
    %v950 = vunpack.c.h.b16 %v171
    %v951 = vunpack.c.l.b16 %v172
    %v952 = vunpack.c.h.b16 %v172
    %v953 = vunpack.c.l.b16 %v173
    %v954 = vunpack.c.h.b16 %v173
    %v955 = vunpack.c.l.b16 %v174
    %v956 = vunpack.c.h.b16 %v174
    %v957 = vunpack.c.l.b16 %v175
    %v958 = vunpack.c.h.b16 %v175
    %v959 = vunpack.c.l.b16 %v176
    %v960 = vunpack.c.h.b16 %v176
    %v961 = vunpack.c.l.b16 %v177
    %v962 = vunpack.c.h.b16 %v177
    %v963 = vunpack.c.l.b16 %v178
    %v964 = vunpack.c.h.b16 %v178
    %v965 = vunpack.c.l.b16 %v179
    %v966 = vunpack.c.h.b16 %v179
    %v967 = vunpack.c.l.b16 %v180
    %v968 = vunpack.c.h.b16 %v180
    %v969 = vunpack.c.l.b16 %v181
    %v970 = vunpack.c.h.b16 %v181
    %v971 = vunpack.c.l.b16 %v182
    %v972 = vunpack.c.h.b16 %v182
    %v973 = vunpack.c.l.b16 %v183
    %v974 = vunpack.c.h.b16 %v183
    %v975 = vunpack.c.l.b16 %v184
    %v976 = vunpack.c.h.b16 %v184
    %v977 = vunpack.c.l.b16 %v185
    %v978 = vunpack.c.h.b16 %v185
    %v979 = vunpack.c.l.b16 %v186
    %v980 = vunpack.c.h.b16 %v186
    %v981 = vunpack.c.l.b16 %v187
    %v982 = vunpack.c.h.b16 %v187
    %v983 = vunpack.c.l.b16 %v188
    %v984 = vunpack.c.h.b16 %v188
    %v985 = vunpack.c.l.b16 %v189
    %v986 = vunpack.c.h.b16 %v189
    %v987 = vunpack.c.l.b16 %v190
    %v988 = vunpack.c.h.b16 %v190
    %v989 = vunpack.c.l.b16 %v191
    %v990 = vunpack.c.h.b16 %v191
    %v991 = vunpack.c.l.b16 %v192
    %v992 = vunpack.c.h.b16 %v192
    %v993 = vunpack.c.l.b16 %v193
    %v994 = vunpack.c.h.b16 %v193
    %v995 = vunpack.c.l.b16 %v194
    %v996 = vunpack.c.h.b16 %v194
    %v997 = vunpack.c.l.b16 %v195
    %v998 = vunpack.c.h.b16 %v195
    %v999 = vunpack.c.l.b16 %v196
    %v1000 = vunpack.c.h.b16 %v196
    %v1001 = vunpack.c.l.b16 %v197
    %v1002 = vunpack.c.h.b16 %v197
    %v1003 = vunpack.c.l.b16 %v198
    %v1004 = vunpack.c.h.b16 %v198
    %v1005 = vunpack.c.l.b16 %v199
    %v1006 = vunpack.c.h.b16 %v199
    %v1007 = vunpack.c.l.b16 %v200
    %v1008 = vunpack.c.h.b16 %v200
    %v1009 = vunpack.c.l.b16 %v201
    %v1010 = vunpack.c.h.b16 %v201
    %v1011 = vunpack.c.l.b16 %v202
    %v1012 = vunpack.c.h.b16 %v202
    %v1013 = vunpack.c.l.b16 %v203
    %v1014 = vunpack.c.h.b16 %v203
    %v1015 = vunpack.c.l.b16 %v204
    %v1016 = vunpack.c.h.b16 %v204
    %v1017 = vunpack.c.l.b16 %v205
    %v1018 = vunpack.c.h.b16 %v205
    %v1019 = vunpack.c.l.b16 %v206
    %v1020 = vunpack.c.h.b16 %v206
    %v1021 = vunpack.c.l.b16 %v207
    %v1022 = vunpack.c.h.b16 %v207
    %v1023 = vunpack.c.l.b16 %v208
    %v1024 = vunpack.c.h.b16 %v208
    %v1025 = vunpack.c.l.b16 %v209
    %v1026 = vunpack.c.h.b16 %v209
    %v1027 = vunpack.c.l.b16 %v210
    %v1028 = vunpack.c.h.b16 %v210
    %v1029 = vunpack.c.l.b16 %v211
    %v1030 = vunpack.c.h.b16 %v211
    %v1031 = vunpack.c.l.b16 %v212
    %v1032 = vunpack.c.h.b16 %v212
    %v1033 = vunpack.c.l.b16 %v213
    %v1034 = vunpack.c.h.b16 %v213
    %v1035 = vunpack.c.l.b16 %v214
    %v1036 = vunpack.c.h.b16 %v214
    %v1037 = vunpack.c.l.b16 %v215
    %v1038 = vunpack.c.h.b16 %v215
    %v1039 = vunpack.c.l.b16 %v216
    %v1040 = vunpack.c.h.b16 %v216
    %v1041 = vunpack.c.l.b16 %v217
    %v1042 = vunpack.c.h.b16 %v217
    %v1043 = vunpack.c.l.b16 %v218
    %v1044 = vunpack.c.h.b16 %v218
    %v1045 = vunpack.c.l.b16 %v219
    %v1046 = vunpack.c.h.b16 %v219
    %v1047 = vunpack.c.l.b16 %v220
    %v1048 = vunpack.c.h.b16 %v220
    %v1049 = vunpack.c.l.b16 %v221
    %v1050 = vunpack.c.h.b16 %v221
    %v1051 = vunpack.c.l.b16 %v222
    %v1052 = vunpack.c.h.b16 %v222
    %v1053 = vunpack.c.l.b16 %v223
    %v1054 = vunpack.c.h.b16 %v223
    %v1055 = vunpack.c.l.b16 %v224
    %v1056 = vunpack.c.h.b16 %v224
    %v1057 = vunpack.c.l.b16 %v225
    %v1058 = vunpack.c.h.b16 %v225
    %v1059 = vunpack.c.l.b16 %v226
    %v1060 = vunpack.c.h.b16 %v226
    %v1061 = vunpack.c.l.b16 %v227
    %v1062 = vunpack.c.h.b16 %v227
    %v1063 = vunpack.c.l.b16 %v228
    %v1064 = vunpack.c.h.b16 %v228
    %v1065 = vunpack.c.l.b16 %v229
    %v1066 = vunpack.c.h.b16 %v229
    %v1067 = vunpack.c.l.b16 %v230
    %v1068 = vunpack.c.h.b16 %v230
    %v1069 = vunpack.c.l.b16 %v231
    %v1070 = vunpack.c.h.b16 %v231
    %v1071 = vunpack.c.l.b16 %v232
    %v1072 = vunpack.c.h.b16 %v232
    %v1073 = vunpack.c.l.b16 %v233
    %v1074 = vunpack.c.h.b16 %v233
    %v1075 = vunpack.c.l.b16 %v234
    %v1076 = vunpack.c.h.b16 %v234
    %v1077 = vunpack.c.l.b16 %v235
    %v1078 = vunpack.c.h.b16 %v235
    %v1079 = vunpack.c.l.b16 %v236
    %v1080 = vunpack.c.h.b16 %v236
    %v1081 = vunpack.c.l.b16 %v237
    %v1082 = vunpack.c.h.b16 %v237
    %v1083 = vunpack.c.l.b16 %v238
    %v1084 = vunpack.c.h.b16 %v238
    %v1085 = vunpack.c.l.b16 %v239
    %v1086 = vunpack.c.h.b16 %v239
    %v1087 = vunpack.c.l.b16 %v240
    %v1088 = vunpack.c.h.b16 %v240
    %v1089 = vunpack.c.l.b16 %v241
    %v1090 = vunpack.c.h.b16 %v241
    %v1091 = vunpack.c.l.b16 %v242
    %v1092 = vunpack.c.h.b16 %v242
    %v1093 = vunpack.c.l.b16 %v243
    %v1094 = vunpack.c.h.b16 %v243
    %v1095 = vunpack.c.l.b16 %v244
    %v1096 = vunpack.c.h.b16 %v244
    %v1097 = vunpack.c.l.b16 %v245
    %v1098 = vunpack.c.h.b16 %v245
    %v1099 = vunpack.c.l.b16 %v246
    %v1100 = vunpack.c.h.b16 %v246
    %v1101 = vunpack.c.l.b16 %v247
    %v1102 = vunpack.c.h.b16 %v247
    %v1103 = vunpack.c.l.b16 %v248
    %v1104 = vunpack.c.h.b16 %v248
    %v1105 = vunpack.c.l.b16 %v249
    %v1106 = vunpack.c.h.b16 %v249
    %v1107 = vunpack.c.l.b16 %v250
    %v1108 = vunpack.c.h.b16 %v250
    %v1109 = vunpack.c.l.b16 %v251
    %v1110 = vunpack.c.h.b16 %v251
    %v1111 = vunpack.c.l.b16 %v252
    %v1112 = vunpack.c.h.b16 %v252
    %v1113 = vunpack.c.l.b16 %v253
    %v1114 = vunpack.c.h.b16 %v253
    %v1115 = vunpack.c.l.b16 %v254
    %v1116 = vunpack.c.h.b16 %v254
    %v1117 = vunpack.c.l.b16 %v255
    %v1118 = vunpack.c.h.b16 %v255
    %v1119 = vunpack.c.l.b16 %v256
    %v1120 = vunpack.c.h.b16 %v256
    %v1121 = vunpack.c.l.b16 %v257
    %v1122 = vunpack.c.h.b16 %v257
    %v1123 = vunpack.c.l.b16 %v258
    %v1124 = vunpack.c.h.b16 %v258
    %v1125 = vunpack.c.l.b16 %v259
    %v1126 = vunpack.c.h.b16 %v259
    %v1127 = vunpack.c.l.b16 %v260
    %v1128 = vunpack.c.h.b16 %v260
    %v1129 = vunpack.c.l.b16 %v261
    %v1130 = vunpack.c.h.b16 %v261
    %v1131 = vunpack.c.l.b16 %v262
    %v1132 = vunpack.c.h.b16 %v262
    %v1133 = vunpack.c.l.b16 %v263
    %v1134 = vunpack.c.h.b16 %v263
    %v1135 = vunpack.c.l.b16 %v264
    %v1136 = vunpack.c.h.b16 %v264
    %v1137 = vunpack.c.l.b16 %v265
    %v1138 = vunpack.c.h.b16 %v265
    %v1139 = vunpack.c.l.b16 %v266
    %v1140 = vunpack.c.h.b16 %v266
    %v1141 = vunpack.c.l.b16 %v267
    %v1142 = vunpack.c.h.b16 %v267
    %v1143 = vunpack.c.l.b16 %v268
    %v1144 = vunpack.c.h.b16 %v268
    %v1145 = vunpack.c.l.b16 %v269
    %v1146 = vunpack.c.h.b16 %v269
    %v1147 = vunpack.c.l.b16 %v270
    %v1148 = vunpack.c.h.b16 %v270
    %v1149 = vunpack.c.l.b16 %v271
    %v1150 = vunpack.c.h.b16 %v271
    %v1151 = vunpack.c.l.b16 %v272
    %v1152 = vunpack.c.h.b16 %v272
    %v1153 = vunpack.c.l.b16 %v273
    %v1154 = vunpack.c.h.b16 %v273
    %v1155 = vunpack.c.l.b16 %v274
    %v1156 = vunpack.c.h.b16 %v274
    %v1157 = vunpack.c.l.b16 %v275
    %v1158 = vunpack.c.h.b16 %v275
    %v1159 = vunpack.c.l.b16 %v276
    %v1160 = vunpack.c.h.b16 %v276
    %v1161 = vunpack.c.l.b16 %v277
    %v1162 = vunpack.c.h.b16 %v277
    %v1163 = vunpack.c.l.b16 %v278
    %v1164 = vunpack.c.h.b16 %v278
    %v1165 = vunpack.c.l.b16 %v279
    %v1166 = vunpack.c.h.b16 %v279
    %v1167 = vunpack.c.l.b16 %v280
    %v1168 = vunpack.c.h.b16 %v280
    %v1169 = vunpack.c.l.b16 %v281
    %v1170 = vunpack.c.h.b16 %v281
    %v1171 = vunpack.c.l.b16 %v282
    %v1172 = vunpack.c.h.b16 %v282
    %v1173 = vunpack.c.l.b16 %v283
    %v1174 = vunpack.c.h.b16 %v283
    %v1175 = vunpack.c.l.b16 %v284
    %v1176 = vunpack.c.h.b16 %v284
    %v1177 = vunpack.c.l.b16 %v285
    %v1178 = vunpack.c.h.b16 %v285
    %v1179 = vunpack.c.l.b16 %v286
    %v1180 = vunpack.c.h.b16 %v286
    %v1181 = vunpack.c.l.b16 %v287
    %v1182 = vunpack.c.h.b16 %v287
    %v1183 = vunpack.c.l.b16 %v288
    %v1184 = vunpack.c.h.b16 %v288
    %v1185 = vunpack.c.l.b16 %v289
    %v1186 = vunpack.c.h.b16 %v289
    %v1187 = vunpack.c.l.b16 %v290
    %v1188 = vunpack.c.h.b16 %v290
    %v1189 = vunpack.c.l.b16 %v291
    %v1190 = vunpack.c.h.b16 %v291
    %v1191 = vunpack.c.l.b16 %v292
    %v1192 = vunpack.c.h.b16 %v292
    %v1193 = vunpack.c.l.b16 %v293
    %v1194 = vunpack.c.h.b16 %v293
    %v1195 = vunpack.c.l.b16 %v294
    %v1196 = vunpack.c.h.b16 %v294
    %v1197 = vunpack.c.l.b16 %v295
    %v1198 = vunpack.c.h.b16 %v295
    %v1199 = vunpack.c.l.b16 %v296
    %v1200 = vunpack.c.h.b16 %v296
    %v1201 = vunpack.c.l.b16 %v297
    %v1202 = vunpack.c.h.b16 %v297
    %v1203 = vunpack.c.l.b16 %v298
    %v1204 = vunpack.c.h.b16 %v298
    %v1205 = vunpack.c.l.b16 %v299
    %v1206 = vunpack.c.h.b16 %v299
    %v1207 = vunpack.c.l.b16 %v300
    %v1208 = vunpack.c.h.b16 %v300
    %v1209 = vunpack.c.l.b16 %v301
    %v1210 = vunpack.c.h.b16 %v301
    %v1211 = vunpack.c.l.b16 %v302
    %v1212 = vunpack.c.h.b16 %v302
    %v1213 = vunpack.c.l.b16 %v303
    %v1214 = vunpack.c.h.b16 %v303
    %v1215 = vunpack.c.l.b16 %v304
    %v1216 = vunpack.c.h.b16 %v304
    %v1217 = vunpack.c.l.b16 %v305
    %v1218 = vunpack.c.h.b16 %v305
    %v1219 = vunpack.c.l.b16 %v306
    %v1220 = vunpack.c.h.b16 %v306
    %v1221 = vunpack.c.l.b16 %v307
    %v1222 = vunpack.c.h.b16 %v307
    %v1223 = vunpack.c.l.b16 %v308
    %v1224 = vunpack.c.h.b16 %v308
    %v1225 = vunpack.c.l.b16 %v309
    %v1226 = vunpack.c.h.b16 %v309
    %v1227 = vunpack.c.l.b16 %v310
    %v1228 = vunpack.c.h.b16 %v310
    %v1229 = vunpack.c.l.b16 %v311
    %v1230 = vunpack.c.h.b16 %v311
    %v1231 = vunpack.c.l.b16 %v312
    %v1232 = vunpack.c.h.b16 %v312
    %v1233 = vunpack.c.l.b16 %v313
    %v1234 = vunpack.c.h.b16 %v313
    %v1235 = vunpack.c.l.b16 %v314
    %v1236 = vunpack.c.h.b16 %v314
    %v1237 = vunpack.c.l.b16 %v315
    %v1238 = vunpack.c.h.b16 %v315
    %v1239 = vunpack.c.l.b16 %v316
    %v1240 = vunpack.c.h.b16 %v316
    %v1241 = vunpack.c.l.b16 %v317
    %v1242 = vunpack.c.h.b16 %v317
    %v1243 = vunpack.c.l.b16 %v318
    %v1244 = vunpack.c.h.b16 %v318
    %v1245 = vunpack.c.l.b16 %v319
    %v1246 = vunpack.c.h.b16 %v319
    %v1247 = vunpack.c.l.b16 %v320
    %v1248 = vunpack.c.h.b16 %v320
    %v1249 = vunpack.c.l.b16 %v321
    %v1250 = vunpack.c.h.b16 %v321
    %v1251 = vunpack.c.l.b16 %v322
    %v1252 = vunpack.c.h.b16 %v322
    %v1253 = vunpack.c.l.b16 %v323
    %v1254 = vunpack.c.h.b16 %v323
    %v1255 = vunpack.c.l.b16 %v324
    %v1256 = vunpack.c.h.b16 %v324
    %v1257 = vunpack.c.l.b16 %v325
    %v1258 = vunpack.c.h.b16 %v325
    %v1259 = vunpack.c.l.b16 %v326
    %v1260 = vunpack.c.h.b16 %v326
    %v1261 = vunpack.c.l.b16 %v327
    %v1262 = vunpack.c.h.b16 %v327
    %v1263 = vunpack.c.l.b16 %v328
    %v1264 = vunpack.c.h.b16 %v328
    %v1265 = vunpack.c.l.b16 %v329
    %v1266 = vunpack.c.h.b16 %v329
    %v1267 = vunpack.c.l.b16 %v330
    %v1268 = vunpack.c.h.b16 %v330
    %v1269 = vunpack.c.l.b16 %v331
    %v1270 = vunpack.c.h.b16 %v331
    %v1271 = vunpack.c.l.b16 %v332
    %v1272 = vunpack.c.h.b16 %v332
    %v1273 = vunpack.c.l.b16 %v333
    %v1274 = vunpack.c.h.b16 %v333
    %v1275 = vunpack.c.l.b16 %v334
    %v1276 = vunpack.c.h.b16 %v334
    %v1277 = vunpack.c.l.b16 %v335
    %v1278 = vunpack.c.h.b16 %v335
    %v1279 = vunpack.c.l.b16 %v336
    %v1280 = vunpack.c.h.b16 %v336
    %v1281 = vunpack.c.l.b16 %v337
    %v1282 = vunpack.c.h.b16 %v337
    %v1283 = vunpack.c.l.b16 %v338
    %v1284 = vunpack.c.h.b16 %v338
    %v1285 = vunpack.c.l.b16 %v339
    %v1286 = vunpack.c.h.b16 %v339
    %v1287 = vunpack.c.l.b16 %v340
    %v1288 = vunpack.c.h.b16 %v340
    %v1289 = vunpack.c.l.b16 %v341
    %v1290 = vunpack.c.h.b16 %v341
    %v1291 = vunpack.c.l.b16 %v342
    %v1292 = vunpack.c.h.b16 %v342
    %v1293 = vunpack.c.l.b16 %v343
    %v1294 = vunpack.c.h.b16 %v343
    %v1295 = vunpack.c.l.b16 %v344
    %v1296 = vunpack.c.h.b16 %v344
    %v1297 = vunpack.c.l.b16 %v345
    %v1298 = vunpack.c.h.b16 %v345
    %v1299 = vunpack.c.l.b16 %v346
    %v1300 = vunpack.c.h.b16 %v346
    %v1301 = vunpack.c.l.b16 %v347
    %v1302 = vunpack.c.h.b16 %v347
    %v1303 = vunpack.c.l.b16 %v348
    %v1304 = vunpack.c.h.b16 %v348
    %v1305 = vunpack.c.l.b16 %v349
    %v1306 = vunpack.c.h.b16 %v349
    %v1307 = vunpack.c.l.b16 %v350
    %v1308 = vunpack.c.h.b16 %v350
    %v1309 = vunpack.c.l.b16 %v351
    %v1310 = vunpack.c.h.b16 %v351
    %v1311 = vunpack.c.l.b16 %v352
    %v1312 = vunpack.c.h.b16 %v352
    %v1313 = vunpack.c.l.b16 %v353
    %v1314 = vunpack.c.h.b16 %v353
    %v1315 = vunpack.c.l.b16 %v354
    %v1316 = vunpack.c.h.b16 %v354
    %v1317 = vunpack.c.l.b16 %v355
    %v1318 = vunpack.c.h.b16 %v355
    %v1319 = vunpack.c.l.b16 %v356
    %v1320 = vunpack.c.h.b16 %v356
    %v1321 = vunpack.c.l.b16 %v357
    %v1322 = vunpack.c.h.b16 %v357
    %v1323 = vunpack.c.l.b16 %v358
    %v1324 = vunpack.c.h.b16 %v358
    %v1325 = vunpack.c.l.b16 %v359
    %v1326 = vunpack.c.h.b16 %v359
    %v1327 = vunpack.c.l.b16 %v360
    %v1328 = vunpack.c.h.b16 %v360
    %v1329 = vunpack.c.l.b16 %v361
    %v1330 = vunpack.c.h.b16 %v361
    %v1331 = vunpack.c.l.b16 %v362
    %v1332 = vunpack.c.h.b16 %v362
    %v1333 = vunpack.c.l.b16 %v363
    %v1334 = vunpack.c.h.b16 %v363
    %v1335 = vunpack.c.l.b16 %v364
    %v1336 = vunpack.c.h.b16 %v364
    %v1337 = vunpack.c.l.b16 %v365
    %v1338 = vunpack.c.h.b16 %v365
    %v1339 = vunpack.c.l.b16 %v366
    %v1340 = vunpack.c.h.b16 %v366
    %v1341 = vunpack.c.l.b16 %v367
    %v1342 = vunpack.c.h.b16 %v367
    %v1343 = vunpack.c.l.b16 %v368
    %v1344 = vunpack.c.h.b16 %v368
    %v1345 = vunpack.c.l.b16 %v369
    %v1346 = vunpack.c.h.b16 %v369
    %v1347 = vunpack.c.l.b16 %v370
    %v1348 = vunpack.c.h.b16 %v370
    %v1349 = vunpack.c.l.b16 %v371
    %v1350 = vunpack.c.h.b16 %v371
    %v1351 = vunpack.c.l.b16 %v372
    %v1352 = vunpack.c.h.b16 %v372
    %v1353 = vunpack.c.l.b16 %v373
    %v1354 = vunpack.c.h.b16 %v373
    %v1355 = vunpack.c.l.b16 %v374
    %v1356 = vunpack.c.h.b16 %v374
    %v1357 = vunpack.c.l.b16 %v375
    %v1358 = vunpack.c.h.b16 %v375
    %v1359 = vunpack.c.l.b16 %v376
    %v1360 = vunpack.c.h.b16 %v376
    %v1361 = vunpack.c.l.b16 %v377
    %v1362 = vunpack.c.h.b16 %v377
    %v1363 = vunpack.c.l.b16 %v378
    %v1364 = vunpack.c.h.b16 %v378
    %v1365 = vunpack.c.l.b16 %v379
    %v1366 = vunpack.c.h.b16 %v379
    %v1367 = vunpack.c.l.b16 %v380
    %v1368 = vunpack.c.h.b16 %v380
    %v1369 = vunpack.c.l.b16 %v381
    %v1370 = vunpack.c.h.b16 %v381
    %v1371 = vunpack.c.l.b16 %v382
    %v1372 = vunpack.c.h.b16 %v382
    %v1373 = vunpack.c.l.b16 %v383
    %v1374 = vunpack.c.h.b16 %v383
    %v1375 = vunpack.c.l.b16 %v384
    %v1376 = vunpack.c.h.b16 %v384
    %v1377 = vunpack.c.l.b16 %v385
    %v1378 = vunpack.c.h.b16 %v385
    %v1379 = vunpack.c.l.b16 %v386
    %v1380 = vunpack.c.h.b16 %v386
    %v1381 = vunpack.c.l.b16 %v387
    %v1382 = vunpack.c.h.b16 %v387
    %v1383 = vunpack.c.l.b16 %v388
    %v1384 = vunpack.c.h.b16 %v388
    %v1385 = vunpack.c.l.b16 %v389
    %v1386 = vunpack.c.h.b16 %v389
    %v1387 = vunpack.c.l.b16 %v390
    %v1388 = vunpack.c.h.b16 %v390
    %v1389 = vunpack.c.l.b16 %v391
    %v1390 = vunpack.c.h.b16 %v391
    %v1391 = vunpack.c.l.b16 %v392
    %v1392 = vunpack.c.h.b16 %v392
    %v1393 = vunpack.c.l.b16 %v393
    %v1394 = vunpack.c.h.b16 %v393
    %v1395 = vunpack.c.l.b16 %v394
    %v1396 = vunpack.c.h.b16 %v394
    %v1397 = vunpack.c.l.b16 %v395
    %v1398 = vunpack.c.h.b16 %v395
    %v1399 = vunpack.c.l.b16 %v396
    %v1400 = vunpack.c.h.b16 %v396
    %v1401 = vunpack.c.l.b16 %v397
    %v1402 = vunpack.c.h.b16 %v397
    %v1403 = vunpack.c.l.b16 %v398
    %v1404 = vunpack.c.h.b16 %v398
    %v1405 = vunpack.c.l.b16 %v399
    %v1406 = vunpack.c.h.b16 %v399
    %v1407 = vunpack.c.l.b16 %v400
    %v1408 = vunpack.c.h.b16 %v400
    %v1409 = vunpack.c.l.b16 %v401
    %v1410 = vunpack.c.h.b16 %v401
    %v1411 = vunpack.c.l.b16 %v402
    %v1412 = vunpack.c.h.b16 %v402
    %v1413 = vunpack.c.l.b16 %v403
    %v1414 = vunpack.c.h.b16 %v403
    %v1415 = vunpack.c.l.b16 %v404
    %v1416 = vunpack.c.h.b16 %v404
    %v1417 = vunpack.c.l.b16 %v405
    %v1418 = vunpack.c.h.b16 %v405
    %v1419 = vunpack.c.l.b16 %v406
    %v1420 = vunpack.c.h.b16 %v406
    %v1421 = vunpack.c.l.b16 %v407
    %v1422 = vunpack.c.h.b16 %v407
    %v1423 = vunpack.c.l.b16 %v408
    %v1424 = vunpack.c.h.b16 %v408
    %v1425 = vunpack.c.l.b16 %v409
    %v1426 = vunpack.c.h.b16 %v409
    %v1427 = vunpack.c.l.b16 %v410
    %v1428 = vunpack.c.h.b16 %v410
    %v1429 = vunpack.c.l.b16 %v411
    %v1430 = vunpack.c.h.b16 %v411
    %v1431 = vunpack.c.l.b16 %v412
    %v1432 = vunpack.c.h.b16 %v412
    %v1433 = vunpack.c.l.b16 %v413
    %v1434 = vunpack.c.h.b16 %v413
    %v1435 = vunpack.c.l.b16 %v414
    %v1436 = vunpack.c.h.b16 %v414
    %v1437 = vunpack.c.l.b16 %v415
    %v1438 = vunpack.c.h.b16 %v415
    %v1439 = vunpack.c.l.b16 %v416
    %v1440 = vunpack.c.h.b16 %v416
    %v1441 = vunpack.c.l.b16 %v417
    %v1442 = vunpack.c.h.b16 %v417
    %v1443 = vunpack.c.l.b16 %v418
    %v1444 = vunpack.c.h.b16 %v418
    %v1445 = vunpack.c.l.b16 %v419
    %v1446 = vunpack.c.h.b16 %v419
    %v1447 = vunpack.c.l.b16 %v420
    %v1448 = vunpack.c.h.b16 %v420
    %v1449 = vunpack.c.l.b16 %v421
    %v1450 = vunpack.c.h.b16 %v421
    %v1451 = vunpack.c.l.b16 %v422
    %v1452 = vunpack.c.h.b16 %v422
    %v1453 = vunpack.c.l.b16 %v423
    %v1454 = vunpack.c.h.b16 %v423
    %v1455 = vunpack.c.l.b16 %v424
    %v1456 = vunpack.c.h.b16 %v424
    %v1457 = vunpack.c.l.b16 %v425
    %v1458 = vunpack.c.h.b16 %v425
    %v1459 = vunpack.c.l.b16 %v426
    %v1460 = vunpack.c.h.b16 %v426
    %v1461 = vunpack.c.l.b16 %v427
    %v1462 = vunpack.c.h.b16 %v427
    %v1463 = vunpack.c.l.b16 %v428
    %v1464 = vunpack.c.h.b16 %v428
    %v1465 = vunpack.c.l.b16 %v429
    %v1466 = vunpack.c.h.b16 %v429
    %v1467 = vunpack.c.l.b16 %v430
    %v1468 = vunpack.c.h.b16 %v430
    %v1469 = vunpack.c.l.b16 %v431
    %v1470 = vunpack.c.h.b16 %v431
    %v1471 = vunpack.c.l.b16 %v432
    %v1472 = vunpack.c.h.b16 %v432
    %v1473 = vunpack.c.l.b16 %v433
    %v1474 = vunpack.c.h.b16 %v433
    %v1475 = vpack.c.b16 %v905, %v899
    %v1476 = vpack.c.b16 %v906, %v900
    %v1477 = vpack.c.b16 %v907, %v901
    %v1478 = vpack.c.b16 %v908, %v902
    %v1479 = vpack.c.b16 %v909, %v903
    %v1480 = vpack.c.b16 %v910, %v904
    %v1481 = vpack.c.b16 %v917, %v911
    %v1482 = vpack.c.b16 %v918, %v912
    %v1483 = vpack.c.b16 %v919, %v913
    %v1484 = vpack.c.b16 %v920, %v914
    %v1485 = vpack.c.b16 %v921, %v915
    %v1486 = vpack.c.b16 %v922, %v916
    %v1487 = vpack.c.b16 %v929, %v923
    %v1488 = vpack.c.b16 %v930, %v924
    %v1489 = vpack.c.b16 %v931, %v925
    %v1490 = vpack.c.b16 %v932, %v926
    %v1491 = vpack.c.b16 %v933, %v927
    %v1492 = vpack.c.b16 %v934, %v928
    %v1493 = vpack.c.b16 %v941, %v935
    %v1494 = vpack.c.b16 %v942, %v936
    %v1495 = vpack.c.b16 %v943, %v937
    %v1496 = vpack.c.b16 %v944, %v938
    %v1497 = vpack.c.b16 %v945, %v939
    %v1498 = vpack.c.b16 %v946, %v940
    %v1499 = vpack.c.b16 %v953, %v947
    %v1500 = vpack.c.b16 %v954, %v948
    %v1501 = vpack.c.b16 %v955, %v949
    %v1502 = vpack.c.b16 %v956, %v950
    %v1503 = vpack.c.b16 %v957, %v951
    %v1504 = vpack.c.b16 %v958, %v952
    %v1505 = vpack.c.b16 %v965, %v959
    %v1506 = vpack.c.b16 %v966, %v960
    %v1507 = vpack.c.b16 %v967, %v961
    %v1508 = vpack.c.b16 %v968, %v962
    %v1509 = vpack.c.b16 %v969, %v963
    %v1510 = vpack.c.b16 %v970, %v964
    %v1511 = vpack.c.b16 %v977, %v971
    %v1512 = vpack.c.b16 %v978, %v972
    %v1513 = vpack.c.b16 %v979, %v973
    %v1514 = vpack.c.b16 %v980, %v974
    %v1515 = vpack.c.b16 %v981, %v975
    %v1516 = vpack.c.b16 %v982, %v976
    %v1517 = vpack.c.b16 %v989, %v983
    %v1518 = vpack.c.b16 %v990, %v984
    %v1519 = vpack.c.b16 %v991, %v985
    %v1520 = vpack.c.b16 %v992, %v986
    %v1521 = vpack.c.b16 %v993, %v987
    %v1522 = vpack.c.b16 %v994, %v988
    %v1523 = vpack.c.b16 %v1001, %v995
    %v1524 = vpack.c.b16 %v1002, %v996
    %v1525 = vpack.c.b16 %v1003, %v997
    %v1526 = vpack.c.b16 %v1004, %v998
    %v1527 = vpack.c.b16 %v1005, %v999
    %v1528 = vpack.c.b16 %v1006, %v1000
    %v1529 = vpack.c.b16 %v1013, %v1007
    %v1530 = vpack.c.b16 %v1014, %v1008
    %v1531 = vpack.c.b16 %v1015, %v1009
    %v1532 = vpack.c.b16 %v1016, %v1010
    %v1533 = vpack.c.b16 %v1017, %v1011
    %v1534 = vpack.c.b16 %v1018, %v1012
    %v1535 = vpack.c.b16 %v1025, %v1019
    %v1536 = vpack.c.b16 %v1026, %v1020
    %v1537 = vpack.c.b16 %v1027, %v1021
    %v1538 = vpack.c.b16 %v1028, %v1022
    %v1539 = vpack.c.b16 %v1029, %v1023
    %v1540 = vpack.c.b16 %v1030, %v1024
    %v1541 = vpack.c.b16 %v1037, %v1031
    %v1542 = vpack.c.b16 %v1038, %v1032
    %v1543 = vpack.c.b16 %v1039, %v1033
    %v1544 = vpack.c.b16 %v1040, %v1034
    %v1545 = vpack.c.b16 %v1041, %v1035
    %v1546 = vpack.c.b16 %v1042, %v1036
    %v1547 = vpack.c.b16 %v1049, %v1043
    %v1548 = vpack.c.b16 %v1050, %v1044
    %v1549 = vpack.c.b16 %v1051, %v1045
    %v1550 = vpack.c.b16 %v1052, %v1046
    %v1551 = vpack.c.b16 %v1053, %v1047
    %v1552 = vpack.c.b16 %v1054, %v1048
    %v1553 = vpack.c.b16 %v1061, %v1055
    %v1554 = vpack.c.b16 %v1062, %v1056
    %v1555 = vpack.c.b16 %v1063, %v1057
    %v1556 = vpack.c.b16 %v1064, %v1058
    %v1557 = vpack.c.b16 %v1065, %v1059
    %v1558 = vpack.c.b16 %v1066, %v1060
    %v1559 = vpack.c.b16 %v1073, %v1067
    %v1560 = vpack.c.b16 %v1074, %v1068
    %v1561 = vpack.c.b16 %v1075, %v1069
    %v1562 = vpack.c.b16 %v1076, %v1070
    %v1563 = vpack.c.b16 %v1077, %v1071
    %v1564 = vpack.c.b16 %v1078, %v1072
    %v1565 = vpack.c.b16 %v1085, %v1079
    %v1566 = vpack.c.b16 %v1086, %v1080
    %v1567 = vpack.c.b16 %v1087, %v1081
    %v1568 = vpack.c.b16 %v1088, %v1082
    %v1569 = vpack.c.b16 %v1089, %v1083
    %v1570 = vpack.c.b16 %v1090, %v1084
    %v1571 = vpack.c.b16 %v1097, %v1091
    %v1572 = vpack.c.b16 %v1098, %v1092
    %v1573 = vpack.c.b16 %v1099, %v1093
    %v1574 = vpack.c.b16 %v1100, %v1094
    %v1575 = vpack.c.b16 %v1101, %v1095
    %v1576 = vpack.c.b16 %v1102, %v1096
    %v1577 = vpack.c.b16 %v1109, %v1103
    %v1578 = vpack.c.b16 %v1110, %v1104
    %v1579 = vpack.c.b16 %v1111, %v1105
    %v1580 = vpack.c.b16 %v1112, %v1106
    %v1581 = vpack.c.b16 %v1113, %v1107
    %v1582 = vpack.c.b16 %v1114, %v1108
    %v1583 = vpack.c.b16 %v1121, %v1115
    %v1584 = vpack.c.b16 %v1122, %v1116
    %v1585 = vpack.c.b16 %v1123, %v1117
    %v1586 = vpack.c.b16 %v1124, %v1118
    %v1587 = vpack.c.b16 %v1125, %v1119
    %v1588 = vpack.c.b16 %v1126, %v1120
    %v1589 = vpack.c.b16 %v1133, %v1127
    %v1590 = vpack.c.b16 %v1134, %v1128
    %v1591 = vpack.c.b16 %v1135, %v1129
    %v1592 = vpack.c.b16 %v1136, %v1130
    %v1593 = vpack.c.b16 %v1137, %v1131
    %v1594 = vpack.c.b16 %v1138, %v1132
    %v1595 = vpack.c.b16 %v1145, %v1139
    %v1596 = vpack.c.b16 %v1146, %v1140
    %v1597 = vpack.c.b16 %v1147, %v1141
    %v1598 = vpack.c.b16 %v1148, %v1142
    %v1599 = vpack.c.b16 %v1149, %v1143
    %v1600 = vpack.c.b16 %v1150, %v1144
    %v1601 = vpack.c.b16 %v1157, %v1151
    %v1602 = vpack.c.b16 %v1158, %v1152
    %v1603 = vpack.c.b16 %v1159, %v1153
    %v1604 = vpack.c.b16 %v1160, %v1154
    %v1605 = vpack.c.b16 %v1161, %v1155
    %v1606 = vpack.c.b16 %v1162, %v1156
    %v1607 = vpack.c.b16 %v1169, %v1163
    %v1608 = vpack.c.b16 %v1170, %v1164
    %v1609 = vpack.c.b16 %v1171, %v1165
    %v1610 = vpack.c.b16 %v1172, %v1166
    %v1611 = vpack.c.b16 %v1173, %v1167
    %v1612 = vpack.c.b16 %v1174, %v1168
    %v1613 = vpack.c.b16 %v1181, %v1175
    %v1614 = vpack.c.b16 %v1182, %v1176
    %v1615 = vpack.c.b16 %v1183, %v1177
    %v1616 = vpack.c.b16 %v1184, %v1178
    %v1617 = vpack.c.b16 %v1185, %v1179
    %v1618 = vpack.c.b16 %v1186, %v1180
    %v1619 = vpack.c.b16 %v1193, %v1187
    %v1620 = vpack.c.b16 %v1194, %v1188
    %v1621 = vpack.c.b16 %v1195, %v1189
    %v1622 = vpack.c.b16 %v1196, %v1190
    %v1623 = vpack.c.b16 %v1197, %v1191
    %v1624 = vpack.c.b16 %v1198, %v1192
    %v1625 = vpack.c.b16 %v1205, %v1199
    %v1626 = vpack.c.b16 %v1206, %v1200
    %v1627 = vpack.c.b16 %v1207, %v1201
    %v1628 = vpack.c.b16 %v1208, %v1202
    %v1629 = vpack.c.b16 %v1209, %v1203
    %v1630 = vpack.c.b16 %v1210, %v1204
    %v1631 = vpack.c.b16 %v1217, %v1211
    %v1632 = vpack.c.b16 %v1218, %v1212
    %v1633 = vpack.c.b16 %v1219, %v1213
    %v1634 = vpack.c.b16 %v1220, %v1214
    %v1635 = vpack.c.b16 %v1221, %v1215
    %v1636 = vpack.c.b16 %v1222, %v1216
    %v1637 = vpack.c.b16 %v1229, %v1223
    %v1638 = vpack.c.b16 %v1230, %v1224
    %v1639 = vpack.c.b16 %v1231, %v1225
    %v1640 = vpack.c.b16 %v1232, %v1226
    %v1641 = vpack.c.b16 %v1233, %v1227
    %v1642 = vpack.c.b16 %v1234, %v1228
    %v1643 = vpack.c.b16 %v1241, %v1235
    %v1644 = vpack.c.b16 %v1242, %v1236
    %v1645 = vpack.c.b16 %v1243, %v1237
    %v1646 = vpack.c.b16 %v1244, %v1238
    %v1647 = vpack.c.b16 %v1245, %v1239
    %v1648 = vpack.c.b16 %v1246, %v1240
    %v1649 = vpack.c.b16 %v1253, %v1247
    %v1650 = vpack.c.b16 %v1254, %v1248
    %v1651 = vpack.c.b16 %v1255, %v1249
    %v1652 = vpack.c.b16 %v1256, %v1250
    %v1653 = vpack.c.b16 %v1257, %v1251
    %v1654 = vpack.c.b16 %v1258, %v1252
    %v1655 = vpack.c.b16 %v1265, %v1259
    %v1656 = vpack.c.b16 %v1266, %v1260
    %v1657 = vpack.c.b16 %v1267, %v1261
    %v1658 = vpack.c.b16 %v1268, %v1262
    %v1659 = vpack.c.b16 %v1269, %v1263
    %v1660 = vpack.c.b16 %v1270, %v1264
    %v1661 = vpack.c.b16 %v1277, %v1271
    %v1662 = vpack.c.b16 %v1278, %v1272
    %v1663 = vpack.c.b16 %v1279, %v1273
    %v1664 = vpack.c.b16 %v1280, %v1274
    %v1665 = vpack.c.b16 %v1281, %v1275
    %v1666 = vpack.c.b16 %v1282, %v1276
    %v1667 = vpack.c.b16 %v1289, %v1283
    %v1668 = vpack.c.b16 %v1290, %v1284
    %v1669 = vpack.c.b16 %v1291, %v1285
    %v1670 = vpack.c.b16 %v1292, %v1286
    %v1671 = vpack.c.b16 %v1293, %v1287
    %v1672 = vpack.c.b16 %v1294, %v1288
    %v1673 = vpack.c.b16 %v1301, %v1295
    %v1674 = vpack.c.b16 %v1302, %v1296
    %v1675 = vpack.c.b16 %v1303, %v1297
    %v1676 = vpack.c.b16 %v1304, %v1298
    %v1677 = vpack.c.b16 %v1305, %v1299
    %v1678 = vpack.c.b16 %v1306, %v1300
    %v1679 = vpack.c.b16 %v1313, %v1307
    %v1680 = vpack.c.b16 %v1314, %v1308
    %v1681 = vpack.c.b16 %v1315, %v1309
    %v1682 = vpack.c.b16 %v1316, %v1310
    %v1683 = vpack.c.b16 %v1317, %v1311
    %v1684 = vpack.c.b16 %v1318, %v1312
    %v1685 = vpack.c.b16 %v1325, %v1319
    %v1686 = vpack.c.b16 %v1326, %v1320
    %v1687 = vpack.c.b16 %v1327, %v1321
    %v1688 = vpack.c.b16 %v1328, %v1322
    %v1689 = vpack.c.b16 %v1329, %v1323
    %v1690 = vpack.c.b16 %v1330, %v1324
    %v1691 = vpack.c.b16 %v1337, %v1331
    %v1692 = vpack.c.b16 %v1338, %v1332
    %v1693 = vpack.c.b16 %v1339, %v1333
    %v1694 = vpack.c.b16 %v1340, %v1334
    %v1695 = vpack.c.b16 %v1341, %v1335
    %v1696 = vpack.c.b16 %v1342, %v1336
    %v1697 = vpack.c.b16 %v1349, %v1343
    %v1698 = vpack.c.b16 %v1350, %v1344
    %v1699 = vpack.c.b16 %v1351, %v1345
    %v1700 = vpack.c.b16 %v1352, %v1346
    %v1701 = vpack.c.b16 %v1353, %v1347
    %v1702 = vpack.c.b16 %v1354, %v1348
    %v1703 = vpack.c.b16 %v1361, %v1355
    %v1704 = vpack.c.b16 %v1362, %v1356
    %v1705 = vpack.c.b16 %v1363, %v1357
    %v1706 = vpack.c.b16 %v1364, %v1358
    %v1707 = vpack.c.b16 %v1365, %v1359
    %v1708 = vpack.c.b16 %v1366, %v1360
    %v1709 = vpack.c.b16 %v1373, %v1367
    %v1710 = vpack.c.b16 %v1374, %v1368
    %v1711 = vpack.c.b16 %v1375, %v1369
    %v1712 = vpack.c.b16 %v1376, %v1370
    %v1713 = vpack.c.b16 %v1377, %v1371
    %v1714 = vpack.c.b16 %v1378, %v1372
    %v1715 = vpack.c.b16 %v1385, %v1379
    %v1716 = vpack.c.b16 %v1386, %v1380
    %v1717 = vpack.c.b16 %v1387, %v1381
    %v1718 = vpack.c.b16 %v1388, %v1382
    %v1719 = vpack.c.b16 %v1389, %v1383
    %v1720 = vpack.c.b16 %v1390, %v1384
    %v1721 = vpack.c.b16 %v1397, %v1391
    %v1722 = vpack.c.b16 %v1398, %v1392
    %v1723 = vpack.c.b16 %v1399, %v1393
    %v1724 = vpack.c.b16 %v1400, %v1394
    %v1725 = vpack.c.b16 %v1401, %v1395
    %v1726 = vpack.c.b16 %v1402, %v1396
    %v1727 = vpack.c.b16 %v1409, %v1403
    %v1728 = vpack.c.b16 %v1410, %v1404
    %v1729 = vpack.c.b16 %v1411, %v1405
    %v1730 = vpack.c.b16 %v1412, %v1406
    %v1731 = vpack.c.b16 %v1413, %v1407
    %v1732 = vpack.c.b16 %v1414, %v1408
    %v1733 = vpack.c.b16 %v1421, %v1415
    %v1734 = vpack.c.b16 %v1422, %v1416
    %v1735 = vpack.c.b16 %v1423, %v1417
    %v1736 = vpack.c.b16 %v1424, %v1418
    %v1737 = vpack.c.b16 %v1425, %v1419
    %v1738 = vpack.c.b16 %v1426, %v1420
    %v1739 = vpack.c.b16 %v1433, %v1427
    %v1740 = vpack.c.b16 %v1434, %v1428
    %v1741 = vpack.c.b16 %v1435, %v1429
    %v1742 = vpack.c.b16 %v1436, %v1430
    %v1743 = vpack.c.b16 %v1437, %v1431
    %v1744 = vpack.c.b16 %v1438, %v1432
    %v1745 = vpack.c.b16 %v1445, %v1439
    %v1746 = vpack.c.b16 %v1446, %v1440
    %v1747 = vpack.c.b16 %v1447, %v1441
    %v1748 = vpack.c.b16 %v1448, %v1442
    %v1749 = vpack.c.b16 %v1449, %v1443
    %v1750 = vpack.c.b16 %v1450, %v1444
    %v1751 = vpack.c.b16 %v1457, %v1451
    %v1752 = vpack.c.b16 %v1458, %v1452
    %v1753 = vpack.c.b16 %v1459, %v1453
    %v1754 = vpack.c.b16 %v1460, %v1454
    %v1755 = vpack.c.b16 %v1461, %v1455
    %v1756 = vpack.c.b16 %v1462, %v1456
    %v1757 = vpack.c.b16 %v1469, %v1463
    %v1758 = vpack.c.b16 %v1470, %v1464
    %v1759 = vpack.c.b16 %v1471, %v1465
    %v1760 = vpack.c.b16 %v1472, %v1466
    %v1761 = vpack.c.b16 %v1473, %v1467
    %v1762 = vpack.c.b16 %v1474, %v1468
    %2051 = vmatprep.subr.bf16.mxu0 %v1476
    %2052 = vmatpush1.bf16.msra.mxu0 %v1475
    %2053 = vmatprep.subr.bf16.mxu0 %v1482
    %2054 = vmatpush1.bf16.msra.mxu0 %v1481
    %2055 = vmatprep.subr.bf16.mxu0 %v1488
    %2056 = vmatpush1.bf16.msra.mxu0 %v1487
    %2057 = vmatprep.subr.bf16.mxu0 %v1494
    %2058 = vmatpush1.bf16.msra.mxu0 %v1493
    %2059 = vmatprep.subr.bf16.mxu0 %v1500
    %2060 = vmatpush1.bf16.msra.mxu0 %v1499
    %2061 = vmatprep.subr.bf16.mxu0 %v1506
    %2062 = vmatpush1.bf16.msra.mxu0 %v1505
    %2063 = vmatprep.subr.bf16.mxu0 %v1512
    %2064 = vmatpush1.bf16.msra.mxu0 %v1511
    %2065 = vmatprep.subr.bf16.mxu0 %v1518
    %2066 = vmatpush1.bf16.msra.mxu0 %v1517
    %2067 = vmatprep.subr.bf16.mxu0 %v1524
    %2068 = vmatpush1.bf16.msra.mxu0 %v1523
    %2069 = vmatprep.subr.bf16.mxu0 %v1530
    %2070 = vmatpush1.bf16.msra.mxu0 %v1529
    %2071 = vmatprep.subr.bf16.mxu0 %v1536
    %2072 = vmatpush1.bf16.msra.mxu0 %v1535
    %2073 = vmatprep.subr.bf16.mxu0 %v1542
    %2074 = vmatpush1.bf16.msra.mxu0 %v1541
    %2075 = vmatprep.subr.bf16.mxu0 %v1548
    %2076 = vmatpush1.bf16.msra.mxu0 %v1547
    %2077 = vmatprep.subr.bf16.mxu0 %v1554
    %2078 = vmatpush1.bf16.msra.mxu0 %v1553
    %2079 = vmatprep.subr.bf16.mxu0 %v1560
    %2080 = vmatpush1.bf16.msra.mxu0 %v1559
    %2081 = vmatprep.subr.bf16.mxu0 %v1566
    %2082 = vmatpush1.bf16.msra.mxu0 %v1565
    %2083 = vmatprep.mubr.bf16.mxu0 %v141
    %2084 = vmatmul.mubr.bf16.gmra.mrb[0].mxu0 %v140
    %v2085 = vpop.f32.mrb[0].mxu0
    %v2086 = vadd.f32 %v523, %v2085
    %v2087 = vpop.f32.mrb[0].mxu0
    %v2088 = vadd.f32 %v525, %v2087
    %v2089 = vpop.f32.mrb[0].mxu0
    %v2090 = vpop.f32.mrb[0].mxu0
    %2091 = vdwg.mxu0
    %2092 = vmatprep.subr.bf16.mxu0 %v1572
    %2093 = vmatpush1.bf16.msra.mxu0 %v1571
    %2094 = vmatprep.subr.bf16.mxu0 %v1578
    %2095 = vmatpush1.bf16.msra.mxu0 %v1577
    %2096 = vmatprep.subr.bf16.mxu0 %v1584
    %2097 = vmatpush1.bf16.msra.mxu0 %v1583
    %2098 = vmatprep.subr.bf16.mxu0 %v1590
    %2099 = vmatpush1.bf16.msra.mxu0 %v1589
    %2100 = vmatprep.subr.bf16.mxu0 %v1596
    %2101 = vmatpush1.bf16.msra.mxu0 %v1595
    %2102 = vmatprep.subr.bf16.mxu0 %v1602
    %2103 = vmatpush1.bf16.msra.mxu0 %v1601
    %2104 = vmatprep.subr.bf16.mxu0 %v1608
    %2105 = vmatpush1.bf16.msra.mxu0 %v1607
    %2106 = vmatprep.subr.bf16.mxu0 %v1614
    %2107 = vmatpush1.bf16.msra.mxu0 %v1613
    %2108 = vmatprep.subr.bf16.mxu0 %v1620
    %2109 = vmatpush1.bf16.msra.mxu0 %v1619
    %2110 = vmatprep.subr.bf16.mxu0 %v1626
    %2111 = vmatpush1.bf16.msra.mxu0 %v1625
    %2112 = vmatprep.subr.bf16.mxu0 %v1632
    %2113 = vmatpush1.bf16.msra.mxu0 %v1631
    %2114 = vmatprep.subr.bf16.mxu0 %v1638
    %2115 = vmatpush1.bf16.msra.mxu0 %v1637
    %2116 = vmatprep.subr.bf16.mxu0 %v1644
    %2117 = vmatpush1.bf16.msra.mxu0 %v1643
    %2118 = vmatprep.subr.bf16.mxu0 %v1650
    %2119 = vmatpush1.bf16.msra.mxu0 %v1649
    %2120 = vmatprep.subr.bf16.mxu0 %v1656
    %2121 = vmatpush1.bf16.msra.mxu0 %v1655
    %2122 = vmatprep.subr.bf16.mxu0 %v1662
    %2123 = vmatpush1.bf16.msra.mxu0 %v1661
    %2124 = vmatprep.mubr.bf16.mxu0 %v143
    %2125 = vmatmul.mubr.bf16.gmra.mrb[0].mxu0 %v142
    %v2126 = vpop.f32.mrb[0].mxu0
    %v2127 = vadd.f32 %v2086, %v2126
    %v2128 = vpop.f32.mrb[0].mxu0
    %v2129 = vadd.f32 %v2088, %v2128
    %v2130 = vpop.f32.mrb[0].mxu0
    %v2131 = vpop.f32.mrb[0].mxu0
    %2132 = vdwg.mxu0
    %2133 = vmatprep.subr.bf16.mxu0 %v1668
    %2134 = vmatpush1.bf16.msra.mxu0 %v1667
    %2135 = vmatprep.subr.bf16.mxu0 %v1674
    %2136 = vmatpush1.bf16.msra.mxu0 %v1673
    %2137 = vmatprep.subr.bf16.mxu0 %v1680
    %2138 = vmatpush1.bf16.msra.mxu0 %v1679
    %2139 = vmatprep.subr.bf16.mxu0 %v1686
    %2140 = vmatpush1.bf16.msra.mxu0 %v1685
    %2141 = vmatprep.subr.bf16.mxu0 %v1692
    %2142 = vmatpush1.bf16.msra.mxu0 %v1691
    %2143 = vmatprep.subr.bf16.mxu0 %v1698
    %2144 = vmatpush1.bf16.msra.mxu0 %v1697
    %2145 = vmatprep.subr.bf16.mxu0 %v1704
    %2146 = vmatpush1.bf16.msra.mxu0 %v1703
    %2147 = vmatprep.subr.bf16.mxu0 %v1710
    %2148 = vmatpush1.bf16.msra.mxu0 %v1709
    %2149 = vmatprep.subr.bf16.mxu0 %v1716
    %2150 = vmatpush1.bf16.msra.mxu0 %v1715
    %2151 = vmatprep.subr.bf16.mxu0 %v1722
    %2152 = vmatpush1.bf16.msra.mxu0 %v1721
    %2153 = vmatprep.subr.bf16.mxu0 %v1728
    %2154 = vmatpush1.bf16.msra.mxu0 %v1727
    %2155 = vmatprep.subr.bf16.mxu0 %v1734
    %2156 = vmatpush1.bf16.msra.mxu0 %v1733
    %2157 = vmatprep.subr.bf16.mxu0 %v1740
    %2158 = vmatpush1.bf16.msra.mxu0 %v1739
    %2159 = vmatprep.subr.bf16.mxu0 %v1746
    %2160 = vmatpush1.bf16.msra.mxu0 %v1745
    %2161 = vmatprep.subr.bf16.mxu0 %v1752
    %2162 = vmatpush1.bf16.msra.mxu0 %v1751
    %2163 = vmatprep.subr.bf16.mxu0 %v1758
    %2164 = vmatpush1.bf16.msra.mxu0 %v1757
    %2165 = vmatprep.mubr.bf16.mxu0 %v145
    %2166 = vmatmul.mubr.bf16.gmra.mrb[0].mxu0 %v144
    %v2167 = vpop.f32.mrb[0].mxu0
    %v2168 = vadd.f32 %v2127, %v2167
    %v2169 = vpop.f32.mrb[0].mxu0
    %v2170 = vadd.f32 %v2129, %v2169
    %v2171 = vpop.f32.mrb[0].mxu0
    %v2172 = vpop.f32.mrb[0].mxu0
    %2173 = vdwg.mxu0
    %2174 = vmatprep.subr.bf16.mxu0 %v1478
    %2175 = vmatpush1.bf16.msra.mxu0 %v1477
    %2176 = vmatprep.subr.bf16.mxu0 %v1484
    %2177 = vmatpush1.bf16.msra.mxu0 %v1483
    %2178 = vmatprep.subr.bf16.mxu0 %v1490
    %2179 = vmatpush1.bf16.msra.mxu0 %v1489
    %2180 = vmatprep.subr.bf16.mxu0 %v1496
    %2181 = vmatpush1.bf16.msra.mxu0 %v1495
    %2182 = vmatprep.subr.bf16.mxu0 %v1502
    %2183 = vmatpush1.bf16.msra.mxu0 %v1501
    %2184 = vmatprep.subr.bf16.mxu0 %v1508
    %2185 = vmatpush1.bf16.msra.mxu0 %v1507
    %2186 = vmatprep.subr.bf16.mxu0 %v1514
    %2187 = vmatpush1.bf16.msra.mxu0 %v1513
    %2188 = vmatprep.subr.bf16.mxu0 %v1520
    %2189 = vmatpush1.bf16.msra.mxu0 %v1519
    %2190 = vmatprep.subr.bf16.mxu0 %v1526
    %2191 = vmatpush1.bf16.msra.mxu0 %v1525
    %2192 = vmatprep.subr.bf16.mxu0 %v1532
    %2193 = vmatpush1.bf16.msra.mxu0 %v1531
    %2194 = vmatprep.subr.bf16.mxu0 %v1538
    %2195 = vmatpush1.bf16.msra.mxu0 %v1537
    %2196 = vmatprep.subr.bf16.mxu0 %v1544
    %2197 = vmatpush1.bf16.msra.mxu0 %v1543
    %2198 = vmatprep.subr.bf16.mxu0 %v1550
    %2199 = vmatpush1.bf16.msra.mxu0 %v1549
    %2200 = vmatprep.subr.bf16.mxu0 %v1556
    %2201 = vmatpush1.bf16.msra.mxu0 %v1555
    %2202 = vmatprep.subr.bf16.mxu0 %v1562
    %2203 = vmatpush1.bf16.msra.mxu0 %v1561
    %2204 = vmatprep.subr.bf16.mxu0 %v1568
    %2205 = vmatpush1.bf16.msra.mxu0 %v1567
    %2206 = vmatprep.mubr.bf16.mxu0 %v141
    %2207 = vmatmul.mubr.bf16.gmra.mrb[0].mxu0 %v140
    %v2208 = vpop.f32.mrb[0].mxu0
    %v2209 = vadd.f32 %v564, %v2208
    %v2210 = vpop.f32.mrb[0].mxu0
    %v2211 = vadd.f32 %v566, %v2210
    %v2212 = vpop.f32.mrb[0].mxu0
    %v2213 = vpop.f32.mrb[0].mxu0
    %2214 = vdwg.mxu0
    %2215 = vmatprep.subr.bf16.mxu0 %v1574
    %2216 = vmatpush1.bf16.msra.mxu0 %v1573
    %2217 = vmatprep.subr.bf16.mxu0 %v1580
    %2218 = vmatpush1.bf16.msra.mxu0 %v1579
    %2219 = vmatprep.subr.bf16.mxu0 %v1586
    %2220 = vmatpush1.bf16.msra.mxu0 %v1585
    %2221 = vmatprep.subr.bf16.mxu0 %v1592
    %2222 = vmatpush1.bf16.msra.mxu0 %v1591
    %2223 = vmatprep.subr.bf16.mxu0 %v1598
    %2224 = vmatpush1.bf16.msra.mxu0 %v1597
    %2225 = vmatprep.subr.bf16.mxu0 %v1604
    %2226 = vmatpush1.bf16.msra.mxu0 %v1603
    %2227 = vmatprep.subr.bf16.mxu0 %v1610
    %2228 = vmatpush1.bf16.msra.mxu0 %v1609
    %2229 = vmatprep.subr.bf16.mxu0 %v1616
    %2230 = vmatpush1.bf16.msra.mxu0 %v1615
    %2231 = vmatprep.subr.bf16.mxu0 %v1622
    %2232 = vmatpush1.bf16.msra.mxu0 %v1621
    %2233 = vmatprep.subr.bf16.mxu0 %v1628
    %2234 = vmatpush1.bf16.msra.mxu0 %v1627
    %2235 = vmatprep.subr.bf16.mxu0 %v1634
    %2236 = vmatpush1.bf16.msra.mxu0 %v1633
    %2237 = vmatprep.subr.bf16.mxu0 %v1640
    %2238 = vmatpush1.bf16.msra.mxu0 %v1639
    %2239 = vmatprep.subr.bf16.mxu0 %v1646
    %2240 = vmatpush1.bf16.msra.mxu0 %v1645
    %2241 = vmatprep.subr.bf16.mxu0 %v1652
    %2242 = vmatpush1.bf16.msra.mxu0 %v1651
    %2243 = vmatprep.subr.bf16.mxu0 %v1658
    %2244 = vmatpush1.bf16.msra.mxu0 %v1657
    %2245 = vmatprep.subr.bf16.mxu0 %v1664
    %2246 = vmatpush1.bf16.msra.mxu0 %v1663
    %2247 = vmatprep.mubr.bf16.mxu0 %v143
    %2248 = vmatmul.mubr.bf16.gmra.mrb[0].mxu0 %v142
    %v2249 = vpop.f32.mrb[0].mxu0
    %v2250 = vadd.f32 %v2209, %v2249
    %v2251 = vpop.f32.mrb[0].mxu0
    %v2252 = vadd.f32 %v2211, %v2251
    %v2253 = vpop.f32.mrb[0].mxu0
    %v2254 = vpop.f32.mrb[0].mxu0
    %2255 = vdwg.mxu0
    %2256 = vmatprep.subr.bf16.mxu0 %v1670
    %2257 = vmatpush1.bf16.msra.mxu0 %v1669
    %2258 = vmatprep.subr.bf16.mxu0 %v1676
    %2259 = vmatpush1.bf16.msra.mxu0 %v1675
    %2260 = vmatprep.subr.bf16.mxu0 %v1682
    %2261 = vmatpush1.bf16.msra.mxu0 %v1681
    %2262 = vmatprep.subr.bf16.mxu0 %v1688
    %2263 = vmatpush1.bf16.msra.mxu0 %v1687
    %2264 = vmatprep.subr.bf16.mxu0 %v1694
    %2265 = vmatpush1.bf16.msra.mxu0 %v1693
    %2266 = vmatprep.subr.bf16.mxu0 %v1700
    %2267 = vmatpush1.bf16.msra.mxu0 %v1699
    %2268 = vmatprep.subr.bf16.mxu0 %v1706
    %2269 = vmatpush1.bf16.msra.mxu0 %v1705
    %2270 = vmatprep.subr.bf16.mxu0 %v1712
    %2271 = vmatpush1.bf16.msra.mxu0 %v1711
    %2272 = vmatprep.subr.bf16.mxu0 %v1718
    %2273 = vmatpush1.bf16.msra.mxu0 %v1717
    %2274 = vmatprep.subr.bf16.mxu0 %v1724
    %2275 = vmatpush1.bf16.msra.mxu0 %v1723
    %2276 = vmatprep.subr.bf16.mxu0 %v1730
    %2277 = vmatpush1.bf16.msra.mxu0 %v1729
    %2278 = vmatprep.subr.bf16.mxu0 %v1736
    %2279 = vmatpush1.bf16.msra.mxu0 %v1735
    %2280 = vmatprep.subr.bf16.mxu0 %v1742
    %2281 = vmatpush1.bf16.msra.mxu0 %v1741
    %2282 = vmatprep.subr.bf16.mxu0 %v1748
    %2283 = vmatpush1.bf16.msra.mxu0 %v1747
    %2284 = vmatprep.subr.bf16.mxu0 %v1754
    %2285 = vmatpush1.bf16.msra.mxu0 %v1753
    %2286 = vmatprep.subr.bf16.mxu0 %v1760
    %2287 = vmatpush1.bf16.msra.mxu0 %v1759
    %2288 = vmatprep.mubr.bf16.mxu0 %v145
    %2289 = vmatmul.mubr.bf16.gmra.mrb[0].mxu0 %v144
    %v2290 = vpop.f32.mrb[0].mxu0
    %v2291 = vadd.f32 %v2250, %v2290
    %v2292 = vpop.f32.mrb[0].mxu0
    %v2293 = vadd.f32 %v2252, %v2292
    %v2294 = vpop.f32.mrb[0].mxu0
    %v2295 = vpop.f32.mrb[0].mxu0
    %2296 = vdwg.mxu0
    %2297 = vmatprep.subr.bf16.mxu0 %v1480
    %2298 = vmatpush1.bf16.msra.mxu0 %v1479
    %2299 = vmatprep.subr.bf16.mxu0 %v1486
    %2300 = vmatpush1.bf16.msra.mxu0 %v1485
    %2301 = vmatprep.subr.bf16.mxu0 %v1492
    %2302 = vmatpush1.bf16.msra.mxu0 %v1491
    %2303 = vmatprep.subr.bf16.mxu0 %v1498
    %2304 = vmatpush1.bf16.msra.mxu0 %v1497
    %2305 = vmatprep.subr.bf16.mxu0 %v1504
    %2306 = vmatpush1.bf16.msra.mxu0 %v1503
    %2307 = vmatprep.subr.bf16.mxu0 %v1510
    %2308 = vmatpush1.bf16.msra.mxu0 %v1509
    %2309 = vmatprep.subr.bf16.mxu0 %v1516
    %2310 = vmatpush1.bf16.msra.mxu0 %v1515
    %2311 = vmatprep.subr.bf16.mxu0 %v1522
    %2312 = vmatpush1.bf16.msra.mxu0 %v1521
    %2313 = vmatprep.subr.bf16.mxu0 %v1528
    %2314 = vmatpush1.bf16.msra.mxu0 %v1527
    %2315 = vmatprep.subr.bf16.mxu0 %v1534
    %2316 = vmatpush1.bf16.msra.mxu0 %v1533
    %2317 = vmatprep.subr.bf16.mxu0 %v1540
    %2318 = vmatpush1.bf16.msra.mxu0 %v1539
    %2319 = vmatprep.subr.bf16.mxu0 %v1546
    %2320 = vmatpush1.bf16.msra.mxu0 %v1545
    %2321 = vmatprep.subr.bf16.mxu0 %v1552
    %2322 = vmatpush1.bf16.msra.mxu0 %v1551
    %2323 = vmatprep.subr.bf16.mxu0 %v1558
    %2324 = vmatpush1.bf16.msra.mxu0 %v1557
    %2325 = vmatprep.subr.bf16.mxu0 %v1564
    %2326 = vmatpush1.bf16.msra.mxu0 %v1563
    %2327 = vmatprep.subr.bf16.mxu0 %v1570
    %2328 = vmatpush1.bf16.msra.mxu0 %v1569
    %2329 = vmatprep.mubr.bf16.mxu0 %v141
    %2330 = vmatmul.mubr.bf16.gmra.mrb[0].mxu0 %v140
    %v2331 = vpop.f32.mrb[0].mxu0
    %v2332 = vadd.f32 %v605, %v2331
    %v2333 = vpop.f32.mrb[0].mxu0
    %v2334 = vadd.f32 %v607, %v2333
    %v2335 = vpop.f32.mrb[0].mxu0
    %v2336 = vpop.f32.mrb[0].mxu0
    %2337 = vdwg.mxu0
    %2338 = vmatprep.subr.bf16.mxu0 %v1576
    %2339 = vmatpush1.bf16.msra.mxu0 %v1575
    %2340 = vmatprep.subr.bf16.mxu0 %v1582
    %2341 = vmatpush1.bf16.msra.mxu0 %v1581
    %2342 = vmatprep.subr.bf16.mxu0 %v1588
    %2343 = vmatpush1.bf16.msra.mxu0 %v1587
    %2344 = vmatprep.subr.bf16.mxu0 %v1594
    %2345 = vmatpush1.bf16.msra.mxu0 %v1593
    %2346 = vmatprep.subr.bf16.mxu0 %v1600
    %2347 = vmatpush1.bf16.msra.mxu0 %v1599
    %2348 = vmatprep.subr.bf16.mxu0 %v1606
    %2349 = vmatpush1.bf16.msra.mxu0 %v1605
    %2350 = vmatprep.subr.bf16.mxu0 %v1612
    %2351 = vmatpush1.bf16.msra.mxu0 %v1611
    %2352 = vmatprep.subr.bf16.mxu0 %v1618
    %2353 = vmatpush1.bf16.msra.mxu0 %v1617
    %2354 = vmatprep.subr.bf16.mxu0 %v1624
    %2355 = vmatpush1.bf16.msra.mxu0 %v1623
    %2356 = vmatprep.subr.bf16.mxu0 %v1630
    %2357 = vmatpush1.bf16.msra.mxu0 %v1629
    %2358 = vmatprep.subr.bf16.mxu0 %v1636
    %2359 = vmatpush1.bf16.msra.mxu0 %v1635
    %2360 = vmatprep.subr.bf16.mxu0 %v1642
    %2361 = vmatpush1.bf16.msra.mxu0 %v1641
    %2362 = vmatprep.subr.bf16.mxu0 %v1648
    %2363 = vmatpush1.bf16.msra.mxu0 %v1647
    %2364 = vmatprep.subr.bf16.mxu0 %v1654
    %2365 = vmatpush1.bf16.msra.mxu0 %v1653
    %2366 = vmatprep.subr.bf16.mxu0 %v1660
    %2367 = vmatpush1.bf16.msra.mxu0 %v1659
    %2368 = vmatprep.subr.bf16.mxu0 %v1666
    %2369 = vmatpush1.bf16.msra.mxu0 %v1665
    %2370 = vmatprep.mubr.bf16.mxu0 %v143
    %2371 = vmatmul.mubr.bf16.gmra.mrb[0].mxu0 %v142
    %v2372 = vpop.f32.mrb[0].mxu0
    %v2373 = vadd.f32 %v2332, %v2372
    %v2374 = vpop.f32.mrb[0].mxu0
    %v2375 = vadd.f32 %v2334, %v2374
    %v2376 = vpop.f32.mrb[0].mxu0
    %v2377 = vpop.f32.mrb[0].mxu0
    %2378 = vdwg.mxu0
    %2379 = vmatprep.subr.bf16.mxu0 %v1672
    %2380 = vmatpush1.bf16.msra.mxu0 %v1671
    %2381 = vmatprep.subr.bf16.mxu0 %v1678
    %2382 = vmatpush1.bf16.msra.mxu0 %v1677
    %2383 = vmatprep.subr.bf16.mxu0 %v1684
    %2384 = vmatpush1.bf16.msra.mxu0 %v1683
    %2385 = vmatprep.subr.bf16.mxu0 %v1690
    %2386 = vmatpush1.bf16.msra.mxu0 %v1689
    %2387 = vmatprep.subr.bf16.mxu0 %v1696
    %2388 = vmatpush1.bf16.msra.mxu0 %v1695
    %2389 = vmatprep.subr.bf16.mxu0 %v1702
    %2390 = vmatpush1.bf16.msra.mxu0 %v1701
    %2391 = vmatprep.subr.bf16.mxu0 %v1708
    %2392 = vmatpush1.bf16.msra.mxu0 %v1707
    %2393 = vmatprep.subr.bf16.mxu0 %v1714
    %2394 = vmatpush1.bf16.msra.mxu0 %v1713
    %2395 = vmatprep.subr.bf16.mxu0 %v1720
    %2396 = vmatpush1.bf16.msra.mxu0 %v1719
    %2397 = vmatprep.subr.bf16.mxu0 %v1726
    %2398 = vmatpush1.bf16.msra.mxu0 %v1725
    %2399 = vmatprep.subr.bf16.mxu0 %v1732
    %2400 = vmatpush1.bf16.msra.mxu0 %v1731
    %2401 = vmatprep.subr.bf16.mxu0 %v1738
    %2402 = vmatpush1.bf16.msra.mxu0 %v1737
    %2403 = vmatprep.subr.bf16.mxu0 %v1744
    %2404 = vmatpush1.bf16.msra.mxu0 %v1743
    %2405 = vmatprep.subr.bf16.mxu0 %v1750
    %2406 = vmatpush1.bf16.msra.mxu0 %v1749
    %2407 = vmatprep.subr.bf16.mxu0 %v1756
    %2408 = vmatpush1.bf16.msra.mxu0 %v1755
    %2409 = vmatprep.subr.bf16.mxu0 %v1762
    %2410 = vmatpush1.bf16.msra.mxu0 %v1761
    %2411 = vmatprep.mubr.bf16.mxu0 %v145
    %2412 = vmatmul.mubr.bf16.gmra.mrb[0].mxu0 %v144
    %v2413 = vpop.f32.mrb[0].mxu0
    %v2414 = vadd.f32 %v2373, %v2413
    %v2415 = vpop.f32.mrb[0].mxu0
    %v2416 = vadd.f32 %v2375, %v2415
    %v2417 = vpop.f32.mrb[0].mxu0
    %v2418 = vpop.f32.mrb[0].mxu0
    %2419 = vdwg.mxu0
    %v2420 = vld [vmem:[#allocation13] sm:$0x3f]
    %v2422 = vlaneseq
    %v2423 = vshrl.u32 %v2422, 7
    %v2424 = vsub.s32 0, %v2423
    %v2425 = vrot.slane %v2420, %v2424
    %v2426 = vlaneseq
    %v2427 = vshrl.u32 %v2426, 7
    %v2428 = vsub.s32 1, %v2427
    %v2429 = vrot.slane %v2420, %v2428
    %v2430 = vlaneseq
    %v2431 = vshrl.u32 %v2430, 7
    %v2432 = vsub.s32 2, %v2431
    %v2433 = vrot.slane %v2420, %v2432
    %v2434 = vlaneseq
    %v2435 = vshrl.u32 %v2434, 7
    %v2436 = vsub.s32 3, %v2435
    %v2437 = vrot.slane %v2420, %v2436
    %v2438 = vlaneseq
    %v2439 = vshrl.u32 %v2438, 7
    %v2440 = vsub.s32 4, %v2439
    %v2441 = vrot.slane %v2420, %v2440
    %v2442 = vlaneseq
    %v2443 = vshrl.u32 %v2442, 7
    %v2444 = vsub.s32 5, %v2443
    %v2445 = vrot.slane %v2420, %v2444
    %v2452 = vadd.f32 %v2168, %v2425
    %v2453 = vadd.f32 %v2170, %v2429
    %v2454 = vadd.f32 %v2291, %v2433
    %v2455 = vadd.f32 %v2293, %v2437
    %v2456 = vadd.f32 %v2414, %v2441
    %v2457 = vadd.f32 %v2416, %v2445
    %v2458 = vld [vmem:[#allocation13 + $0x6] sm:$0x3f]
    %v2459 = vld [vmem:[#allocation13 + $0xc] sm:$0x3f]
    %v2460 = vadd.f32 %v2452, %v2453
    %v2461 = vadd.f32 %v2460, %v2454
    %v2462 = vadd.f32 %v2461, %v2455
    %v2463 = vadd.f32 %v2462, %v2456
    %v2464 = vadd.f32 %v2463, %v2457
    %2465 = vadd.xlane.f32.xlu0 %v2464
    %v2466 = vpop.xlane.xlu0 %2465
    %v2467 = vrcp.pop 768.0
    %v2468 = vmul.f32 %v2466, %v2467
    %v2469 = vmul.f32 %v2452, %v2452
    %v2470 = vmul.f32 %v2453, %v2453
    %v2471 = vmul.f32 %v2454, %v2454
    %v2472 = vmul.f32 %v2455, %v2455
    %v2473 = vmul.f32 %v2456, %v2456
    %v2474 = vmul.f32 %v2457, %v2457
    %v2475 = vadd.f32 %v2469, %v2470
    %v2476 = vadd.f32 %v2475, %v2471
    %v2477 = vadd.f32 %v2476, %v2472
    %v2478 = vadd.f32 %v2477, %v2473
    %v2479 = vadd.f32 %v2478, %v2474
    %2480 = vadd.xlane.f32.xlu0 %v2479
    %v2481 = vpop.xlane.xlu0 %2480
    %v2482 = vmul.f32 %v2481, %v2467
    %v2483 = vmul.f32 %v2468, %v2468
    %v2484 = vsub.f32 %v2482, %v2483
    %v2485 = vmax.f32 %v2484, 0.0
    %v2486 = vadd.f32 %v2485, 1e-05
    %v2487 = vrsqrt.pop %v2486
    %v2488 = vpack.c.bf16 %v2452, %v2452
    %v2489 = vpack.c.bf16 %v2453, %v2453
    %v2490 = vpack.c.bf16 %v2454, %v2454
    %v2491 = vpack.c.bf16 %v2455, %v2455
    %v2492 = vpack.c.bf16 %v2456, %v2456
    %v2493 = vpack.c.bf16 %v2457, %v2457
    %v2494 = vpack.c.bf16 %v2468, %v2468
    %v2495 = vpack.c.bf16 %v2487, %v2487
    %v2497 = vlaneseq
    %v2498 = vshrl.u32 %v2497, 7
    %v2499 = vsub.s32 0, %v2498
    %v2500 = vrot.slane %v2458, %v2499
    %v2501 = vlaneseq
    %v2502 = vshrl.u32 %v2501, 7
    %v2503 = vsub.s32 1, %v2502
    %v2504 = vrot.slane %v2458, %v2503
    %v2505 = vlaneseq
    %v2506 = vshrl.u32 %v2505, 7
    %v2507 = vsub.s32 2, %v2506
    %v2508 = vrot.slane %v2458, %v2507
    %v2509 = vlaneseq
    %v2510 = vshrl.u32 %v2509, 7
    %v2511 = vsub.s32 3, %v2510
    %v2512 = vrot.slane %v2458, %v2511
    %v2513 = vlaneseq
    %v2514 = vshrl.u32 %v2513, 7
    %v2515 = vsub.s32 4, %v2514
    %v2516 = vrot.slane %v2458, %v2515
    %v2517 = vlaneseq
    %v2518 = vshrl.u32 %v2517, 7
    %v2519 = vsub.s32 5, %v2518
    %v2520 = vrot.slane %v2458, %v2519
    %v2527 = vpack.c.bf16 %v2500, %v2500
    %v2528 = vpack.c.bf16 %v2504, %v2504
    %v2529 = vpack.c.bf16 %v2508, %v2508
    %v2530 = vpack.c.bf16 %v2512, %v2512
    %v2531 = vpack.c.bf16 %v2516, %v2516
    %v2532 = vpack.c.bf16 %v2520, %v2520
    %v2534 = vlaneseq
    %v2535 = vshrl.u32 %v2534, 7
    %v2536 = vsub.s32 0, %v2535
    %v2537 = vrot.slane %v2459, %v2536
    %v2538 = vlaneseq
    %v2539 = vshrl.u32 %v2538, 7
    %v2540 = vsub.s32 1, %v2539
    %v2541 = vrot.slane %v2459, %v2540
    %v2542 = vlaneseq
    %v2543 = vshrl.u32 %v2542, 7
    %v2544 = vsub.s32 2, %v2543
    %v2545 = vrot.slane %v2459, %v2544
    %v2546 = vlaneseq
    %v2547 = vshrl.u32 %v2546, 7
    %v2548 = vsub.s32 3, %v2547
    %v2549 = vrot.slane %v2459, %v2548
    %v2550 = vlaneseq
    %v2551 = vshrl.u32 %v2550, 7
    %v2552 = vsub.s32 4, %v2551
    %v2553 = vrot.slane %v2459, %v2552
    %v2554 = vlaneseq
    %v2555 = vshrl.u32 %v2554, 7
    %v2556 = vsub.s32 5, %v2555
    %v2557 = vrot.slane %v2459, %v2556
    %v2564 = vpack.c.bf16 %v2537, %v2537
    %v2565 = vpack.c.bf16 %v2541, %v2541
    %v2566 = vpack.c.bf16 %v2545, %v2545
    %v2567 = vpack.c.bf16 %v2549, %v2549
    %v2568 = vpack.c.bf16 %v2553, %v2553
    %v2569 = vpack.c.bf16 %v2557, %v2557
    %v2570 = vsub.bf16 %v2488, %v2494
    %v2571 = vsub.bf16 %v2489, %v2494
    %v2572 = vsub.bf16 %v2490, %v2494
    %v2573 = vsub.bf16 %v2491, %v2494
    %v2574 = vsub.bf16 %v2492, %v2494
    %v2575 = vsub.bf16 %v2493, %v2494
    %v2576 = vmul.bf16 %v2570, %v2495
    %v2577 = vmul.bf16 %v2571, %v2495
    %v2578 = vmul.bf16 %v2572, %v2495
    %v2579 = vmul.bf16 %v2573, %v2495
    %v2580 = vmul.bf16 %v2574, %v2495
    %v2581 = vmul.bf16 %v2575, %v2495
    %v2583 = vpack.i.b16 %v2527, %v2527
    %v2585 = vlaneseq
    %v2586 = vshrl.u32 %v2585, 7
    %v2587 = vsub.s32 0, %v2586
    %v2588 = vrot.slane %v2583, %v2587
    %v2590 = vpack.i.b16 %v2528, %v2528
    %v2592 = vlaneseq
    %v2593 = vshrl.u32 %v2592, 7
    %v2594 = vsub.s32 0, %v2593
    %v2595 = vrot.slane %v2590, %v2594
    %v2597 = vpack.i.b16 %v2529, %v2529
    %v2599 = vlaneseq
    %v2600 = vshrl.u32 %v2599, 7
    %v2601 = vsub.s32 0, %v2600
    %v2602 = vrot.slane %v2597, %v2601
    %v2604 = vpack.i.b16 %v2530, %v2530
    %v2606 = vlaneseq
    %v2607 = vshrl.u32 %v2606, 7
    %v2608 = vsub.s32 0, %v2607
    %v2609 = vrot.slane %v2604, %v2608
    %v2611 = vpack.i.b16 %v2531, %v2531
    %v2613 = vlaneseq
    %v2614 = vshrl.u32 %v2613, 7
    %v2615 = vsub.s32 0, %v2614
    %v2616 = vrot.slane %v2611, %v2615
    %v2618 = vpack.i.b16 %v2532, %v2532
    %v2620 = vlaneseq
    %v2621 = vshrl.u32 %v2620, 7
    %v2622 = vsub.s32 0, %v2621
    %v2623 = vrot.slane %v2618, %v2622
    %v2624 = vmul.bf16 %v2576, %v2588
    %v2625 = vmul.bf16 %v2577, %v2595
    %v2626 = vmul.bf16 %v2578, %v2602
    %v2627 = vmul.bf16 %v2579, %v2609
    %v2628 = vmul.bf16 %v2580, %v2616
    %v2629 = vmul.bf16 %v2581, %v2623
    %v2631 = vpack.i.b16 %v2564, %v2564
    %v2633 = vlaneseq
    %v2634 = vshrl.u32 %v2633, 7
    %v2635 = vsub.s32 0, %v2634
    %v2636 = vrot.slane %v2631, %v2635
    %v2638 = vpack.i.b16 %v2565, %v2565
    %v2640 = vlaneseq
    %v2641 = vshrl.u32 %v2640, 7
    %v2642 = vsub.s32 0, %v2641
    %v2643 = vrot.slane %v2638, %v2642
    %v2645 = vpack.i.b16 %v2566, %v2566
    %v2647 = vlaneseq
    %v2648 = vshrl.u32 %v2647, 7
    %v2649 = vsub.s32 0, %v2648
    %v2650 = vrot.slane %v2645, %v2649
    %v2652 = vpack.i.b16 %v2567, %v2567
    %v2654 = vlaneseq
    %v2655 = vshrl.u32 %v2654, 7
    %v2656 = vsub.s32 0, %v2655
    %v2657 = vrot.slane %v2652, %v2656
    %v2659 = vpack.i.b16 %v2568, %v2568
    %v2661 = vlaneseq
    %v2662 = vshrl.u32 %v2661, 7
    %v2663 = vsub.s32 0, %v2662
    %v2664 = vrot.slane %v2659, %v2663
    %v2666 = vpack.i.b16 %v2569, %v2569
    %v2668 = vlaneseq
    %v2669 = vshrl.u32 %v2668, 7
    %v2670 = vsub.s32 0, %v2669
    %v2671 = vrot.slane %v2666, %v2670
    %v2672 = vadd.bf16 %v2624, %v2636
    %v2673 = vadd.bf16 %v2625, %v2643
    %v2674 = vadd.bf16 %v2626, %v2650
    %v2675 = vadd.bf16 %v2627, %v2657
    %v2676 = vadd.bf16 %v2628, %v2664
    %v2677 = vadd.bf16 %v2629, %v2671
    %v2678 = vmax.bf16 %v2672, 0
    %v2679 = vmax.bf16 %v2673, 0
    %v2680 = vmax.bf16 %v2674, 0
    %v2681 = vmax.bf16 %v2675, 0
    %v2682 = vmax.bf16 %v2676, 0
    %v2683 = vmax.bf16 %v2677, 0
    %v2684 = vld [vmem:[#allocation7] sm:$0xff]
    %v2685 = vld [vmem:[#allocation7 + $0x8] sm:$0xff]
    %v2686 = vld [vmem:[#allocation7 + $0x10] sm:$0xff]
    %v2687 = vld [vmem:[#allocation7 + $0x18] sm:$0xff]
    %v2688 = vld [vmem:[#allocation7 + $0x20] sm:$0xff]
    %v2689 = vld [vmem:[#allocation7 + $0x28] sm:$0xff]
    %v2690 = vld [vmem:[#allocation7 + $0x30] sm:$0xff]
    %v2691 = vld [vmem:[#allocation7 + $0x38] sm:$0xff]
    %v2692 = vld [vmem:[#allocation7 + $0x40] sm:$0xff]
    %v2693 = vld [vmem:[#allocation7 + $0x48] sm:$0xff]
    %v2694 = vld [vmem:[#allocation7 + $0x50] sm:$0xff]
    %v2695 = vld [vmem:[#allocation7 + $0x58] sm:$0xff]
    %v2696 = vld [vmem:[#allocation7 + $0x60] sm:$0xff]
    %v2697 = vld [vmem:[#allocation7 + $0x68] sm:$0xff]
    %v2698 = vld [vmem:[#allocation7 + $0x70] sm:$0xff]
    %v2699 = vld [vmem:[#allocation7 + $0x78] sm:$0xff]
    %v2700 = vld [vmem:[#allocation7 + $0x80] sm:$0xff]
    %v2701 = vld [vmem:[#allocation7 + $0x88] sm:$0xff]
    %v2702 = vld [vmem:[#allocation7 + $0x90] sm:$0xff]
    %v2703 = vld [vmem:[#allocation7 + $0x98] sm:$0xff]
    %v2704 = vld [vmem:[#allocation7 + $0xa0] sm:$0xff]
    %v2705 = vld [vmem:[#allocation7 + $0xa8] sm:$0xff]
    %v2706 = vld [vmem:[#allocation7 + $0xb0] sm:$0xff]
    %v2707 = vld [vmem:[#allocation7 + $0xb8] sm:$0xff]
    %v2708 = vld [vmem:[#allocation7 + $0xc0] sm:$0xff]
    %v2709 = vld [vmem:[#allocation7 + $0xc8] sm:$0xff]
    %v2710 = vld [vmem:[#allocation7 + $0xd0] sm:$0xff]
    %v2711 = vld [vmem:[#allocation7 + $0xd8] sm:$0xff]
    %v2712 = vld [vmem:[#allocation7 + $0xe0] sm:$0xff]
    %v2713 = vld [vmem:[#allocation7 + $0xe8] sm:$0xff]
    %v2714 = vld [vmem:[#allocation7 + $0xf0] sm:$0xff]
    %v2715 = vld [vmem:[#allocation7 + $0xf8] sm:$0xff]
    %v2716 = vld [vmem:[#allocation7 + $0x100] sm:$0xff]
    %v2717 = vld [vmem:[#allocation7 + $0x108] sm:$0xff]
    %v2718 = vld [vmem:[#allocation7 + $0x110] sm:$0xff]
    %v2719 = vld [vmem:[#allocation7 + $0x118] sm:$0xff]
    %v2720 = vld [vmem:[#allocation7 + $0x120] sm:$0xff]
    %v2721 = vld [vmem:[#allocation7 + $0x128] sm:$0xff]
    %v2722 = vld [vmem:[#allocation7 + $0x130] sm:$0xff]
    %v2723 = vld [vmem:[#allocation7 + $0x138] sm:$0xff]
    %v2724 = vld [vmem:[#allocation7 + $0x140] sm:$0xff]
    %v2725 = vld [vmem:[#allocation7 + $0x148] sm:$0xff]
    %v2726 = vld [vmem:[#allocation7 + $0x150] sm:$0xff]
    %v2727 = vld [vmem:[#allocation7 + $0x158] sm:$0xff]
    %v2728 = vld [vmem:[#allocation7 + $0x160] sm:$0xff]
    %v2729 = vld [vmem:[#allocation7 + $0x168] sm:$0xff]
    %v2730 = vld [vmem:[#allocation7 + $0x170] sm:$0xff]
    %v2731 = vld [vmem:[#allocation7 + $0x178] sm:$0xff]
    %v2732 = vld [vmem:[#allocation7 + $0x180] sm:$0xff]
    %v2733 = vld [vmem:[#allocation7 + $0x188] sm:$0xff]
    %v2734 = vld [vmem:[#allocation7 + $0x190] sm:$0xff]
    %v2735 = vld [vmem:[#allocation7 + $0x198] sm:$0xff]
    %v2736 = vld [vmem:[#allocation7 + $0x1a0] sm:$0xff]
    %v2737 = vld [vmem:[#allocation7 + $0x1a8] sm:$0xff]
    %v2738 = vld [vmem:[#allocation7 + $0x1b0] sm:$0xff]
    %v2739 = vld [vmem:[#allocation7 + $0x1b8] sm:$0xff]
    %v2740 = vld [vmem:[#allocation7 + $0x1c0] sm:$0xff]
    %v2741 = vld [vmem:[#allocation7 + $0x1c8] sm:$0xff]
    %v2742 = vld [vmem:[#allocation7 + $0x1d0] sm:$0xff]
    %v2743 = vld [vmem:[#allocation7 + $0x1d8] sm:$0xff]
    %v2744 = vld [vmem:[#allocation7 + $0x1e0] sm:$0xff]
    %v2745 = vld [vmem:[#allocation7 + $0x1e8] sm:$0xff]
    %v2746 = vld [vmem:[#allocation7 + $0x1f0] sm:$0xff]
    %v2747 = vld [vmem:[#allocation7 + $0x1f8] sm:$0xff]
    %v2748 = vld [vmem:[#allocation7 + $0x200] sm:$0xff]
    %v2749 = vld [vmem:[#allocation7 + $0x208] sm:$0xff]
    %v2750 = vld [vmem:[#allocation7 + $0x210] sm:$0xff]
    %v2751 = vld [vmem:[#allocation7 + $0x218] sm:$0xff]
    %v2752 = vld [vmem:[#allocation7 + $0x220] sm:$0xff]
    %v2753 = vld [vmem:[#allocation7 + $0x228] sm:$0xff]
    %v2754 = vld [vmem:[#allocation7 + $0x230] sm:$0xff]
    %v2755 = vld [vmem:[#allocation7 + $0x238] sm:$0xff]
    %v2756 = vld [vmem:[#allocation7 + $0x240] sm:$0xff]
    %v2757 = vld [vmem:[#allocation7 + $0x248] sm:$0xff]
    %v2758 = vld [vmem:[#allocation7 + $0x250] sm:$0xff]
    %v2759 = vld [vmem:[#allocation7 + $0x258] sm:$0xff]
    %v2760 = vld [vmem:[#allocation7 + $0x260] sm:$0xff]
    %v2761 = vld [vmem:[#allocation7 + $0x268] sm:$0xff]
    %v2762 = vld [vmem:[#allocation7 + $0x270] sm:$0xff]
    %v2763 = vld [vmem:[#allocation7 + $0x278] sm:$0xff]
    %v2764 = vld [vmem:[#allocation7 + $0x280] sm:$0xff]
    %v2765 = vld [vmem:[#allocation7 + $0x288] sm:$0xff]
    %v2766 = vld [vmem:[#allocation7 + $0x290] sm:$0xff]
    %v2767 = vld [vmem:[#allocation7 + $0x298] sm:$0xff]
    %v2768 = vld [vmem:[#allocation7 + $0x2a0] sm:$0xff]
    %v2769 = vld [vmem:[#allocation7 + $0x2a8] sm:$0xff]
    %v2770 = vld [vmem:[#allocation7 + $0x2b0] sm:$0xff]
    %v2771 = vld [vmem:[#allocation7 + $0x2b8] sm:$0xff]
    %v2772 = vld [vmem:[#allocation7 + $0x2c0] sm:$0xff]
    %v2773 = vld [vmem:[#allocation7 + $0x2c8] sm:$0xff]
    %v2774 = vld [vmem:[#allocation7 + $0x2d0] sm:$0xff]
    %v2775 = vld [vmem:[#allocation7 + $0x2d8] sm:$0xff]
    %v2776 = vld [vmem:[#allocation7 + $0x2e0] sm:$0xff]
    %v2777 = vld [vmem:[#allocation7 + $0x2e8] sm:$0xff]
    %v2778 = vld [vmem:[#allocation7 + $0x2f0] sm:$0xff]
    %v2779 = vld [vmem:[#allocation7 + $0x2f8] sm:$0xff]
    %v2780 = vld [vmem:[#allocation7 + $0x300] sm:$0xff]
    %v2781 = vld [vmem:[#allocation7 + $0x308] sm:$0xff]
    %v2782 = vld [vmem:[#allocation7 + $0x310] sm:$0xff]
    %v2783 = vld [vmem:[#allocation7 + $0x318] sm:$0xff]
    %v2784 = vld [vmem:[#allocation7 + $0x320] sm:$0xff]
    %v2785 = vld [vmem:[#allocation7 + $0x328] sm:$0xff]
    %v2786 = vld [vmem:[#allocation7 + $0x330] sm:$0xff]
    %v2787 = vld [vmem:[#allocation7 + $0x338] sm:$0xff]
    %v2788 = vld [vmem:[#allocation7 + $0x340] sm:$0xff]
    %v2789 = vld [vmem:[#allocation7 + $0x348] sm:$0xff]
    %v2790 = vld [vmem:[#allocation7 + $0x350] sm:$0xff]
    %v2791 = vld [vmem:[#allocation7 + $0x358] sm:$0xff]
    %v2792 = vld [vmem:[#allocation7 + $0x360] sm:$0xff]
    %v2793 = vld [vmem:[#allocation7 + $0x368] sm:$0xff]
    %v2794 = vld [vmem:[#allocation7 + $0x370] sm:$0xff]
    %v2795 = vld [vmem:[#allocation7 + $0x378] sm:$0xff]
    %v2796 = vld [vmem:[#allocation7 + $0x380] sm:$0xff]
    %v2797 = vld [vmem:[#allocation7 + $0x388] sm:$0xff]
    %v2798 = vld [vmem:[#allocation7 + $0x390] sm:$0xff]
    %v2799 = vld [vmem:[#allocation7 + $0x398] sm:$0xff]
    %v2800 = vld [vmem:[#allocation7 + $0x3a0] sm:$0xff]
    %v2801 = vld [vmem:[#allocation7 + $0x3a8] sm:$0xff]
    %v2802 = vld [vmem:[#allocation7 + $0x3b0] sm:$0xff]
    %v2803 = vld [vmem:[#allocation7 + $0x3b8] sm:$0xff]
    %v2804 = vld [vmem:[#allocation7 + $0x3c0] sm:$0xff]
    %v2805 = vld [vmem:[#allocation7 + $0x3c8] sm:$0xff]
    %v2806 = vld [vmem:[#allocation7 + $0x3d0] sm:$0xff]
    %v2807 = vld [vmem:[#allocation7 + $0x3d8] sm:$0xff]
    %v2808 = vld [vmem:[#allocation7 + $0x3e0] sm:$0xff]
    %v2809 = vld [vmem:[#allocation7 + $0x3e8] sm:$0xff]
    %v2810 = vld [vmem:[#allocation7 + $0x3f0] sm:$0xff]
    %v2811 = vld [vmem:[#allocation7 + $0x3f8] sm:$0xff]
    %v2812 = vld [vmem:[#allocation7 + $0x400] sm:$0xff]
    %v2813 = vld [vmem:[#allocation7 + $0x408] sm:$0xff]
    %v2814 = vld [vmem:[#allocation7 + $0x410] sm:$0xff]
    %v2815 = vld [vmem:[#allocation7 + $0x418] sm:$0xff]
    %v2816 = vld [vmem:[#allocation7 + $0x420] sm:$0xff]
    %v2817 = vld [vmem:[#allocation7 + $0x428] sm:$0xff]
    %v2818 = vld [vmem:[#allocation7 + $0x430] sm:$0xff]
    %v2819 = vld [vmem:[#allocation7 + $0x438] sm:$0xff]
    %v2820 = vld [vmem:[#allocation7 + $0x440] sm:$0xff]
    %v2821 = vld [vmem:[#allocation7 + $0x448] sm:$0xff]
    %v2822 = vld [vmem:[#allocation7 + $0x450] sm:$0xff]
    %v2823 = vld [vmem:[#allocation7 + $0x458] sm:$0xff]
    %v2824 = vld [vmem:[#allocation7 + $0x460] sm:$0xff]
    %v2825 = vld [vmem:[#allocation7 + $0x468] sm:$0xff]
    %v2826 = vld [vmem:[#allocation7 + $0x470] sm:$0xff]
    %v2827 = vld [vmem:[#allocation7 + $0x478] sm:$0xff]
    %v2828 = vld [vmem:[#allocation7 + $0x480] sm:$0xff]
    %v2829 = vld [vmem:[#allocation7 + $0x488] sm:$0xff]
    %v2830 = vld [vmem:[#allocation7 + $0x490] sm:$0xff]
    %v2831 = vld [vmem:[#allocation7 + $0x498] sm:$0xff]
    %v2832 = vld [vmem:[#allocation7 + $0x4a0] sm:$0xff]
    %v2833 = vld [vmem:[#allocation7 + $0x4a8] sm:$0xff]
    %v2834 = vld [vmem:[#allocation7 + $0x4b0] sm:$0xff]
    %v2835 = vld [vmem:[#allocation7 + $0x4b8] sm:$0xff]
    %v2836 = vld [vmem:[#allocation7 + $0x4c0] sm:$0xff]
    %v2837 = vld [vmem:[#allocation7 + $0x4c8] sm:$0xff]
    %v2838 = vld [vmem:[#allocation7 + $0x4d0] sm:$0xff]
    %v2839 = vld [vmem:[#allocation7 + $0x4d8] sm:$0xff]
    %v2840 = vld [vmem:[#allocation7 + $0x4e0] sm:$0xff]
    %v2841 = vld [vmem:[#allocation7 + $0x4e8] sm:$0xff]
    %v2842 = vld [vmem:[#allocation7 + $0x4f0] sm:$0xff]
    %v2843 = vld [vmem:[#allocation7 + $0x4f8] sm:$0xff]
    %v2844 = vld [vmem:[#allocation7 + $0x500] sm:$0xff]
    %v2845 = vld [vmem:[#allocation7 + $0x508] sm:$0xff]
    %v2846 = vld [vmem:[#allocation7 + $0x510] sm:$0xff]
    %v2847 = vld [vmem:[#allocation7 + $0x518] sm:$0xff]
    %v2848 = vld [vmem:[#allocation7 + $0x520] sm:$0xff]
    %v2849 = vld [vmem:[#allocation7 + $0x528] sm:$0xff]
    %v2850 = vld [vmem:[#allocation7 + $0x530] sm:$0xff]
    %v2851 = vld [vmem:[#allocation7 + $0x538] sm:$0xff]
    %v2852 = vld [vmem:[#allocation7 + $0x540] sm:$0xff]
    %v2853 = vld [vmem:[#allocation7 + $0x548] sm:$0xff]
    %v2854 = vld [vmem:[#allocation7 + $0x550] sm:$0xff]
    %v2855 = vld [vmem:[#allocation7 + $0x558] sm:$0xff]
    %v2856 = vld [vmem:[#allocation7 + $0x560] sm:$0xff]
    %v2857 = vld [vmem:[#allocation7 + $0x568] sm:$0xff]
    %v2858 = vld [vmem:[#allocation7 + $0x570] sm:$0xff]
    %v2859 = vld [vmem:[#allocation7 + $0x578] sm:$0xff]
    %v2860 = vld [vmem:[#allocation7 + $0x580] sm:$0xff]
    %v2861 = vld [vmem:[#allocation7 + $0x588] sm:$0xff]
    %v2862 = vld [vmem:[#allocation7 + $0x590] sm:$0xff]
    %v2863 = vld [vmem:[#allocation7 + $0x598] sm:$0xff]
    %v2864 = vld [vmem:[#allocation7 + $0x5a0] sm:$0xff]
    %v2865 = vld [vmem:[#allocation7 + $0x5a8] sm:$0xff]
    %v2866 = vld [vmem:[#allocation7 + $0x5b0] sm:$0xff]
    %v2867 = vld [vmem:[#allocation7 + $0x5b8] sm:$0xff]
    %v2868 = vld [vmem:[#allocation7 + $0x5c0] sm:$0xff]
    %v2869 = vld [vmem:[#allocation7 + $0x5c8] sm:$0xff]
    %v2870 = vld [vmem:[#allocation7 + $0x5d0] sm:$0xff]
    %v2871 = vld [vmem:[#allocation7 + $0x5d8] sm:$0xff]
    %v2872 = vld [vmem:[#allocation7 + $0x5e0] sm:$0xff]
    %v2873 = vld [vmem:[#allocation7 + $0x5e8] sm:$0xff]
    %v2874 = vld [vmem:[#allocation7 + $0x5f0] sm:$0xff]
    %v2875 = vld [vmem:[#allocation7 + $0x5f8] sm:$0xff]
    %v2876 = vld [vmem:[#allocation13 + $0x12] sm:$0xf]
    %v2878 = vlaneseq
    %v2879 = vshrl.u32 %v2878, 7
    %v2880 = vsub.s32 0, %v2879
    %v2881 = vrot.slane %v2876, %v2880
    %v2882 = vlaneseq
    %v2883 = vshrl.u32 %v2882, 7
    %v2884 = vsub.s32 1, %v2883
    %v2885 = vrot.slane %v2876, %v2884
    %v2886 = vlaneseq
    %v2887 = vshrl.u32 %v2886, 7
    %v2888 = vsub.s32 2, %v2887
    %v2889 = vrot.slane %v2876, %v2888
    %v2890 = vlaneseq
    %v2891 = vshrl.u32 %v2890, 7
    %v2892 = vsub.s32 3, %v2891
    %v2893 = vrot.slane %v2876, %v2892
    %v3090 = vunpack.c.l.b16 %v2684
    %v3091 = vunpack.c.h.b16 %v2684
    %v3092 = vunpack.c.l.b16 %v2685
    %v3093 = vunpack.c.h.b16 %v2685
    %v3094 = vunpack.c.l.b16 %v2686
    %v3095 = vunpack.c.h.b16 %v2686
    %v3096 = vunpack.c.l.b16 %v2687
    %v3097 = vunpack.c.h.b16 %v2687
    %v3098 = vunpack.c.l.b16 %v2688
    %v3099 = vunpack.c.h.b16 %v2688
    %v3100 = vunpack.c.l.b16 %v2689
    %v3101 = vunpack.c.h.b16 %v2689
    %v3102 = vunpack.c.l.b16 %v2690
    %v3103 = vunpack.c.h.b16 %v2690
    %v3104 = vunpack.c.l.b16 %v2691
    %v3105 = vunpack.c.h.b16 %v2691
    %v3106 = vunpack.c.l.b16 %v2692
    %v3107 = vunpack.c.h.b16 %v2692
    %v3108 = vunpack.c.l.b16 %v2693
    %v3109 = vunpack.c.h.b16 %v2693
    %v3110 = vunpack.c.l.b16 %v2694
    %v3111 = vunpack.c.h.b16 %v2694
    %v3112 = vunpack.c.l.b16 %v2695
    %v3113 = vunpack.c.h.b16 %v2695
    %v3114 = vunpack.c.l.b16 %v2696
    %v3115 = vunpack.c.h.b16 %v2696
    %v3116 = vunpack.c.l.b16 %v2697
    %v3117 = vunpack.c.h.b16 %v2697
    %v3118 = vunpack.c.l.b16 %v2698
    %v3119 = vunpack.c.h.b16 %v2698
    %v3120 = vunpack.c.l.b16 %v2699
    %v3121 = vunpack.c.h.b16 %v2699
    %v3122 = vunpack.c.l.b16 %v2700
    %v3123 = vunpack.c.h.b16 %v2700
    %v3124 = vunpack.c.l.b16 %v2701
    %v3125 = vunpack.c.h.b16 %v2701
    %v3126 = vunpack.c.l.b16 %v2702
    %v3127 = vunpack.c.h.b16 %v2702
    %v3128 = vunpack.c.l.b16 %v2703
    %v3129 = vunpack.c.h.b16 %v2703
    %v3130 = vunpack.c.l.b16 %v2704
    %v3131 = vunpack.c.h.b16 %v2704
    %v3132 = vunpack.c.l.b16 %v2705
    %v3133 = vunpack.c.h.b16 %v2705
    %v3134 = vunpack.c.l.b16 %v2706
    %v3135 = vunpack.c.h.b16 %v2706
    %v3136 = vunpack.c.l.b16 %v2707
    %v3137 = vunpack.c.h.b16 %v2707
    %v3138 = vunpack.c.l.b16 %v2708
    %v3139 = vunpack.c.h.b16 %v2708
    %v3140 = vunpack.c.l.b16 %v2709
    %v3141 = vunpack.c.h.b16 %v2709
    %v3142 = vunpack.c.l.b16 %v2710
    %v3143 = vunpack.c.h.b16 %v2710
    %v3144 = vunpack.c.l.b16 %v2711
    %v3145 = vunpack.c.h.b16 %v2711
    %v3146 = vunpack.c.l.b16 %v2712
    %v3147 = vunpack.c.h.b16 %v2712
    %v3148 = vunpack.c.l.b16 %v2713
    %v3149 = vunpack.c.h.b16 %v2713
    %v3150 = vunpack.c.l.b16 %v2714
    %v3151 = vunpack.c.h.b16 %v2714
    %v3152 = vunpack.c.l.b16 %v2715
    %v3153 = vunpack.c.h.b16 %v2715
    %v3154 = vunpack.c.l.b16 %v2716
    %v3155 = vunpack.c.h.b16 %v2716
    %v3156 = vunpack.c.l.b16 %v2717
    %v3157 = vunpack.c.h.b16 %v2717
    %v3158 = vunpack.c.l.b16 %v2718
    %v3159 = vunpack.c.h.b16 %v2718
    %v3160 = vunpack.c.l.b16 %v2719
    %v3161 = vunpack.c.h.b16 %v2719
    %v3162 = vunpack.c.l.b16 %v2720
    %v3163 = vunpack.c.h.b16 %v2720
    %v3164 = vunpack.c.l.b16 %v2721
    %v3165 = vunpack.c.h.b16 %v2721
    %v3166 = vunpack.c.l.b16 %v2722
    %v3167 = vunpack.c.h.b16 %v2722
    %v3168 = vunpack.c.l.b16 %v2723
    %v3169 = vunpack.c.h.b16 %v2723
    %v3170 = vunpack.c.l.b16 %v2724
    %v3171 = vunpack.c.h.b16 %v2724
    %v3172 = vunpack.c.l.b16 %v2725
    %v3173 = vunpack.c.h.b16 %v2725
    %v3174 = vunpack.c.l.b16 %v2726
    %v3175 = vunpack.c.h.b16 %v2726
    %v3176 = vunpack.c.l.b16 %v2727
    %v3177 = vunpack.c.h.b16 %v2727
    %v3178 = vunpack.c.l.b16 %v2728
    %v3179 = vunpack.c.h.b16 %v2728
    %v3180 = vunpack.c.l.b16 %v2729
    %v3181 = vunpack.c.h.b16 %v2729
    %v3182 = vunpack.c.l.b16 %v2730
    %v3183 = vunpack.c.h.b16 %v2730
    %v3184 = vunpack.c.l.b16 %v2731
    %v3185 = vunpack.c.h.b16 %v2731
    %v3186 = vunpack.c.l.b16 %v2732
    %v3187 = vunpack.c.h.b16 %v2732
    %v3188 = vunpack.c.l.b16 %v2733
    %v3189 = vunpack.c.h.b16 %v2733
    %v3190 = vunpack.c.l.b16 %v2734
    %v3191 = vunpack.c.h.b16 %v2734
    %v3192 = vunpack.c.l.b16 %v2735
    %v3193 = vunpack.c.h.b16 %v2735
    %v3194 = vunpack.c.l.b16 %v2736
    %v3195 = vunpack.c.h.b16 %v2736
    %v3196 = vunpack.c.l.b16 %v2737
    %v3197 = vunpack.c.h.b16 %v2737
    %v3198 = vunpack.c.l.b16 %v2738
    %v3199 = vunpack.c.h.b16 %v2738
    %v3200 = vunpack.c.l.b16 %v2739
    %v3201 = vunpack.c.h.b16 %v2739
    %v3202 = vunpack.c.l.b16 %v2740
    %v3203 = vunpack.c.h.b16 %v2740
    %v3204 = vunpack.c.l.b16 %v2741
    %v3205 = vunpack.c.h.b16 %v2741
    %v3206 = vunpack.c.l.b16 %v2742
    %v3207 = vunpack.c.h.b16 %v2742
    %v3208 = vunpack.c.l.b16 %v2743
    %v3209 = vunpack.c.h.b16 %v2743
    %v3210 = vunpack.c.l.b16 %v2744
    %v3211 = vunpack.c.h.b16 %v2744
    %v3212 = vunpack.c.l.b16 %v2745
    %v3213 = vunpack.c.h.b16 %v2745
    %v3214 = vunpack.c.l.b16 %v2746
    %v3215 = vunpack.c.h.b16 %v2746
    %v3216 = vunpack.c.l.b16 %v2747
    %v3217 = vunpack.c.h.b16 %v2747
    %v3218 = vunpack.c.l.b16 %v2748
    %v3219 = vunpack.c.h.b16 %v2748
    %v3220 = vunpack.c.l.b16 %v2749
    %v3221 = vunpack.c.h.b16 %v2749
    %v3222 = vunpack.c.l.b16 %v2750
    %v3223 = vunpack.c.h.b16 %v2750
    %v3224 = vunpack.c.l.b16 %v2751
    %v3225 = vunpack.c.h.b16 %v2751
    %v3226 = vunpack.c.l.b16 %v2752
    %v3227 = vunpack.c.h.b16 %v2752
    %v3228 = vunpack.c.l.b16 %v2753
    %v3229 = vunpack.c.h.b16 %v2753
    %v3230 = vunpack.c.l.b16 %v2754
    %v3231 = vunpack.c.h.b16 %v2754
    %v3232 = vunpack.c.l.b16 %v2755
    %v3233 = vunpack.c.h.b16 %v2755
    %v3234 = vunpack.c.l.b16 %v2756
    %v3235 = vunpack.c.h.b16 %v2756
    %v3236 = vunpack.c.l.b16 %v2757
    %v3237 = vunpack.c.h.b16 %v2757
    %v3238 = vunpack.c.l.b16 %v2758
    %v3239 = vunpack.c.h.b16 %v2758
    %v3240 = vunpack.c.l.b16 %v2759
    %v3241 = vunpack.c.h.b16 %v2759
    %v3242 = vunpack.c.l.b16 %v2760
    %v3243 = vunpack.c.h.b16 %v2760
    %v3244 = vunpack.c.l.b16 %v2761
    %v3245 = vunpack.c.h.b16 %v2761
    %v3246 = vunpack.c.l.b16 %v2762
    %v3247 = vunpack.c.h.b16 %v2762
    %v3248 = vunpack.c.l.b16 %v2763
    %v3249 = vunpack.c.h.b16 %v2763
    %v3250 = vunpack.c.l.b16 %v2764
    %v3251 = vunpack.c.h.b16 %v2764
    %v3252 = vunpack.c.l.b16 %v2765
    %v3253 = vunpack.c.h.b16 %v2765
    %v3254 = vunpack.c.l.b16 %v2766
    %v3255 = vunpack.c.h.b16 %v2766
    %v3256 = vunpack.c.l.b16 %v2767
    %v3257 = vunpack.c.h.b16 %v2767
    %v3258 = vunpack.c.l.b16 %v2768
    %v3259 = vunpack.c.h.b16 %v2768
    %v3260 = vunpack.c.l.b16 %v2769
    %v3261 = vunpack.c.h.b16 %v2769
    %v3262 = vunpack.c.l.b16 %v2770
    %v3263 = vunpack.c.h.b16 %v2770
    %v3264 = vunpack.c.l.b16 %v2771
    %v3265 = vunpack.c.h.b16 %v2771
    %v3266 = vunpack.c.l.b16 %v2772
    %v3267 = vunpack.c.h.b16 %v2772
    %v3268 = vunpack.c.l.b16 %v2773
    %v3269 = vunpack.c.h.b16 %v2773
    %v3270 = vunpack.c.l.b16 %v2774
    %v3271 = vunpack.c.h.b16 %v2774
    %v3272 = vunpack.c.l.b16 %v2775
    %v3273 = vunpack.c.h.b16 %v2775
    %v3274 = vunpack.c.l.b16 %v2776
    %v3275 = vunpack.c.h.b16 %v2776
    %v3276 = vunpack.c.l.b16 %v2777
    %v3277 = vunpack.c.h.b16 %v2777
    %v3278 = vunpack.c.l.b16 %v2778
    %v3279 = vunpack.c.h.b16 %v2778
    %v3280 = vunpack.c.l.b16 %v2779
    %v3281 = vunpack.c.h.b16 %v2779
    %v3282 = vunpack.c.l.b16 %v2780
    %v3283 = vunpack.c.h.b16 %v2780
    %v3284 = vunpack.c.l.b16 %v2781
    %v3285 = vunpack.c.h.b16 %v2781
    %v3286 = vunpack.c.l.b16 %v2782
    %v3287 = vunpack.c.h.b16 %v2782
    %v3288 = vunpack.c.l.b16 %v2783
    %v3289 = vunpack.c.h.b16 %v2783
    %v3290 = vunpack.c.l.b16 %v2784
    %v3291 = vunpack.c.h.b16 %v2784
    %v3292 = vunpack.c.l.b16 %v2785
    %v3293 = vunpack.c.h.b16 %v2785
    %v3294 = vunpack.c.l.b16 %v2786
    %v3295 = vunpack.c.h.b16 %v2786
    %v3296 = vunpack.c.l.b16 %v2787
    %v3297 = vunpack.c.h.b16 %v2787
    %v3298 = vunpack.c.l.b16 %v2788
    %v3299 = vunpack.c.h.b16 %v2788
    %v3300 = vunpack.c.l.b16 %v2789
    %v3301 = vunpack.c.h.b16 %v2789
    %v3302 = vunpack.c.l.b16 %v2790
    %v3303 = vunpack.c.h.b16 %v2790
    %v3304 = vunpack.c.l.b16 %v2791
    %v3305 = vunpack.c.h.b16 %v2791
    %v3306 = vunpack.c.l.b16 %v2792
    %v3307 = vunpack.c.h.b16 %v2792
    %v3308 = vunpack.c.l.b16 %v2793
    %v3309 = vunpack.c.h.b16 %v2793
    %v3310 = vunpack.c.l.b16 %v2794
    %v3311 = vunpack.c.h.b16 %v2794
    %v3312 = vunpack.c.l.b16 %v2795
    %v3313 = vunpack.c.h.b16 %v2795
    %v3314 = vunpack.c.l.b16 %v2796
    %v3315 = vunpack.c.h.b16 %v2796
    %v3316 = vunpack.c.l.b16 %v2797
    %v3317 = vunpack.c.h.b16 %v2797
    %v3318 = vunpack.c.l.b16 %v2798
    %v3319 = vunpack.c.h.b16 %v2798
    %v3320 = vunpack.c.l.b16 %v2799
    %v3321 = vunpack.c.h.b16 %v2799
    %v3322 = vunpack.c.l.b16 %v2800
    %v3323 = vunpack.c.h.b16 %v2800
    %v3324 = vunpack.c.l.b16 %v2801
    %v3325 = vunpack.c.h.b16 %v2801
    %v3326 = vunpack.c.l.b16 %v2802
    %v3327 = vunpack.c.h.b16 %v2802
    %v3328 = vunpack.c.l.b16 %v2803
    %v3329 = vunpack.c.h.b16 %v2803
    %v3330 = vunpack.c.l.b16 %v2804
    %v3331 = vunpack.c.h.b16 %v2804
    %v3332 = vunpack.c.l.b16 %v2805
    %v3333 = vunpack.c.h.b16 %v2805
    %v3334 = vunpack.c.l.b16 %v2806
    %v3335 = vunpack.c.h.b16 %v2806
    %v3336 = vunpack.c.l.b16 %v2807
    %v3337 = vunpack.c.h.b16 %v2807
    %v3338 = vunpack.c.l.b16 %v2808
    %v3339 = vunpack.c.h.b16 %v2808
    %v3340 = vunpack.c.l.b16 %v2809
    %v3341 = vunpack.c.h.b16 %v2809
    %v3342 = vunpack.c.l.b16 %v2810
    %v3343 = vunpack.c.h.b16 %v2810
    %v3344 = vunpack.c.l.b16 %v2811
    %v3345 = vunpack.c.h.b16 %v2811
    %v3346 = vunpack.c.l.b16 %v2812
    %v3347 = vunpack.c.h.b16 %v2812
    %v3348 = vunpack.c.l.b16 %v2813
    %v3349 = vunpack.c.h.b16 %v2813
    %v3350 = vunpack.c.l.b16 %v2814
    %v3351 = vunpack.c.h.b16 %v2814
    %v3352 = vunpack.c.l.b16 %v2815
    %v3353 = vunpack.c.h.b16 %v2815
    %v3354 = vunpack.c.l.b16 %v2816
    %v3355 = vunpack.c.h.b16 %v2816
    %v3356 = vunpack.c.l.b16 %v2817
    %v3357 = vunpack.c.h.b16 %v2817
    %v3358 = vunpack.c.l.b16 %v2818
    %v3359 = vunpack.c.h.b16 %v2818
    %v3360 = vunpack.c.l.b16 %v2819
    %v3361 = vunpack.c.h.b16 %v2819
    %v3362 = vunpack.c.l.b16 %v2820
    %v3363 = vunpack.c.h.b16 %v2820
    %v3364 = vunpack.c.l.b16 %v2821
    %v3365 = vunpack.c.h.b16 %v2821
    %v3366 = vunpack.c.l.b16 %v2822
    %v3367 = vunpack.c.h.b16 %v2822
    %v3368 = vunpack.c.l.b16 %v2823
    %v3369 = vunpack.c.h.b16 %v2823
    %v3370 = vunpack.c.l.b16 %v2824
    %v3371 = vunpack.c.h.b16 %v2824
    %v3372 = vunpack.c.l.b16 %v2825
    %v3373 = vunpack.c.h.b16 %v2825
    %v3374 = vunpack.c.l.b16 %v2826
    %v3375 = vunpack.c.h.b16 %v2826
    %v3376 = vunpack.c.l.b16 %v2827
    %v3377 = vunpack.c.h.b16 %v2827
    %v3378 = vunpack.c.l.b16 %v2828
    %v3379 = vunpack.c.h.b16 %v2828
    %v3380 = vunpack.c.l.b16 %v2829
    %v3381 = vunpack.c.h.b16 %v2829
    %v3382 = vunpack.c.l.b16 %v2830
    %v3383 = vunpack.c.h.b16 %v2830
    %v3384 = vunpack.c.l.b16 %v2831
    %v3385 = vunpack.c.h.b16 %v2831
    %v3386 = vunpack.c.l.b16 %v2832
    %v3387 = vunpack.c.h.b16 %v2832
    %v3388 = vunpack.c.l.b16 %v2833
    %v3389 = vunpack.c.h.b16 %v2833
    %v3390 = vunpack.c.l.b16 %v2834
    %v3391 = vunpack.c.h.b16 %v2834
    %v3392 = vunpack.c.l.b16 %v2835
    %v3393 = vunpack.c.h.b16 %v2835
    %v3394 = vunpack.c.l.b16 %v2836
    %v3395 = vunpack.c.h.b16 %v2836
    %v3396 = vunpack.c.l.b16 %v2837
    %v3397 = vunpack.c.h.b16 %v2837
    %v3398 = vunpack.c.l.b16 %v2838
    %v3399 = vunpack.c.h.b16 %v2838
    %v3400 = vunpack.c.l.b16 %v2839
    %v3401 = vunpack.c.h.b16 %v2839
    %v3402 = vunpack.c.l.b16 %v2840
    %v3403 = vunpack.c.h.b16 %v2840
    %v3404 = vunpack.c.l.b16 %v2841
    %v3405 = vunpack.c.h.b16 %v2841
    %v3406 = vunpack.c.l.b16 %v2842
    %v3407 = vunpack.c.h.b16 %v2842
    %v3408 = vunpack.c.l.b16 %v2843
    %v3409 = vunpack.c.h.b16 %v2843
    %v3410 = vunpack.c.l.b16 %v2844
    %v3411 = vunpack.c.h.b16 %v2844
    %v3412 = vunpack.c.l.b16 %v2845
    %v3413 = vunpack.c.h.b16 %v2845
    %v3414 = vunpack.c.l.b16 %v2846
    %v3415 = vunpack.c.h.b16 %v2846
    %v3416 = vunpack.c.l.b16 %v2847
    %v3417 = vunpack.c.h.b16 %v2847
    %v3418 = vunpack.c.l.b16 %v2848
    %v3419 = vunpack.c.h.b16 %v2848
    %v3420 = vunpack.c.l.b16 %v2849
    %v3421 = vunpack.c.h.b16 %v2849
    %v3422 = vunpack.c.l.b16 %v2850
    %v3423 = vunpack.c.h.b16 %v2850
    %v3424 = vunpack.c.l.b16 %v2851
    %v3425 = vunpack.c.h.b16 %v2851
    %v3426 = vunpack.c.l.b16 %v2852
    %v3427 = vunpack.c.h.b16 %v2852
    %v3428 = vunpack.c.l.b16 %v2853
    %v3429 = vunpack.c.h.b16 %v2853
    %v3430 = vunpack.c.l.b16 %v2854
    %v3431 = vunpack.c.h.b16 %v2854
    %v3432 = vunpack.c.l.b16 %v2855
    %v3433 = vunpack.c.h.b16 %v2855
    %v3434 = vunpack.c.l.b16 %v2856
    %v3435 = vunpack.c.h.b16 %v2856
    %v3436 = vunpack.c.l.b16 %v2857
    %v3437 = vunpack.c.h.b16 %v2857
    %v3438 = vunpack.c.l.b16 %v2858
    %v3439 = vunpack.c.h.b16 %v2858
    %v3440 = vunpack.c.l.b16 %v2859
    %v3441 = vunpack.c.h.b16 %v2859
    %v3442 = vunpack.c.l.b16 %v2860
    %v3443 = vunpack.c.h.b16 %v2860
    %v3444 = vunpack.c.l.b16 %v2861
    %v3445 = vunpack.c.h.b16 %v2861
    %v3446 = vunpack.c.l.b16 %v2862
    %v3447 = vunpack.c.h.b16 %v2862
    %v3448 = vunpack.c.l.b16 %v2863
    %v3449 = vunpack.c.h.b16 %v2863
    %v3450 = vunpack.c.l.b16 %v2864
    %v3451 = vunpack.c.h.b16 %v2864
    %v3452 = vunpack.c.l.b16 %v2865
    %v3453 = vunpack.c.h.b16 %v2865
    %v3454 = vunpack.c.l.b16 %v2866
    %v3455 = vunpack.c.h.b16 %v2866
    %v3456 = vunpack.c.l.b16 %v2867
    %v3457 = vunpack.c.h.b16 %v2867
    %v3458 = vunpack.c.l.b16 %v2868
    %v3459 = vunpack.c.h.b16 %v2868
    %v3460 = vunpack.c.l.b16 %v2869
    %v3461 = vunpack.c.h.b16 %v2869
    %v3462 = vunpack.c.l.b16 %v2870
    %v3463 = vunpack.c.h.b16 %v2870
    %v3464 = vunpack.c.l.b16 %v2871
    %v3465 = vunpack.c.h.b16 %v2871
    %v3466 = vunpack.c.l.b16 %v2872
    %v3467 = vunpack.c.h.b16 %v2872
    %v3468 = vunpack.c.l.b16 %v2873
    %v3469 = vunpack.c.h.b16 %v2873
    %v3470 = vunpack.c.l.b16 %v2874
    %v3471 = vunpack.c.h.b16 %v2874
    %v3472 = vunpack.c.l.b16 %v2875
    %v3473 = vunpack.c.h.b16 %v2875
    %v3474 = vpack.c.b16 %v3094, %v3090
    %v3475 = vpack.c.b16 %v3095, %v3091
    %v3476 = vpack.c.b16 %v3096, %v3092
    %v3477 = vpack.c.b16 %v3097, %v3093
    %v3478 = vpack.c.b16 %v3102, %v3098
    %v3479 = vpack.c.b16 %v3103, %v3099
    %v3480 = vpack.c.b16 %v3104, %v3100
    %v3481 = vpack.c.b16 %v3105, %v3101
    %v3482 = vpack.c.b16 %v3110, %v3106
    %v3483 = vpack.c.b16 %v3111, %v3107
    %v3484 = vpack.c.b16 %v3112, %v3108
    %v3485 = vpack.c.b16 %v3113, %v3109
    %v3486 = vpack.c.b16 %v3118, %v3114
    %v3487 = vpack.c.b16 %v3119, %v3115
    %v3488 = vpack.c.b16 %v3120, %v3116
    %v3489 = vpack.c.b16 %v3121, %v3117
    %v3490 = vpack.c.b16 %v3126, %v3122
    %v3491 = vpack.c.b16 %v3127, %v3123
    %v3492 = vpack.c.b16 %v3128, %v3124
    %v3493 = vpack.c.b16 %v3129, %v3125
    %v3494 = vpack.c.b16 %v3134, %v3130
    %v3495 = vpack.c.b16 %v3135, %v3131
    %v3496 = vpack.c.b16 %v3136, %v3132
    %v3497 = vpack.c.b16 %v3137, %v3133
    %v3498 = vpack.c.b16 %v3142, %v3138
    %v3499 = vpack.c.b16 %v3143, %v3139
    %v3500 = vpack.c.b16 %v3144, %v3140
    %v3501 = vpack.c.b16 %v3145, %v3141
    %v3502 = vpack.c.b16 %v3150, %v3146
    %v3503 = vpack.c.b16 %v3151, %v3147
    %v3504 = vpack.c.b16 %v3152, %v3148
    %v3505 = vpack.c.b16 %v3153, %v3149
    %v3506 = vpack.c.b16 %v3158, %v3154
    %v3507 = vpack.c.b16 %v3159, %v3155
    %v3508 = vpack.c.b16 %v3160, %v3156
    %v3509 = vpack.c.b16 %v3161, %v3157
    %v3510 = vpack.c.b16 %v3166, %v3162
    %v3511 = vpack.c.b16 %v3167, %v3163
    %v3512 = vpack.c.b16 %v3168, %v3164
    %v3513 = vpack.c.b16 %v3169, %v3165
    %v3514 = vpack.c.b16 %v3174, %v3170
    %v3515 = vpack.c.b16 %v3175, %v3171
    %v3516 = vpack.c.b16 %v3176, %v3172
    %v3517 = vpack.c.b16 %v3177, %v3173
    %v3518 = vpack.c.b16 %v3182, %v3178
    %v3519 = vpack.c.b16 %v3183, %v3179
    %v3520 = vpack.c.b16 %v3184, %v3180
    %v3521 = vpack.c.b16 %v3185, %v3181
    %v3522 = vpack.c.b16 %v3190, %v3186
    %v3523 = vpack.c.b16 %v3191, %v3187
    %v3524 = vpack.c.b16 %v3192, %v3188
    %v3525 = vpack.c.b16 %v3193, %v3189
    %v3526 = vpack.c.b16 %v3198, %v3194
    %v3527 = vpack.c.b16 %v3199, %v3195
    %v3528 = vpack.c.b16 %v3200, %v3196
    %v3529 = vpack.c.b16 %v3201, %v3197
    %v3530 = vpack.c.b16 %v3206, %v3202
    %v3531 = vpack.c.b16 %v3207, %v3203
    %v3532 = vpack.c.b16 %v3208, %v3204
    %v3533 = vpack.c.b16 %v3209, %v3205
    %v3534 = vpack.c.b16 %v3214, %v3210
    %v3535 = vpack.c.b16 %v3215, %v3211
    %v3536 = vpack.c.b16 %v3216, %v3212
    %v3537 = vpack.c.b16 %v3217, %v3213
    %v3538 = vpack.c.b16 %v3222, %v3218
    %v3539 = vpack.c.b16 %v3223, %v3219
    %v3540 = vpack.c.b16 %v3224, %v3220
    %v3541 = vpack.c.b16 %v3225, %v3221
    %v3542 = vpack.c.b16 %v3230, %v3226
    %v3543 = vpack.c.b16 %v3231, %v3227
    %v3544 = vpack.c.b16 %v3232, %v3228
    %v3545 = vpack.c.b16 %v3233, %v3229
    %v3546 = vpack.c.b16 %v3238, %v3234
    %v3547 = vpack.c.b16 %v3239, %v3235
    %v3548 = vpack.c.b16 %v3240, %v3236
    %v3549 = vpack.c.b16 %v3241, %v3237
    %v3550 = vpack.c.b16 %v3246, %v3242
    %v3551 = vpack.c.b16 %v3247, %v3243
    %v3552 = vpack.c.b16 %v3248, %v3244
    %v3553 = vpack.c.b16 %v3249, %v3245
    %v3554 = vpack.c.b16 %v3254, %v3250
    %v3555 = vpack.c.b16 %v3255, %v3251
    %v3556 = vpack.c.b16 %v3256, %v3252
    %v3557 = vpack.c.b16 %v3257, %v3253
    %v3558 = vpack.c.b16 %v3262, %v3258
    %v3559 = vpack.c.b16 %v3263, %v3259
    %v3560 = vpack.c.b16 %v3264, %v3260
    %v3561 = vpack.c.b16 %v3265, %v3261
    %v3562 = vpack.c.b16 %v3270, %v3266
    %v3563 = vpack.c.b16 %v3271, %v3267
    %v3564 = vpack.c.b16 %v3272, %v3268
    %v3565 = vpack.c.b16 %v3273, %v3269
    %v3566 = vpack.c.b16 %v3278, %v3274
    %v3567 = vpack.c.b16 %v3279, %v3275
    %v3568 = vpack.c.b16 %v3280, %v3276
    %v3569 = vpack.c.b16 %v3281, %v3277
    %v3570 = vpack.c.b16 %v3286, %v3282
    %v3571 = vpack.c.b16 %v3287, %v3283
    %v3572 = vpack.c.b16 %v3288, %v3284
    %v3573 = vpack.c.b16 %v3289, %v3285
    %v3574 = vpack.c.b16 %v3294, %v3290
    %v3575 = vpack.c.b16 %v3295, %v3291
    %v3576 = vpack.c.b16 %v3296, %v3292
    %v3577 = vpack.c.b16 %v3297, %v3293
    %v3578 = vpack.c.b16 %v3302, %v3298
    %v3579 = vpack.c.b16 %v3303, %v3299
    %v3580 = vpack.c.b16 %v3304, %v3300
    %v3581 = vpack.c.b16 %v3305, %v3301
    %v3582 = vpack.c.b16 %v3310, %v3306
    %v3583 = vpack.c.b16 %v3311, %v3307
    %v3584 = vpack.c.b16 %v3312, %v3308
    %v3585 = vpack.c.b16 %v3313, %v3309
    %v3586 = vpack.c.b16 %v3318, %v3314
    %v3587 = vpack.c.b16 %v3319, %v3315
    %v3588 = vpack.c.b16 %v3320, %v3316
    %v3589 = vpack.c.b16 %v3321, %v3317
    %v3590 = vpack.c.b16 %v3326, %v3322
    %v3591 = vpack.c.b16 %v3327, %v3323
    %v3592 = vpack.c.b16 %v3328, %v3324
    %v3593 = vpack.c.b16 %v3329, %v3325
    %v3594 = vpack.c.b16 %v3334, %v3330
    %v3595 = vpack.c.b16 %v3335, %v3331
    %v3596 = vpack.c.b16 %v3336, %v3332
    %v3597 = vpack.c.b16 %v3337, %v3333
    %v3598 = vpack.c.b16 %v3342, %v3338
    %v3599 = vpack.c.b16 %v3343, %v3339
    %v3600 = vpack.c.b16 %v3344, %v3340
    %v3601 = vpack.c.b16 %v3345, %v3341
    %v3602 = vpack.c.b16 %v3350, %v3346
    %v3603 = vpack.c.b16 %v3351, %v3347
    %v3604 = vpack.c.b16 %v3352, %v3348
    %v3605 = vpack.c.b16 %v3353, %v3349
    %v3606 = vpack.c.b16 %v3358, %v3354
    %v3607 = vpack.c.b16 %v3359, %v3355
    %v3608 = vpack.c.b16 %v3360, %v3356
    %v3609 = vpack.c.b16 %v3361, %v3357
    %v3610 = vpack.c.b16 %v3366, %v3362
    %v3611 = vpack.c.b16 %v3367, %v3363
    %v3612 = vpack.c.b16 %v3368, %v3364
    %v3613 = vpack.c.b16 %v3369, %v3365
    %v3614 = vpack.c.b16 %v3374, %v3370
    %v3615 = vpack.c.b16 %v3375, %v3371
    %v3616 = vpack.c.b16 %v3376, %v3372
    %v3617 = vpack.c.b16 %v3377, %v3373
    %v3618 = vpack.c.b16 %v3382, %v3378
    %v3619 = vpack.c.b16 %v3383, %v3379
    %v3620 = vpack.c.b16 %v3384, %v3380
    %v3621 = vpack.c.b16 %v3385, %v3381
    %v3622 = vpack.c.b16 %v3390, %v3386
    %v3623 = vpack.c.b16 %v3391, %v3387
    %v3624 = vpack.c.b16 %v3392, %v3388
    %v3625 = vpack.c.b16 %v3393, %v3389
    %v3626 = vpack.c.b16 %v3398, %v3394
    %v3627 = vpack.c.b16 %v3399, %v3395
    %v3628 = vpack.c.b16 %v3400, %v3396
    %v3629 = vpack.c.b16 %v3401, %v3397
    %v3630 = vpack.c.b16 %v3406, %v3402
    %v3631 = vpack.c.b16 %v3407, %v3403
    %v3632 = vpack.c.b16 %v3408, %v3404
    %v3633 = vpack.c.b16 %v3409, %v3405
    %v3634 = vpack.c.b16 %v3414, %v3410
    %v3635 = vpack.c.b16 %v3415, %v3411
    %v3636 = vpack.c.b16 %v3416, %v3412
    %v3637 = vpack.c.b16 %v3417, %v3413
    %v3638 = vpack.c.b16 %v3422, %v3418
    %v3639 = vpack.c.b16 %v3423, %v3419
    %v3640 = vpack.c.b16 %v3424, %v3420
    %v3641 = vpack.c.b16 %v3425, %v3421
    %v3642 = vpack.c.b16 %v3430, %v3426
    %v3643 = vpack.c.b16 %v3431, %v3427
    %v3644 = vpack.c.b16 %v3432, %v3428
    %v3645 = vpack.c.b16 %v3433, %v3429
    %v3646 = vpack.c.b16 %v3438, %v3434
    %v3647 = vpack.c.b16 %v3439, %v3435
    %v3648 = vpack.c.b16 %v3440, %v3436
    %v3649 = vpack.c.b16 %v3441, %v3437
    %v3650 = vpack.c.b16 %v3446, %v3442
    %v3651 = vpack.c.b16 %v3447, %v3443
    %v3652 = vpack.c.b16 %v3448, %v3444
    %v3653 = vpack.c.b16 %v3449, %v3445
    %v3654 = vpack.c.b16 %v3454, %v3450
    %v3655 = vpack.c.b16 %v3455, %v3451
    %v3656 = vpack.c.b16 %v3456, %v3452
    %v3657 = vpack.c.b16 %v3457, %v3453
    %v3658 = vpack.c.b16 %v3462, %v3458
    %v3659 = vpack.c.b16 %v3463, %v3459
    %v3660 = vpack.c.b16 %v3464, %v3460
    %v3661 = vpack.c.b16 %v3465, %v3461
    %v3662 = vpack.c.b16 %v3470, %v3466
    %v3663 = vpack.c.b16 %v3471, %v3467
    %v3664 = vpack.c.b16 %v3472, %v3468
    %v3665 = vpack.c.b16 %v3473, %v3469
    %3858 = vmatprep.subr.bf16.mxu0 %v3475
    %3859 = vmatpush1.bf16.msra.mxu0 %v3474
    %3860 = vmatprep.subr.bf16.mxu0 %v3479
    %3861 = vmatpush1.bf16.msra.mxu0 %v3478
    %3862 = vmatprep.subr.bf16.mxu0 %v3483
    %3863 = vmatpush1.bf16.msra.mxu0 %v3482
    %3864 = vmatprep.subr.bf16.mxu0 %v3487
    %3865 = vmatpush1.bf16.msra.mxu0 %v3486
    %3866 = vmatprep.subr.bf16.mxu0 %v3491
    %3867 = vmatpush1.bf16.msra.mxu0 %v3490
    %3868 = vmatprep.subr.bf16.mxu0 %v3495
    %3869 = vmatpush1.bf16.msra.mxu0 %v3494
    %3870 = vmatprep.subr.bf16.mxu0 %v3499
    %3871 = vmatpush1.bf16.msra.mxu0 %v3498
    %3872 = vmatprep.subr.bf16.mxu0 %v3503
    %3873 = vmatpush1.bf16.msra.mxu0 %v3502
    %3874 = vmatprep.subr.bf16.mxu0 %v3507
    %3875 = vmatpush1.bf16.msra.mxu0 %v3506
    %3876 = vmatprep.subr.bf16.mxu0 %v3511
    %3877 = vmatpush1.bf16.msra.mxu0 %v3510
    %3878 = vmatprep.subr.bf16.mxu0 %v3515
    %3879 = vmatpush1.bf16.msra.mxu0 %v3514
    %3880 = vmatprep.subr.bf16.mxu0 %v3519
    %3881 = vmatpush1.bf16.msra.mxu0 %v3518
    %3882 = vmatprep.subr.bf16.mxu0 %v3523
    %3883 = vmatpush1.bf16.msra.mxu0 %v3522
    %3884 = vmatprep.subr.bf16.mxu0 %v3527
    %3885 = vmatpush1.bf16.msra.mxu0 %v3526
    %3886 = vmatprep.subr.bf16.mxu0 %v3531
    %3887 = vmatpush1.bf16.msra.mxu0 %v3530
    %3888 = vmatprep.subr.bf16.mxu0 %v3535
    %3889 = vmatpush1.bf16.msra.mxu0 %v3534
    %3890 = vmatprep.mubr.bf16.mxu0 %v2679
    %3891 = vmatmul.mubr.bf16.gmra.mrb[0].mxu0 %v2678
    %v3892 = vpop.f32.mrb[0].mxu0
    %v3893 = vadd.f32 %v2881, %v3892
    %v3894 = vpop.f32.mrb[0].mxu0
    %v3895 = vadd.f32 %v2885, %v3894
    %v3896 = vpop.f32.mrb[0].mxu0
    %v3897 = vpop.f32.mrb[0].mxu0
    %3898 = vdwg.mxu0
    %3899 = vmatprep.subr.bf16.mxu0 %v3539
    %3900 = vmatpush1.bf16.msra.mxu0 %v3538
    %3901 = vmatprep.subr.bf16.mxu0 %v3543
    %3902 = vmatpush1.bf16.msra.mxu0 %v3542
    %3903 = vmatprep.subr.bf16.mxu0 %v3547
    %3904 = vmatpush1.bf16.msra.mxu0 %v3546
    %3905 = vmatprep.subr.bf16.mxu0 %v3551
    %3906 = vmatpush1.bf16.msra.mxu0 %v3550
    %3907 = vmatprep.subr.bf16.mxu0 %v3555
    %3908 = vmatpush1.bf16.msra.mxu0 %v3554
    %3909 = vmatprep.subr.bf16.mxu0 %v3559
    %3910 = vmatpush1.bf16.msra.mxu0 %v3558
    %3911 = vmatprep.subr.bf16.mxu0 %v3563
    %3912 = vmatpush1.bf16.msra.mxu0 %v3562
    %3913 = vmatprep.subr.bf16.mxu0 %v3567
    %3914 = vmatpush1.bf16.msra.mxu0 %v3566
    %3915 = vmatprep.subr.bf16.mxu0 %v3571
    %3916 = vmatpush1.bf16.msra.mxu0 %v3570
    %3917 = vmatprep.subr.bf16.mxu0 %v3575
    %3918 = vmatpush1.bf16.msra.mxu0 %v3574
    %3919 = vmatprep.subr.bf16.mxu0 %v3579
    %3920 = vmatpush1.bf16.msra.mxu0 %v3578
    %3921 = vmatprep.subr.bf16.mxu0 %v3583
    %3922 = vmatpush1.bf16.msra.mxu0 %v3582
    %3923 = vmatprep.subr.bf16.mxu0 %v3587
    %3924 = vmatpush1.bf16.msra.mxu0 %v3586
    %3925 = vmatprep.subr.bf16.mxu0 %v3591
    %3926 = vmatpush1.bf16.msra.mxu0 %v3590
    %3927 = vmatprep.subr.bf16.mxu0 %v3595
    %3928 = vmatpush1.bf16.msra.mxu0 %v3594
    %3929 = vmatprep.subr.bf16.mxu0 %v3599
    %3930 = vmatpush1.bf16.msra.mxu0 %v3598
    %3931 = vmatprep.mubr.bf16.mxu0 %v2681
    %3932 = vmatmul.mubr.bf16.gmra.mrb[0].mxu0 %v2680
    %v3933 = vpop.f32.mrb[0].mxu0
    %v3934 = vadd.f32 %v3893, %v3933
    %v3935 = vpop.f32.mrb[0].mxu0
    %v3936 = vadd.f32 %v3895, %v3935
    %v3937 = vpop.f32.mrb[0].mxu0
    %v3938 = vpop.f32.mrb[0].mxu0
    %3939 = vdwg.mxu0
    %3940 = vmatprep.subr.bf16.mxu0 %v3603
    %3941 = vmatpush1.bf16.msra.mxu0 %v3602
    %3942 = vmatprep.subr.bf16.mxu0 %v3607
    %3943 = vmatpush1.bf16.msra.mxu0 %v3606
    %3944 = vmatprep.subr.bf16.mxu0 %v3611
    %3945 = vmatpush1.bf16.msra.mxu0 %v3610
    %3946 = vmatprep.subr.bf16.mxu0 %v3615
    %3947 = vmatpush1.bf16.msra.mxu0 %v3614
    %3948 = vmatprep.subr.bf16.mxu0 %v3619
    %3949 = vmatpush1.bf16.msra.mxu0 %v3618
    %3950 = vmatprep.subr.bf16.mxu0 %v3623
    %3951 = vmatpush1.bf16.msra.mxu0 %v3622
    %3952 = vmatprep.subr.bf16.mxu0 %v3627
    %3953 = vmatpush1.bf16.msra.mxu0 %v3626
    %3954 = vmatprep.subr.bf16.mxu0 %v3631
    %3955 = vmatpush1.bf16.msra.mxu0 %v3630
    %3956 = vmatprep.subr.bf16.mxu0 %v3635
    %3957 = vmatpush1.bf16.msra.mxu0 %v3634
    %3958 = vmatprep.subr.bf16.mxu0 %v3639
    %3959 = vmatpush1.bf16.msra.mxu0 %v3638
    %3960 = vmatprep.subr.bf16.mxu0 %v3643
    %3961 = vmatpush1.bf16.msra.mxu0 %v3642
    %3962 = vmatprep.subr.bf16.mxu0 %v3647
    %3963 = vmatpush1.bf16.msra.mxu0 %v3646
    %3964 = vmatprep.subr.bf16.mxu0 %v3651
    %3965 = vmatpush1.bf16.msra.mxu0 %v3650
    %3966 = vmatprep.subr.bf16.mxu0 %v3655
    %3967 = vmatpush1.bf16.msra.mxu0 %v3654
    %3968 = vmatprep.subr.bf16.mxu0 %v3659
    %3969 = vmatpush1.bf16.msra.mxu0 %v3658
    %3970 = vmatprep.subr.bf16.mxu0 %v3663
    %3971 = vmatpush1.bf16.msra.mxu0 %v3662
    %3972 = vmatprep.mubr.bf16.mxu0 %v2683
    %3973 = vmatmul.mubr.bf16.gmra.mrb[0].mxu0 %v2682
    %v3974 = vpop.f32.mrb[0].mxu0
    %v3975 = vadd.f32 %v3934, %v3974
    %v3976 = vpop.f32.mrb[0].mxu0
    %v3977 = vadd.f32 %v3936, %v3976
    %v3978 = vpop.f32.mrb[0].mxu0
    %v3979 = vpop.f32.mrb[0].mxu0
    %3980 = vdwg.mxu0
    %3981 = vmatprep.subr.bf16.mxu0 %v3477
    %3982 = vmatpush1.bf16.msra.mxu0 %v3476
    %3983 = vmatprep.subr.bf16.mxu0 %v3481
    %3984 = vmatpush1.bf16.msra.mxu0 %v3480
    %3985 = vmatprep.subr.bf16.mxu0 %v3485
    %3986 = vmatpush1.bf16.msra.mxu0 %v3484
    %3987 = vmatprep.subr.bf16.mxu0 %v3489
    %3988 = vmatpush1.bf16.msra.mxu0 %v3488
    %3989 = vmatprep.subr.bf16.mxu0 %v3493
    %3990 = vmatpush1.bf16.msra.mxu0 %v3492
    %3991 = vmatprep.subr.bf16.mxu0 %v3497
    %3992 = vmatpush1.bf16.msra.mxu0 %v3496
    %3993 = vmatprep.subr.bf16.mxu0 %v3501
    %3994 = vmatpush1.bf16.msra.mxu0 %v3500
    %3995 = vmatprep.subr.bf16.mxu0 %v3505
    %3996 = vmatpush1.bf16.msra.mxu0 %v3504
    %3997 = vmatprep.subr.bf16.mxu0 %v3509
    %3998 = vmatpush1.bf16.msra.mxu0 %v3508
    %3999 = vmatprep.subr.bf16.mxu0 %v3513
    %4000 = vmatpush1.bf16.msra.mxu0 %v3512
    %4001 = vmatprep.subr.bf16.mxu0 %v3517
    %4002 = vmatpush1.bf16.msra.mxu0 %v3516
    %4003 = vmatprep.subr.bf16.mxu0 %v3521
    %4004 = vmatpush1.bf16.msra.mxu0 %v3520
    %4005 = vmatprep.subr.bf16.mxu0 %v3525
    %4006 = vmatpush1.bf16.msra.mxu0 %v3524
    %4007 = vmatprep.subr.bf16.mxu0 %v3529
    %4008 = vmatpush1.bf16.msra.mxu0 %v3528
    %4009 = vmatprep.subr.bf16.mxu0 %v3533
    %4010 = vmatpush1.bf16.msra.mxu0 %v3532
    %4011 = vmatprep.subr.bf16.mxu0 %v3537
    %4012 = vmatpush1.bf16.msra.mxu0 %v3536
    %4013 = vmatprep.mubr.bf16.mxu0 %v2679
    %4014 = vmatmul.mubr.bf16.gmra.mrb[0].mxu0 %v2678
    %v4015 = vpop.f32.mrb[0].mxu0
    %v4016 = vadd.f32 %v2889, %v4015
    %v4017 = vpop.f32.mrb[0].mxu0
    %v4018 = vadd.f32 %v2893, %v4017
    %v4019 = vpop.f32.mrb[0].mxu0
    %v4020 = vpop.f32.mrb[0].mxu0
    %4021 = vdwg.mxu0
    %4022 = vmatprep.subr.bf16.mxu0 %v3541
    %4023 = vmatpush1.bf16.msra.mxu0 %v3540
    %4024 = vmatprep.subr.bf16.mxu0 %v3545
    %4025 = vmatpush1.bf16.msra.mxu0 %v3544
    %4026 = vmatprep.subr.bf16.mxu0 %v3549
    %4027 = vmatpush1.bf16.msra.mxu0 %v3548
    %4028 = vmatprep.subr.bf16.mxu0 %v3553
    %4029 = vmatpush1.bf16.msra.mxu0 %v3552
    %4030 = vmatprep.subr.bf16.mxu0 %v3557
    %4031 = vmatpush1.bf16.msra.mxu0 %v3556
    %4032 = vmatprep.subr.bf16.mxu0 %v3561
    %4033 = vmatpush1.bf16.msra.mxu0 %v3560
    %4034 = vmatprep.subr.bf16.mxu0 %v3565
    %4035 = vmatpush1.bf16.msra.mxu0 %v3564
    %4036 = vmatprep.subr.bf16.mxu0 %v3569
    %4037 = vmatpush1.bf16.msra.mxu0 %v3568
    %4038 = vmatprep.subr.bf16.mxu0 %v3573
    %4039 = vmatpush1.bf16.msra.mxu0 %v3572
    %4040 = vmatprep.subr.bf16.mxu0 %v3577
    %4041 = vmatpush1.bf16.msra.mxu0 %v3576
    %4042 = vmatprep.subr.bf16.mxu0 %v3581
    %4043 = vmatpush1.bf16.msra.mxu0 %v3580
    %4044 = vmatprep.subr.bf16.mxu0 %v3585
    %4045 = vmatpush1.bf16.msra.mxu0 %v3584
    %4046 = vmatprep.subr.bf16.mxu0 %v3589
    %4047 = vmatpush1.bf16.msra.mxu0 %v3588
    %4048 = vmatprep.subr.bf16.mxu0 %v3593
    %4049 = vmatpush1.bf16.msra.mxu0 %v3592
    %4050 = vmatprep.subr.bf16.mxu0 %v3597
    %4051 = vmatpush1.bf16.msra.mxu0 %v3596
    %4052 = vmatprep.subr.bf16.mxu0 %v3601
    %4053 = vmatpush1.bf16.msra.mxu0 %v3600
    %4054 = vmatprep.mubr.bf16.mxu0 %v2681
    %4055 = vmatmul.mubr.bf16.gmra.mrb[0].mxu0 %v2680
    %v4056 = vpop.f32.mrb[0].mxu0
    %v4057 = vadd.f32 %v4016, %v4056
    %v4058 = vpop.f32.mrb[0].mxu0
    %v4059 = vadd.f32 %v4018, %v4058
    %v4060 = vpop.f32.mrb[0].mxu0
    %v4061 = vpop.f32.mrb[0].mxu0
    %4062 = vdwg.mxu0
    %4063 = vmatprep.subr.bf16.mxu0 %v3605
    %4064 = vmatpush1.bf16.msra.mxu0 %v3604
    %4065 = vmatprep.subr.bf16.mxu0 %v3609
    %4066 = vmatpush1.bf16.msra.mxu0 %v3608
    %4067 = vmatprep.subr.bf16.mxu0 %v3613
    %4068 = vmatpush1.bf16.msra.mxu0 %v3612
    %4069 = vmatprep.subr.bf16.mxu0 %v3617
    %4070 = vmatpush1.bf16.msra.mxu0 %v3616
    %4071 = vmatprep.subr.bf16.mxu0 %v3621
    %4072 = vmatpush1.bf16.msra.mxu0 %v3620
    %4073 = vmatprep.subr.bf16.mxu0 %v3625
    %4074 = vmatpush1.bf16.msra.mxu0 %v3624
    %4075 = vmatprep.subr.bf16.mxu0 %v3629
    %4076 = vmatpush1.bf16.msra.mxu0 %v3628
    %4077 = vmatprep.subr.bf16.mxu0 %v3633
    %4078 = vmatpush1.bf16.msra.mxu0 %v3632
    %4079 = vmatprep.subr.bf16.mxu0 %v3637
    %4080 = vmatpush1.bf16.msra.mxu0 %v3636
    %4081 = vmatprep.subr.bf16.mxu0 %v3641
    %4082 = vmatpush1.bf16.msra.mxu0 %v3640
    %4083 = vmatprep.subr.bf16.mxu0 %v3645
    %4084 = vmatpush1.bf16.msra.mxu0 %v3644
    %4085 = vmatprep.subr.bf16.mxu0 %v3649
    %4086 = vmatpush1.bf16.msra.mxu0 %v3648
    %4087 = vmatprep.subr.bf16.mxu0 %v3653
    %4088 = vmatpush1.bf16.msra.mxu0 %v3652
    %4089 = vmatprep.subr.bf16.mxu0 %v3657
    %4090 = vmatpush1.bf16.msra.mxu0 %v3656
    %4091 = vmatprep.subr.bf16.mxu0 %v3661
    %4092 = vmatpush1.bf16.msra.mxu0 %v3660
    %4093 = vmatprep.subr.bf16.mxu0 %v3665
    %4094 = vmatpush1.bf16.msra.mxu0 %v3664
    %4095 = vmatprep.mubr.bf16.mxu0 %v2683
    %4096 = vmatmul.mubr.bf16.gmra.mrb[0].mxu0 %v2682
    %v4097 = vpop.f32.mrb[0].mxu0
    %v4098 = vadd.f32 %v4057, %v4097
    %v4099 = vpop.f32.mrb[0].mxu0
    %v4100 = vadd.f32 %v4059, %v4099
    %v4101 = vpop.f32.mrb[0].mxu0
    %v4102 = vpop.f32.mrb[0].mxu0
    %4103 = vdwg.mxu0
    %v4104 = vld [vmem:[#allocation13 + $0x16] sm:$0xf]
    %v4105 = vld [vmem:[#allocation13 + $0x1a] sm:$0xf]
    %v4106 = vadd.f32 %v3975, %v3977
    %v4107 = vadd.f32 %v4106, %v4098
    %v4108 = vadd.f32 %v4107, %v4100
    %4109 = vadd.xlane.f32.xlu0 %v4108
    %v4110 = vpop.xlane.xlu0 %4109
    %v4111 = vrcp.pop 512.0
    %v4112 = vmul.f32 %v4110, %v4111
    %v4113 = vmul.f32 %v3975, %v3975
    %v4114 = vmul.f32 %v3977, %v3977
    %v4115 = vmul.f32 %v4098, %v4098
    %v4116 = vmul.f32 %v4100, %v4100
    %v4117 = vadd.f32 %v4113, %v4114
    %v4118 = vadd.f32 %v4117, %v4115
    %v4119 = vadd.f32 %v4118, %v4116
    %4120 = vadd.xlane.f32.xlu0 %v4119
    %v4121 = vpop.xlane.xlu0 %4120
    %v4122 = vmul.f32 %v4121, %v4111
    %v4123 = vmul.f32 %v4112, %v4112
    %v4124 = vsub.f32 %v4122, %v4123
    %v4125 = vmax.f32 %v4124, 0.0
    %v4126 = vadd.f32 %v4125, 1e-05
    %v4127 = vrsqrt.pop %v4126
    %v4128 = vpack.c.bf16 %v3975, %v3975
    %v4129 = vpack.c.bf16 %v3977, %v3977
    %v4130 = vpack.c.bf16 %v4098, %v4098
    %v4131 = vpack.c.bf16 %v4100, %v4100
    %v4132 = vpack.c.bf16 %v4112, %v4112
    %v4133 = vpack.c.bf16 %v4127, %v4127
    %v4135 = vlaneseq
    %v4136 = vshrl.u32 %v4135, 7
    %v4137 = vsub.s32 0, %v4136
    %v4138 = vrot.slane %v4104, %v4137
    %v4139 = vlaneseq
    %v4140 = vshrl.u32 %v4139, 7
    %v4141 = vsub.s32 1, %v4140
    %v4142 = vrot.slane %v4104, %v4141
    %v4143 = vlaneseq
    %v4144 = vshrl.u32 %v4143, 7
    %v4145 = vsub.s32 2, %v4144
    %v4146 = vrot.slane %v4104, %v4145
    %v4147 = vlaneseq
    %v4148 = vshrl.u32 %v4147, 7
    %v4149 = vsub.s32 3, %v4148
    %v4150 = vrot.slane %v4104, %v4149
    %v4155 = vpack.c.bf16 %v4138, %v4138
    %v4156 = vpack.c.bf16 %v4142, %v4142
    %v4157 = vpack.c.bf16 %v4146, %v4146
    %v4158 = vpack.c.bf16 %v4150, %v4150
    %v4160 = vlaneseq
    %v4161 = vshrl.u32 %v4160, 7
    %v4162 = vsub.s32 0, %v4161
    %v4163 = vrot.slane %v4105, %v4162
    %v4164 = vlaneseq
    %v4165 = vshrl.u32 %v4164, 7
    %v4166 = vsub.s32 1, %v4165
    %v4167 = vrot.slane %v4105, %v4166
    %v4168 = vlaneseq
    %v4169 = vshrl.u32 %v4168, 7
    %v4170 = vsub.s32 2, %v4169
    %v4171 = vrot.slane %v4105, %v4170
    %v4172 = vlaneseq
    %v4173 = vshrl.u32 %v4172, 7
    %v4174 = vsub.s32 3, %v4173
    %v4175 = vrot.slane %v4105, %v4174
    %v4180 = vpack.c.bf16 %v4163, %v4163
    %v4181 = vpack.c.bf16 %v4167, %v4167
    %v4182 = vpack.c.bf16 %v4171, %v4171
    %v4183 = vpack.c.bf16 %v4175, %v4175
    %v4184 = vsub.bf16 %v4128, %v4132
    %v4185 = vsub.bf16 %v4129, %v4132
    %v4186 = vsub.bf16 %v4130, %v4132
    %v4187 = vsub.bf16 %v4131, %v4132
    %v4188 = vmul.bf16 %v4184, %v4133
    %v4189 = vmul.bf16 %v4185, %v4133
    %v4190 = vmul.bf16 %v4186, %v4133
    %v4191 = vmul.bf16 %v4187, %v4133
    %v4193 = vpack.i.b16 %v4155, %v4155
    %v4195 = vlaneseq
    %v4196 = vshrl.u32 %v4195, 7
    %v4197 = vsub.s32 0, %v4196
    %v4198 = vrot.slane %v4193, %v4197
    %v4200 = vpack.i.b16 %v4156, %v4156
    %v4202 = vlaneseq
    %v4203 = vshrl.u32 %v4202, 7
    %v4204 = vsub.s32 0, %v4203
    %v4205 = vrot.slane %v4200, %v4204
    %v4207 = vpack.i.b16 %v4157, %v4157
    %v4209 = vlaneseq
    %v4210 = vshrl.u32 %v4209, 7
    %v4211 = vsub.s32 0, %v4210
    %v4212 = vrot.slane %v4207, %v4211
    %v4214 = vpack.i.b16 %v4158, %v4158
    %v4216 = vlaneseq
    %v4217 = vshrl.u32 %v4216, 7
    %v4218 = vsub.s32 0, %v4217
    %v4219 = vrot.slane %v4214, %v4218
    %v4220 = vmul.bf16 %v4188, %v4198
    %v4221 = vmul.bf16 %v4189, %v4205
    %v4222 = vmul.bf16 %v4190, %v4212
    %v4223 = vmul.bf16 %v4191, %v4219
    %v4225 = vpack.i.b16 %v4180, %v4180
    %v4227 = vlaneseq
    %v4228 = vshrl.u32 %v4227, 7
    %v4229 = vsub.s32 0, %v4228
    %v4230 = vrot.slane %v4225, %v4229
    %v4232 = vpack.i.b16 %v4181, %v4181
    %v4234 = vlaneseq
    %v4235 = vshrl.u32 %v4234, 7
    %v4236 = vsub.s32 0, %v4235
    %v4237 = vrot.slane %v4232, %v4236
    %v4239 = vpack.i.b16 %v4182, %v4182
    %v4241 = vlaneseq
    %v4242 = vshrl.u32 %v4241, 7
    %v4243 = vsub.s32 0, %v4242
    %v4244 = vrot.slane %v4239, %v4243
    %v4246 = vpack.i.b16 %v4183, %v4183
    %v4248 = vlaneseq
    %v4249 = vshrl.u32 %v4248, 7
    %v4250 = vsub.s32 0, %v4249
    %v4251 = vrot.slane %v4246, %v4250
    %v4252 = vadd.bf16 %v4220, %v4230
    %v4253 = vadd.bf16 %v4221, %v4237
    %v4254 = vadd.bf16 %v4222, %v4244
    %v4255 = vadd.bf16 %v4223, %v4251
    %v4256 = vmax.bf16 %v4252, 0
    %v4257 = vmax.bf16 %v4253, 0
    %v4258 = vmax.bf16 %v4254, 0
    %v4259 = vmax.bf16 %v4255, 0
    %v4260 = vld [vmem:[#allocation9] sm:$0xff]
    %v4261 = vld [vmem:[#allocation9 + $0x8] sm:$0xf]
    %v4262 = vld [vmem:[#allocation9 + $0xc] sm:$0xff]
    %v4263 = vld [vmem:[#allocation9 + $0x14] sm:$0xf]
    %v4264 = vld [vmem:[#allocation9 + $0x18] sm:$0xff]
    %v4265 = vld [vmem:[#allocation9 + $0x20] sm:$0xf]
    %v4266 = vld [vmem:[#allocation9 + $0x24] sm:$0xff]
    %v4267 = vld [vmem:[#allocation9 + $0x2c] sm:$0xf]
    %v4268 = vld [vmem:[#allocation9 + $0x30] sm:$0xff]
    %v4269 = vld [vmem:[#allocation9 + $0x38] sm:$0xf]
    %v4270 = vld [vmem:[#allocation9 + $0x3c] sm:$0xff]
    %v4271 = vld [vmem:[#allocation9 + $0x44] sm:$0xf]
    %v4272 = vld [vmem:[#allocation9 + $0x48] sm:$0xff]
    %v4273 = vld [vmem:[#allocation9 + $0x50] sm:$0xf]
    %v4274 = vld [vmem:[#allocation9 + $0x54] sm:$0xff]
    %v4275 = vld [vmem:[#allocation9 + $0x5c] sm:$0xf]
    %v4276 = vld [vmem:[#allocation9 + $0x60] sm:$0xff]
    %v4277 = vld [vmem:[#allocation9 + $0x68] sm:$0xf]
    %v4278 = vld [vmem:[#allocation9 + $0x6c] sm:$0xff]
    %v4279 = vld [vmem:[#allocation9 + $0x74] sm:$0xf]
    %v4280 = vld [vmem:[#allocation9 + $0x78] sm:$0xff]
    %v4281 = vld [vmem:[#allocation9 + $0x80] sm:$0xf]
    %v4282 = vld [vmem:[#allocation9 + $0x84] sm:$0xff]
    %v4283 = vld [vmem:[#allocation9 + $0x8c] sm:$0xf]
    %v4284 = vld [vmem:[#allocation9 + $0x90] sm:$0xff]
    %v4285 = vld [vmem:[#allocation9 + $0x98] sm:$0xf]
    %v4286 = vld [vmem:[#allocation9 + $0x9c] sm:$0xff]
    %v4287 = vld [vmem:[#allocation9 + $0xa4] sm:$0xf]
    %v4288 = vld [vmem:[#allocation9 + $0xa8] sm:$0xff]
    %v4289 = vld [vmem:[#allocation9 + $0xb0] sm:$0xf]
    %v4290 = vld [vmem:[#allocation9 + $0xb4] sm:$0xff]
    %v4291 = vld [vmem:[#allocation9 + $0xbc] sm:$0xf]
    %v4292 = vld [vmem:[#allocation9 + $0xc0] sm:$0xff]
    %v4293 = vld [vmem:[#allocation9 + $0xc8] sm:$0xf]
    %v4294 = vld [vmem:[#allocation9 + $0xcc] sm:$0xff]
    %v4295 = vld [vmem:[#allocation9 + $0xd4] sm:$0xf]
    %v4296 = vld [vmem:[#allocation9 + $0xd8] sm:$0xff]
    %v4297 = vld [vmem:[#allocation9 + $0xe0] sm:$0xf]
    %v4298 = vld [vmem:[#allocation9 + $0xe4] sm:$0xff]
    %v4299 = vld [vmem:[#allocation9 + $0xec] sm:$0xf]
    %v4300 = vld [vmem:[#allocation9 + $0xf0] sm:$0xff]
    %v4301 = vld [vmem:[#allocation9 + $0xf8] sm:$0xf]
    %v4302 = vld [vmem:[#allocation9 + $0xfc] sm:$0xff]
    %v4303 = vld [vmem:[#allocation9 + $0x104] sm:$0xf]
    %v4304 = vld [vmem:[#allocation9 + $0x108] sm:$0xff]
    %v4305 = vld [vmem:[#allocation9 + $0x110] sm:$0xf]
    %v4306 = vld [vmem:[#allocation9 + $0x114] sm:$0xff]
    %v4307 = vld [vmem:[#allocation9 + $0x11c] sm:$0xf]
    %v4308 = vld [vmem:[#allocation9 + $0x120] sm:$0xff]
    %v4309 = vld [vmem:[#allocation9 + $0x128] sm:$0xf]
    %v4310 = vld [vmem:[#allocation9 + $0x12c] sm:$0xff]
    %v4311 = vld [vmem:[#allocation9 + $0x134] sm:$0xf]
    %v4312 = vld [vmem:[#allocation9 + $0x138] sm:$0xff]
    %v4313 = vld [vmem:[#allocation9 + $0x140] sm:$0xf]
    %v4314 = vld [vmem:[#allocation9 + $0x144] sm:$0xff]
    %v4315 = vld [vmem:[#allocation9 + $0x14c] sm:$0xf]
    %v4316 = vld [vmem:[#allocation9 + $0x150] sm:$0xff]
    %v4317 = vld [vmem:[#allocation9 + $0x158] sm:$0xf]
    %v4318 = vld [vmem:[#allocation9 + $0x15c] sm:$0xff]
    %v4319 = vld [vmem:[#allocation9 + $0x164] sm:$0xf]
    %v4320 = vld [vmem:[#allocation9 + $0x168] sm:$0xff]
    %v4321 = vld [vmem:[#allocation9 + $0x170] sm:$0xf]
    %v4322 = vld [vmem:[#allocation9 + $0x174] sm:$0xff]
    %v4323 = vld [vmem:[#allocation9 + $0x17c] sm:$0xf]
    %v4324 = vld [vmem:[#allocation9 + $0x180] sm:$0xff]
    %v4325 = vld [vmem:[#allocation9 + $0x188] sm:$0xf]
    %v4326 = vld [vmem:[#allocation9 + $0x18c] sm:$0xff]
    %v4327 = vld [vmem:[#allocation9 + $0x194] sm:$0xf]
    %v4328 = vld [vmem:[#allocation9 + $0x198] sm:$0xff]
    %v4329 = vld [vmem:[#allocation9 + $0x1a0] sm:$0xf]
    %v4330 = vld [vmem:[#allocation9 + $0x1a4] sm:$0xff]
    %v4331 = vld [vmem:[#allocation9 + $0x1ac] sm:$0xf]
    %v4332 = vld [vmem:[#allocation9 + $0x1b0] sm:$0xff]
    %v4333 = vld [vmem:[#allocation9 + $0x1b8] sm:$0xf]
    %v4334 = vld [vmem:[#allocation9 + $0x1bc] sm:$0xff]
    %v4335 = vld [vmem:[#allocation9 + $0x1c4] sm:$0xf]
    %v4336 = vld [vmem:[#allocation9 + $0x1c8] sm:$0xff]
    %v4337 = vld [vmem:[#allocation9 + $0x1d0] sm:$0xf]
    %v4338 = vld [vmem:[#allocation9 + $0x1d4] sm:$0xff]
    %v4339 = vld [vmem:[#allocation9 + $0x1dc] sm:$0xf]
    %v4340 = vld [vmem:[#allocation9 + $0x1e0] sm:$0xff]
    %v4341 = vld [vmem:[#allocation9 + $0x1e8] sm:$0xf]
    %v4342 = vld [vmem:[#allocation9 + $0x1ec] sm:$0xff]
    %v4343 = vld [vmem:[#allocation9 + $0x1f4] sm:$0xf]
    %v4344 = vld [vmem:[#allocation9 + $0x1f8] sm:$0xff]
    %v4345 = vld [vmem:[#allocation9 + $0x200] sm:$0xf]
    %v4346 = vld [vmem:[#allocation9 + $0x204] sm:$0xff]
    %v4347 = vld [vmem:[#allocation9 + $0x20c] sm:$0xf]
    %v4348 = vld [vmem:[#allocation9 + $0x210] sm:$0xff]
    %v4349 = vld [vmem:[#allocation9 + $0x218] sm:$0xf]
    %v4350 = vld [vmem:[#allocation9 + $0x21c] sm:$0xff]
    %v4351 = vld [vmem:[#allocation9 + $0x224] sm:$0xf]
    %v4352 = vld [vmem:[#allocation9 + $0x228] sm:$0xff]
    %v4353 = vld [vmem:[#allocation9 + $0x230] sm:$0xf]
    %v4354 = vld [vmem:[#allocation9 + $0x234] sm:$0xff]
    %v4355 = vld [vmem:[#allocation9 + $0x23c] sm:$0xf]
    %v4356 = vld [vmem:[#allocation9 + $0x240] sm:$0xff]
    %v4357 = vld [vmem:[#allocation9 + $0x248] sm:$0xf]
    %v4358 = vld [vmem:[#allocation9 + $0x24c] sm:$0xff]
    %v4359 = vld [vmem:[#allocation9 + $0x254] sm:$0xf]
    %v4360 = vld [vmem:[#allocation9 + $0x258] sm:$0xff]
    %v4361 = vld [vmem:[#allocation9 + $0x260] sm:$0xf]
    %v4362 = vld [vmem:[#allocation9 + $0x264] sm:$0xff]
    %v4363 = vld [vmem:[#allocation9 + $0x26c] sm:$0xf]
    %v4364 = vld [vmem:[#allocation9 + $0x270] sm:$0xff]
    %v4365 = vld [vmem:[#allocation9 + $0x278] sm:$0xf]
    %v4366 = vld [vmem:[#allocation9 + $0x27c] sm:$0xff]
    %v4367 = vld [vmem:[#allocation9 + $0x284] sm:$0xf]
    %v4368 = vld [vmem:[#allocation9 + $0x288] sm:$0xff]
    %v4369 = vld [vmem:[#allocation9 + $0x290] sm:$0xf]
    %v4370 = vld [vmem:[#allocation9 + $0x294] sm:$0xff]
    %v4371 = vld [vmem:[#allocation9 + $0x29c] sm:$0xf]
    %v4372 = vld [vmem:[#allocation9 + $0x2a0] sm:$0xff]
    %v4373 = vld [vmem:[#allocation9 + $0x2a8] sm:$0xf]
    %v4374 = vld [vmem:[#allocation9 + $0x2ac] sm:$0xff]
    %v4375 = vld [vmem:[#allocation9 + $0x2b4] sm:$0xf]
    %v4376 = vld [vmem:[#allocation9 + $0x2b8] sm:$0xff]
    %v4377 = vld [vmem:[#allocation9 + $0x2c0] sm:$0xf]
    %v4378 = vld [vmem:[#allocation9 + $0x2c4] sm:$0xff]
    %v4379 = vld [vmem:[#allocation9 + $0x2cc] sm:$0xf]
    %v4380 = vld [vmem:[#allocation9 + $0x2d0] sm:$0xff]
    %v4381 = vld [vmem:[#allocation9 + $0x2d8] sm:$0xf]
    %v4382 = vld [vmem:[#allocation9 + $0x2dc] sm:$0xff]
    %v4383 = vld [vmem:[#allocation9 + $0x2e4] sm:$0xf]
    %v4384 = vld [vmem:[#allocation9 + $0x2e8] sm:$0xff]
    %v4385 = vld [vmem:[#allocation9 + $0x2f0] sm:$0xf]
    %v4386 = vld [vmem:[#allocation9 + $0x2f4] sm:$0xff]
    %v4387 = vld [vmem:[#allocation9 + $0x2fc] sm:$0xf]
    %v4388 = vld [vmem:[#allocation13 + $0x1e] sm:$0x7]
    %v4390 = vlaneseq
    %v4391 = vshrl.u32 %v4390, 7
    %v4392 = vsub.s32 0, %v4391
    %v4393 = vrot.slane %v4388, %v4392
    %v4394 = vlaneseq
    %v4395 = vshrl.u32 %v4394, 7
    %v4396 = vsub.s32 1, %v4395
    %v4397 = vrot.slane %v4388, %v4396
    %v4398 = vlaneseq
    %v4399 = vshrl.u32 %v4398, 7
    %v4400 = vsub.s32 2, %v4399
    %v4401 = vrot.slane %v4388, %v4400
    %v4533 = vunpack.c.l.b16 %v4260
    %v4534 = vunpack.c.h.b16 %v4260
    %v4535 = vunpack.c.l.b16 %v4261
    %v4536 = vunpack.c.l.b16 %v4262
    %v4537 = vunpack.c.h.b16 %v4262
    %v4538 = vunpack.c.l.b16 %v4263
    %v4539 = vunpack.c.l.b16 %v4264
    %v4540 = vunpack.c.h.b16 %v4264
    %v4541 = vunpack.c.l.b16 %v4265
    %v4542 = vunpack.c.l.b16 %v4266
    %v4543 = vunpack.c.h.b16 %v4266
    %v4544 = vunpack.c.l.b16 %v4267
    %v4545 = vunpack.c.l.b16 %v4268
    %v4546 = vunpack.c.h.b16 %v4268
    %v4547 = vunpack.c.l.b16 %v4269
    %v4548 = vunpack.c.l.b16 %v4270
    %v4549 = vunpack.c.h.b16 %v4270
    %v4550 = vunpack.c.l.b16 %v4271
    %v4551 = vunpack.c.l.b16 %v4272
    %v4552 = vunpack.c.h.b16 %v4272
    %v4553 = vunpack.c.l.b16 %v4273
    %v4554 = vunpack.c.l.b16 %v4274
    %v4555 = vunpack.c.h.b16 %v4274
    %v4556 = vunpack.c.l.b16 %v4275
    %v4557 = vunpack.c.l.b16 %v4276
    %v4558 = vunpack.c.h.b16 %v4276
    %v4559 = vunpack.c.l.b16 %v4277
    %v4560 = vunpack.c.l.b16 %v4278
    %v4561 = vunpack.c.h.b16 %v4278
    %v4562 = vunpack.c.l.b16 %v4279
    %v4563 = vunpack.c.l.b16 %v4280
    %v4564 = vunpack.c.h.b16 %v4280
    %v4565 = vunpack.c.l.b16 %v4281
    %v4566 = vunpack.c.l.b16 %v4282
    %v4567 = vunpack.c.h.b16 %v4282
    %v4568 = vunpack.c.l.b16 %v4283
    %v4569 = vunpack.c.l.b16 %v4284
    %v4570 = vunpack.c.h.b16 %v4284
    %v4571 = vunpack.c.l.b16 %v4285
    %v4572 = vunpack.c.l.b16 %v4286
    %v4573 = vunpack.c.h.b16 %v4286
    %v4574 = vunpack.c.l.b16 %v4287
    %v4575 = vunpack.c.l.b16 %v4288
    %v4576 = vunpack.c.h.b16 %v4288
    %v4577 = vunpack.c.l.b16 %v4289
    %v4578 = vunpack.c.l.b16 %v4290
    %v4579 = vunpack.c.h.b16 %v4290
    %v4580 = vunpack.c.l.b16 %v4291
    %v4581 = vunpack.c.l.b16 %v4292
    %v4582 = vunpack.c.h.b16 %v4292
    %v4583 = vunpack.c.l.b16 %v4293
    %v4584 = vunpack.c.l.b16 %v4294
    %v4585 = vunpack.c.h.b16 %v4294
    %v4586 = vunpack.c.l.b16 %v4295
    %v4587 = vunpack.c.l.b16 %v4296
    %v4588 = vunpack.c.h.b16 %v4296
    %v4589 = vunpack.c.l.b16 %v4297
    %v4590 = vunpack.c.l.b16 %v4298
    %v4591 = vunpack.c.h.b16 %v4298
    %v4592 = vunpack.c.l.b16 %v4299
    %v4593 = vunpack.c.l.b16 %v4300
    %v4594 = vunpack.c.h.b16 %v4300
    %v4595 = vunpack.c.l.b16 %v4301
    %v4596 = vunpack.c.l.b16 %v4302
    %v4597 = vunpack.c.h.b16 %v4302
    %v4598 = vunpack.c.l.b16 %v4303
    %v4599 = vunpack.c.l.b16 %v4304
    %v4600 = vunpack.c.h.b16 %v4304
    %v4601 = vunpack.c.l.b16 %v4305
    %v4602 = vunpack.c.l.b16 %v4306
    %v4603 = vunpack.c.h.b16 %v4306
    %v4604 = vunpack.c.l.b16 %v4307
    %v4605 = vunpack.c.l.b16 %v4308
    %v4606 = vunpack.c.h.b16 %v4308
    %v4607 = vunpack.c.l.b16 %v4309
    %v4608 = vunpack.c.l.b16 %v4310
    %v4609 = vunpack.c.h.b16 %v4310
    %v4610 = vunpack.c.l.b16 %v4311
    %v4611 = vunpack.c.l.b16 %v4312
    %v4612 = vunpack.c.h.b16 %v4312
    %v4613 = vunpack.c.l.b16 %v4313
    %v4614 = vunpack.c.l.b16 %v4314
    %v4615 = vunpack.c.h.b16 %v4314
    %v4616 = vunpack.c.l.b16 %v4315
    %v4617 = vunpack.c.l.b16 %v4316
    %v4618 = vunpack.c.h.b16 %v4316
    %v4619 = vunpack.c.l.b16 %v4317
    %v4620 = vunpack.c.l.b16 %v4318
    %v4621 = vunpack.c.h.b16 %v4318
    %v4622 = vunpack.c.l.b16 %v4319
    %v4623 = vunpack.c.l.b16 %v4320
    %v4624 = vunpack.c.h.b16 %v4320
    %v4625 = vunpack.c.l.b16 %v4321
    %v4626 = vunpack.c.l.b16 %v4322
    %v4627 = vunpack.c.h.b16 %v4322
    %v4628 = vunpack.c.l.b16 %v4323
    %v4629 = vunpack.c.l.b16 %v4324
    %v4630 = vunpack.c.h.b16 %v4324
    %v4631 = vunpack.c.l.b16 %v4325
    %v4632 = vunpack.c.l.b16 %v4326
    %v4633 = vunpack.c.h.b16 %v4326
    %v4634 = vunpack.c.l.b16 %v4327
    %v4635 = vunpack.c.l.b16 %v4328
    %v4636 = vunpack.c.h.b16 %v4328
    %v4637 = vunpack.c.l.b16 %v4329
    %v4638 = vunpack.c.l.b16 %v4330
    %v4639 = vunpack.c.h.b16 %v4330
    %v4640 = vunpack.c.l.b16 %v4331
    %v4641 = vunpack.c.l.b16 %v4332
    %v4642 = vunpack.c.h.b16 %v4332
    %v4643 = vunpack.c.l.b16 %v4333
    %v4644 = vunpack.c.l.b16 %v4334
    %v4645 = vunpack.c.h.b16 %v4334
    %v4646 = vunpack.c.l.b16 %v4335
    %v4647 = vunpack.c.l.b16 %v4336
    %v4648 = vunpack.c.h.b16 %v4336
    %v4649 = vunpack.c.l.b16 %v4337
    %v4650 = vunpack.c.l.b16 %v4338
    %v4651 = vunpack.c.h.b16 %v4338
    %v4652 = vunpack.c.l.b16 %v4339
    %v4653 = vunpack.c.l.b16 %v4340
    %v4654 = vunpack.c.h.b16 %v4340
    %v4655 = vunpack.c.l.b16 %v4341
    %v4656 = vunpack.c.l.b16 %v4342
    %v4657 = vunpack.c.h.b16 %v4342
    %v4658 = vunpack.c.l.b16 %v4343
    %v4659 = vunpack.c.l.b16 %v4344
    %v4660 = vunpack.c.h.b16 %v4344
    %v4661 = vunpack.c.l.b16 %v4345
    %v4662 = vunpack.c.l.b16 %v4346
    %v4663 = vunpack.c.h.b16 %v4346
    %v4664 = vunpack.c.l.b16 %v4347
    %v4665 = vunpack.c.l.b16 %v4348
    %v4666 = vunpack.c.h.b16 %v4348
    %v4667 = vunpack.c.l.b16 %v4349
    %v4668 = vunpack.c.l.b16 %v4350
    %v4669 = vunpack.c.h.b16 %v4350
    %v4670 = vunpack.c.l.b16 %v4351
    %v4671 = vunpack.c.l.b16 %v4352
    %v4672 = vunpack.c.h.b16 %v4352
    %v4673 = vunpack.c.l.b16 %v4353
    %v4674 = vunpack.c.l.b16 %v4354
    %v4675 = vunpack.c.h.b16 %v4354
    %v4676 = vunpack.c.l.b16 %v4355
    %v4677 = vunpack.c.l.b16 %v4356
    %v4678 = vunpack.c.h.b16 %v4356
    %v4679 = vunpack.c.l.b16 %v4357
    %v4680 = vunpack.c.l.b16 %v4358
    %v4681 = vunpack.c.h.b16 %v4358
    %v4682 = vunpack.c.l.b16 %v4359
    %v4683 = vunpack.c.l.b16 %v4360
    %v4684 = vunpack.c.h.b16 %v4360
    %v4685 = vunpack.c.l.b16 %v4361
    %v4686 = vunpack.c.l.b16 %v4362
    %v4687 = vunpack.c.h.b16 %v4362
    %v4688 = vunpack.c.l.b16 %v4363
    %v4689 = vunpack.c.l.b16 %v4364
    %v4690 = vunpack.c.h.b16 %v4364
    %v4691 = vunpack.c.l.b16 %v4365
    %v4692 = vunpack.c.l.b16 %v4366
    %v4693 = vunpack.c.h.b16 %v4366
    %v4694 = vunpack.c.l.b16 %v4367
    %v4695 = vunpack.c.l.b16 %v4368
    %v4696 = vunpack.c.h.b16 %v4368
    %v4697 = vunpack.c.l.b16 %v4369
    %v4698 = vunpack.c.l.b16 %v4370
    %v4699 = vunpack.c.h.b16 %v4370
    %v4700 = vunpack.c.l.b16 %v4371
    %v4701 = vunpack.c.l.b16 %v4372
    %v4702 = vunpack.c.h.b16 %v4372
    %v4703 = vunpack.c.l.b16 %v4373
    %v4704 = vunpack.c.l.b16 %v4374
    %v4705 = vunpack.c.h.b16 %v4374
    %v4706 = vunpack.c.l.b16 %v4375
    %v4707 = vunpack.c.l.b16 %v4376
    %v4708 = vunpack.c.h.b16 %v4376
    %v4709 = vunpack.c.l.b16 %v4377
    %v4710 = vunpack.c.l.b16 %v4378
    %v4711 = vunpack.c.h.b16 %v4378
    %v4712 = vunpack.c.l.b16 %v4379
    %v4713 = vunpack.c.l.b16 %v4380
    %v4714 = vunpack.c.h.b16 %v4380
    %v4715 = vunpack.c.l.b16 %v4381
    %v4716 = vunpack.c.l.b16 %v4382
    %v4717 = vunpack.c.h.b16 %v4382
    %v4718 = vunpack.c.l.b16 %v4383
    %v4719 = vunpack.c.l.b16 %v4384
    %v4720 = vunpack.c.h.b16 %v4384
    %v4721 = vunpack.c.l.b16 %v4385
    %v4722 = vunpack.c.l.b16 %v4386
    %v4723 = vunpack.c.h.b16 %v4386
    %v4724 = vunpack.c.l.b16 %v4387
    %v4725 = vpack.c.b16 %v4536, %v4533
    %v4726 = vpack.c.b16 %v4537, %v4534
    %v4727 = vpack.c.b16 %v4538, %v4535
    %v4728 = vpack.c.b16 %v4542, %v4539
    %v4729 = vpack.c.b16 %v4543, %v4540
    %v4730 = vpack.c.b16 %v4544, %v4541
    %v4731 = vpack.c.b16 %v4548, %v4545
    %v4732 = vpack.c.b16 %v4549, %v4546
    %v4733 = vpack.c.b16 %v4550, %v4547
    %v4734 = vpack.c.b16 %v4554, %v4551
    %v4735 = vpack.c.b16 %v4555, %v4552
    %v4736 = vpack.c.b16 %v4556, %v4553
    %v4737 = vpack.c.b16 %v4560, %v4557
    %v4738 = vpack.c.b16 %v4561, %v4558
    %v4739 = vpack.c.b16 %v4562, %v4559
    %v4740 = vpack.c.b16 %v4566, %v4563
    %v4741 = vpack.c.b16 %v4567, %v4564
    %v4742 = vpack.c.b16 %v4568, %v4565
    %v4743 = vpack.c.b16 %v4572, %v4569
    %v4744 = vpack.c.b16 %v4573, %v4570
    %v4745 = vpack.c.b16 %v4574, %v4571
    %v4746 = vpack.c.b16 %v4578, %v4575
    %v4747 = vpack.c.b16 %v4579, %v4576
    %v4748 = vpack.c.b16 %v4580, %v4577
    %v4749 = vpack.c.b16 %v4584, %v4581
    %v4750 = vpack.c.b16 %v4585, %v4582
    %v4751 = vpack.c.b16 %v4586, %v4583
    %v4752 = vpack.c.b16 %v4590, %v4587
    %v4753 = vpack.c.b16 %v4591, %v4588
    %v4754 = vpack.c.b16 %v4592, %v4589
    %v4755 = vpack.c.b16 %v4596, %v4593
    %v4756 = vpack.c.b16 %v4597, %v4594
    %v4757 = vpack.c.b16 %v4598, %v4595
    %v4758 = vpack.c.b16 %v4602, %v4599
    %v4759 = vpack.c.b16 %v4603, %v4600
    %v4760 = vpack.c.b16 %v4604, %v4601
    %v4761 = vpack.c.b16 %v4608, %v4605
    %v4762 = vpack.c.b16 %v4609, %v4606
    %v4763 = vpack.c.b16 %v4610, %v4607
    %v4764 = vpack.c.b16 %v4614, %v4611
    %v4765 = vpack.c.b16 %v4615, %v4612
    %v4766 = vpack.c.b16 %v4616, %v4613
    %v4767 = vpack.c.b16 %v4620, %v4617
    %v4768 = vpack.c.b16 %v4621, %v4618
    %v4769 = vpack.c.b16 %v4622, %v4619
    %v4770 = vpack.c.b16 %v4626, %v4623
    %v4771 = vpack.c.b16 %v4627, %v4624
    %v4772 = vpack.c.b16 %v4628, %v4625
    %v4773 = vpack.c.b16 %v4632, %v4629
    %v4774 = vpack.c.b16 %v4633, %v4630
    %v4775 = vpack.c.b16 %v4634, %v4631
    %v4776 = vpack.c.b16 %v4638, %v4635
    %v4777 = vpack.c.b16 %v4639, %v4636
    %v4778 = vpack.c.b16 %v4640, %v4637
    %v4779 = vpack.c.b16 %v4644, %v4641
    %v4780 = vpack.c.b16 %v4645, %v4642
    %v4781 = vpack.c.b16 %v4646, %v4643
    %v4782 = vpack.c.b16 %v4650, %v4647
    %v4783 = vpack.c.b16 %v4651, %v4648
    %v4784 = vpack.c.b16 %v4652, %v4649
    %v4785 = vpack.c.b16 %v4656, %v4653
    %v4786 = vpack.c.b16 %v4657, %v4654
    %v4787 = vpack.c.b16 %v4658, %v4655
    %v4788 = vpack.c.b16 %v4662, %v4659
    %v4789 = vpack.c.b16 %v4663, %v4660
    %v4790 = vpack.c.b16 %v4664, %v4661
    %v4791 = vpack.c.b16 %v4668, %v4665
    %v4792 = vpack.c.b16 %v4669, %v4666
    %v4793 = vpack.c.b16 %v4670, %v4667
    %v4794 = vpack.c.b16 %v4674, %v4671
    %v4795 = vpack.c.b16 %v4675, %v4672
    %v4796 = vpack.c.b16 %v4676, %v4673
    %v4797 = vpack.c.b16 %v4680, %v4677
    %v4798 = vpack.c.b16 %v4681, %v4678
    %v4799 = vpack.c.b16 %v4682, %v4679
    %v4800 = vpack.c.b16 %v4686, %v4683
    %v4801 = vpack.c.b16 %v4687, %v4684
    %v4802 = vpack.c.b16 %v4688, %v4685
    %v4803 = vpack.c.b16 %v4692, %v4689
    %v4804 = vpack.c.b16 %v4693, %v4690
    %v4805 = vpack.c.b16 %v4694, %v4691
    %v4806 = vpack.c.b16 %v4698, %v4695
    %v4807 = vpack.c.b16 %v4699, %v4696
    %v4808 = vpack.c.b16 %v4700, %v4697
    %v4809 = vpack.c.b16 %v4704, %v4701
    %v4810 = vpack.c.b16 %v4705, %v4702
    %v4811 = vpack.c.b16 %v4706, %v4703
    %v4812 = vpack.c.b16 %v4710, %v4707
    %v4813 = vpack.c.b16 %v4711, %v4708
    %v4814 = vpack.c.b16 %v4712, %v4709
    %v4815 = vpack.c.b16 %v4716, %v4713
    %v4816 = vpack.c.b16 %v4717, %v4714
    %v4817 = vpack.c.b16 %v4718, %v4715
    %v4818 = vpack.c.b16 %v4722, %v4719
    %v4819 = vpack.c.b16 %v4723, %v4720
    %v4820 = vpack.c.b16 %v4724, %v4721
    %4917 = vmatprep.subr.bf16.mxu0 %v4726
    %4918 = vmatpush1.bf16.msra.mxu0 %v4725
    %4919 = vmatprep.subr.bf16.mxu0 %v4729
    %4920 = vmatpush1.bf16.msra.mxu0 %v4728
    %4921 = vmatprep.subr.bf16.mxu0 %v4732
    %4922 = vmatpush1.bf16.msra.mxu0 %v4731
    %4923 = vmatprep.subr.bf16.mxu0 %v4735
    %4924 = vmatpush1.bf16.msra.mxu0 %v4734
    %4925 = vmatprep.subr.bf16.mxu0 %v4738
    %4926 = vmatpush1.bf16.msra.mxu0 %v4737
    %4927 = vmatprep.subr.bf16.mxu0 %v4741
    %4928 = vmatpush1.bf16.msra.mxu0 %v4740
    %4929 = vmatprep.subr.bf16.mxu0 %v4744
    %4930 = vmatpush1.bf16.msra.mxu0 %v4743
    %4931 = vmatprep.subr.bf16.mxu0 %v4747
    %4932 = vmatpush1.bf16.msra.mxu0 %v4746
    %4933 = vmatprep.subr.bf16.mxu0 %v4750
    %4934 = vmatpush1.bf16.msra.mxu0 %v4749
    %4935 = vmatprep.subr.bf16.mxu0 %v4753
    %4936 = vmatpush1.bf16.msra.mxu0 %v4752
    %4937 = vmatprep.subr.bf16.mxu0 %v4756
    %4938 = vmatpush1.bf16.msra.mxu0 %v4755
    %4939 = vmatprep.subr.bf16.mxu0 %v4759
    %4940 = vmatpush1.bf16.msra.mxu0 %v4758
    %4941 = vmatprep.subr.bf16.mxu0 %v4762
    %4942 = vmatpush1.bf16.msra.mxu0 %v4761
    %4943 = vmatprep.subr.bf16.mxu0 %v4765
    %4944 = vmatpush1.bf16.msra.mxu0 %v4764
    %4945 = vmatprep.subr.bf16.mxu0 %v4768
    %4946 = vmatpush1.bf16.msra.mxu0 %v4767
    %4947 = vmatprep.subr.bf16.mxu0 %v4771
    %4948 = vmatpush1.bf16.msra.mxu0 %v4770
    %4949 = vmatprep.mubr.bf16.mxu0 %v4257
    %4950 = vmatmul.mubr.bf16.gmra.mrb[0].mxu0 %v4256
    %v4951 = vpop.f32.mrb[0].mxu0
    %v4952 = vadd.f32 %v4393, %v4951
    %v4953 = vpop.f32.mrb[0].mxu0
    %v4954 = vadd.f32 %v4397, %v4953
    %v4955 = vpop.f32.mrb[0].mxu0
    %v4956 = vpop.f32.mrb[0].mxu0
    %4957 = vdwg.mxu0
    %4958 = vmatprep.subr.bf16.mxu0 %v4774
    %4959 = vmatpush1.bf16.msra.mxu0 %v4773
    %4960 = vmatprep.subr.bf16.mxu0 %v4777
    %4961 = vmatpush1.bf16.msra.mxu0 %v4776
    %4962 = vmatprep.subr.bf16.mxu0 %v4780
    %4963 = vmatpush1.bf16.msra.mxu0 %v4779
    %4964 = vmatprep.subr.bf16.mxu0 %v4783
    %4965 = vmatpush1.bf16.msra.mxu0 %v4782
    %4966 = vmatprep.subr.bf16.mxu0 %v4786
    %4967 = vmatpush1.bf16.msra.mxu0 %v4785
    %4968 = vmatprep.subr.bf16.mxu0 %v4789
    %4969 = vmatpush1.bf16.msra.mxu0 %v4788
    %4970 = vmatprep.subr.bf16.mxu0 %v4792
    %4971 = vmatpush1.bf16.msra.mxu0 %v4791
    %4972 = vmatprep.subr.bf16.mxu0 %v4795
    %4973 = vmatpush1.bf16.msra.mxu0 %v4794
    %4974 = vmatprep.subr.bf16.mxu0 %v4798
    %4975 = vmatpush1.bf16.msra.mxu0 %v4797
    %4976 = vmatprep.subr.bf16.mxu0 %v4801
    %4977 = vmatpush1.bf16.msra.mxu0 %v4800
    %4978 = vmatprep.subr.bf16.mxu0 %v4804
    %4979 = vmatpush1.bf16.msra.mxu0 %v4803
    %4980 = vmatprep.subr.bf16.mxu0 %v4807
    %4981 = vmatpush1.bf16.msra.mxu0 %v4806
    %4982 = vmatprep.subr.bf16.mxu0 %v4810
    %4983 = vmatpush1.bf16.msra.mxu0 %v4809
    %4984 = vmatprep.subr.bf16.mxu0 %v4813
    %4985 = vmatpush1.bf16.msra.mxu0 %v4812
    %4986 = vmatprep.subr.bf16.mxu0 %v4816
    %4987 = vmatpush1.bf16.msra.mxu0 %v4815
    %4988 = vmatprep.subr.bf16.mxu0 %v4819
    %4989 = vmatpush1.bf16.msra.mxu0 %v4818
    %4990 = vmatprep.mubr.bf16.mxu0 %v4259
    %4991 = vmatmul.mubr.bf16.gmra.mrb[0].mxu0 %v4258
    %v4992 = vpop.f32.mrb[0].mxu0
    %v4993 = vadd.f32 %v4952, %v4992
    %v4994 = vpop.f32.mrb[0].mxu0
    %v4995 = vadd.f32 %v4954, %v4994
    %v4996 = vpop.f32.mrb[0].mxu0
    %v4997 = vpop.f32.mrb[0].mxu0
    %4998 = vdwg.mxu0
    %4999 = vmatprep.subr.bf16.mxu0 0
    %5000 = vmatpush1.bf16.msra.mxu0 %v4727
    %5001 = vmatprep.subr.bf16.mxu0 0
    %5002 = vmatpush1.bf16.msra.mxu0 %v4730
    %5003 = vmatprep.subr.bf16.mxu0 0
    %5004 = vmatpush1.bf16.msra.mxu0 %v4733
    %5005 = vmatprep.subr.bf16.mxu0 0
    %5006 = vmatpush1.bf16.msra.mxu0 %v4736
    %5007 = vmatprep.subr.bf16.mxu0 0
    %5008 = vmatpush1.bf16.msra.mxu0 %v4739
    %5009 = vmatprep.subr.bf16.mxu0 0
    %5010 = vmatpush1.bf16.msra.mxu0 %v4742
    %5011 = vmatprep.subr.bf16.mxu0 0
    %5012 = vmatpush1.bf16.msra.mxu0 %v4745
    %5013 = vmatprep.subr.bf16.mxu0 0
    %5014 = vmatpush1.bf16.msra.mxu0 %v4748
    %5015 = vmatprep.subr.bf16.mxu0 0
    %5016 = vmatpush1.bf16.msra.mxu0 %v4751
    %5017 = vmatprep.subr.bf16.mxu0 0
    %5018 = vmatpush1.bf16.msra.mxu0 %v4754
    %5019 = vmatprep.subr.bf16.mxu0 0
    %5020 = vmatpush1.bf16.msra.mxu0 %v4757
    %5021 = vmatprep.subr.bf16.mxu0 0
    %5022 = vmatpush1.bf16.msra.mxu0 %v4760
    %5023 = vmatprep.subr.bf16.mxu0 0
    %5024 = vmatpush1.bf16.msra.mxu0 %v4763
    %5025 = vmatprep.subr.bf16.mxu0 0
    %5026 = vmatpush1.bf16.msra.mxu0 %v4766
    %5027 = vmatprep.subr.bf16.mxu0 0
    %5028 = vmatpush1.bf16.msra.mxu0 %v4769
    %5029 = vmatprep.subr.bf16.mxu0 0
    %5030 = vmatpush1.bf16.msra.mxu0 %v4772
    %5031 = vmatprep.mubr.bf16.mxu0 %v4257
    %5032 = vmatmul.mubr.bf16.gmra.mrb[0].mxu0 %v4256
    %v5033 = vpop.f32.mrb[0].mxu0
    %v5034 = vadd.f32 %v4401, %v5033
    %v5035 = vpop.f32.mrb[0].mxu0
    %v5036 = vpop.f32.mrb[0].mxu0
    %v5037 = vpop.f32.mrb[0].mxu0
    %5038 = vdwg.mxu0
    %5039 = vmatprep.subr.bf16.mxu0 0
    %5040 = vmatpush1.bf16.msra.mxu0 %v4775
    %5041 = vmatprep.subr.bf16.mxu0 0
    %5042 = vmatpush1.bf16.msra.mxu0 %v4778
    %5043 = vmatprep.subr.bf16.mxu0 0
    %5044 = vmatpush1.bf16.msra.mxu0 %v4781
    %5045 = vmatprep.subr.bf16.mxu0 0
    %5046 = vmatpush1.bf16.msra.mxu0 %v4784
    %5047 = vmatprep.subr.bf16.mxu0 0
    %5048 = vmatpush1.bf16.msra.mxu0 %v4787
    %5049 = vmatprep.subr.bf16.mxu0 0
    %5050 = vmatpush1.bf16.msra.mxu0 %v4790
    %5051 = vmatprep.subr.bf16.mxu0 0
    %5052 = vmatpush1.bf16.msra.mxu0 %v4793
    %5053 = vmatprep.subr.bf16.mxu0 0
    %5054 = vmatpush1.bf16.msra.mxu0 %v4796
    %5055 = vmatprep.subr.bf16.mxu0 0
    %5056 = vmatpush1.bf16.msra.mxu0 %v4799
    %5057 = vmatprep.subr.bf16.mxu0 0
    %5058 = vmatpush1.bf16.msra.mxu0 %v4802
    %5059 = vmatprep.subr.bf16.mxu0 0
    %5060 = vmatpush1.bf16.msra.mxu0 %v4805
    %5061 = vmatprep.subr.bf16.mxu0 0
    %5062 = vmatpush1.bf16.msra.mxu0 %v4808
    %5063 = vmatprep.subr.bf16.mxu0 0
    %5064 = vmatpush1.bf16.msra.mxu0 %v4811
    %5065 = vmatprep.subr.bf16.mxu0 0
    %5066 = vmatpush1.bf16.msra.mxu0 %v4814
    %5067 = vmatprep.subr.bf16.mxu0 0
    %5068 = vmatpush1.bf16.msra.mxu0 %v4817
    %5069 = vmatprep.subr.bf16.mxu0 0
    %5070 = vmatpush1.bf16.msra.mxu0 %v4820
    %5071 = vmatprep.mubr.bf16.mxu0 %v4259
    %5072 = vmatmul.mubr.bf16.gmra.mrb[0].mxu0 %v4258
    %v5073 = vpop.f32.mrb[0].mxu0
    %v5074 = vadd.f32 %v5034, %v5073
    %v5075 = vpop.f32.mrb[0].mxu0
    %v5076 = vpop.f32.mrb[0].mxu0
    %v5077 = vpop.f32.mrb[0].mxu0
    %5078 = vdwg.mxu0
    %v5079 = vld [vmem:[#allocation13 + $0x21] sm:$0x7]
    %v5080 = vld [vmem:[#allocation13 + $0x24] sm:$0x7]
    %v5081 = vadd.f32 %v4993, %v4995
    %v5082 = vadd.f32 %v5081, %v5074
    %5083 = vadd.xlane.f32.xlu0 %v5082
    %v5084 = vpop.xlane.xlu0 %5083
    %v5085 = vrcp.pop 384.0
    %v5086 = vmul.f32 %v5084, %v5085
    %v5087 = vmul.f32 %v4993, %v4993
    %v5088 = vmul.f32 %v4995, %v4995
    %v5089 = vmul.f32 %v5074, %v5074
    %v5090 = vadd.f32 %v5087, %v5088
    %v5091 = vadd.f32 %v5090, %v5089
    %5092 = vadd.xlane.f32.xlu0 %v5091
    %v5093 = vpop.xlane.xlu0 %5092
    %v5094 = vmul.f32 %v5093, %v5085
    %v5095 = vmul.f32 %v5086, %v5086
    %v5096 = vsub.f32 %v5094, %v5095
    %v5097 = vmax.f32 %v5096, 0.0
    %v5098 = vadd.f32 %v5097, 1e-05
    %v5099 = vrsqrt.pop %v5098
    %v5100 = vpack.c.bf16 %v4993, %v4993
    %v5101 = vpack.c.bf16 %v4995, %v4995
    %v5102 = vpack.c.bf16 %v5074, %v5074
    %v5103 = vpack.c.bf16 %v5086, %v5086
    %v5104 = vpack.c.bf16 %v5099, %v5099
    %v5106 = vlaneseq
    %v5107 = vshrl.u32 %v5106, 7
    %v5108 = vsub.s32 0, %v5107
    %v5109 = vrot.slane %v5079, %v5108
    %v5110 = vlaneseq
    %v5111 = vshrl.u32 %v5110, 7
    %v5112 = vsub.s32 1, %v5111
    %v5113 = vrot.slane %v5079, %v5112
    %v5114 = vlaneseq
    %v5115 = vshrl.u32 %v5114, 7
    %v5116 = vsub.s32 2, %v5115
    %v5117 = vrot.slane %v5079, %v5116
    %v5121 = vpack.c.bf16 %v5109, %v5109
    %v5122 = vpack.c.bf16 %v5113, %v5113
    %v5123 = vpack.c.bf16 %v5117, %v5117
    %v5125 = vlaneseq
    %v5126 = vshrl.u32 %v5125, 7
    %v5127 = vsub.s32 0, %v5126
    %v5128 = vrot.slane %v5080, %v5127
    %v5129 = vlaneseq
    %v5130 = vshrl.u32 %v5129, 7
    %v5131 = vsub.s32 1, %v5130
    %v5132 = vrot.slane %v5080, %v5131
    %v5133 = vlaneseq
    %v5134 = vshrl.u32 %v5133, 7
    %v5135 = vsub.s32 2, %v5134
    %v5136 = vrot.slane %v5080, %v5135
    %v5140 = vpack.c.bf16 %v5128, %v5128
    %v5141 = vpack.c.bf16 %v5132, %v5132
    %v5142 = vpack.c.bf16 %v5136, %v5136
    %v5143 = vsub.bf16 %v5100, %v5103
    %v5144 = vsub.bf16 %v5101, %v5103
    %v5145 = vsub.bf16 %v5102, %v5103
    %v5146 = vmul.bf16 %v5143, %v5104
    %v5147 = vmul.bf16 %v5144, %v5104
    %v5148 = vmul.bf16 %v5145, %v5104
    %v5150 = vpack.i.b16 %v5121, %v5121
    %v5152 = vlaneseq
    %v5153 = vshrl.u32 %v5152, 7
    %v5154 = vsub.s32 0, %v5153
    %v5155 = vrot.slane %v5150, %v5154
    %v5157 = vpack.i.b16 %v5122, %v5122
    %v5159 = vlaneseq
    %v5160 = vshrl.u32 %v5159, 7
    %v5161 = vsub.s32 0, %v5160
    %v5162 = vrot.slane %v5157, %v5161
    %v5164 = vpack.i.b16 %v5123, %v5123
    %v5166 = vlaneseq
    %v5167 = vshrl.u32 %v5166, 7
    %v5168 = vsub.s32 0, %v5167
    %v5169 = vrot.slane %v5164, %v5168
    %v5170 = vmul.bf16 %v5146, %v5155
    %v5171 = vmul.bf16 %v5147, %v5162
    %v5172 = vmul.bf16 %v5148, %v5169
    %v5174 = vpack.i.b16 %v5140, %v5140
    %v5176 = vlaneseq
    %v5177 = vshrl.u32 %v5176, 7
    %v5178 = vsub.s32 0, %v5177
    %v5179 = vrot.slane %v5174, %v5178
    %v5181 = vpack.i.b16 %v5141, %v5141
    %v5183 = vlaneseq
    %v5184 = vshrl.u32 %v5183, 7
    %v5185 = vsub.s32 0, %v5184
    %v5186 = vrot.slane %v5181, %v5185
    %v5188 = vpack.i.b16 %v5142, %v5142
    %v5190 = vlaneseq
    %v5191 = vshrl.u32 %v5190, 7
    %v5192 = vsub.s32 0, %v5191
    %v5193 = vrot.slane %v5188, %v5192
    %v5194 = vadd.bf16 %v5170, %v5179
    %v5195 = vadd.bf16 %v5171, %v5186
    %v5196 = vadd.bf16 %v5172, %v5193
    %v5197 = vmax.bf16 %v5194, 0
    %v5198 = vmax.bf16 %v5195, 0
    %v5199 = vmax.bf16 %v5196, 0
    %v5200 = vld [vmem:[#allocation10] sm:$0xff]
    %v5201 = vld [vmem:[#allocation10 + $0x8] sm:$0xff]
    %v5202 = vld [vmem:[#allocation10 + $0x10] sm:$0xff]
    %v5203 = vld [vmem:[#allocation10 + $0x18] sm:$0xff]
    %v5204 = vld [vmem:[#allocation10 + $0x20] sm:$0xff]
    %v5205 = vld [vmem:[#allocation10 + $0x28] sm:$0xff]
    %v5206 = vld [vmem:[#allocation10 + $0x30] sm:$0xff]
    %v5207 = vld [vmem:[#allocation10 + $0x38] sm:$0xff]
    %v5208 = vld [vmem:[#allocation10 + $0x40] sm:$0xff]
    %v5209 = vld [vmem:[#allocation10 + $0x48] sm:$0xff]
    %v5210 = vld [vmem:[#allocation10 + $0x50] sm:$0xff]
    %v5211 = vld [vmem:[#allocation10 + $0x58] sm:$0xff]
    %v5212 = vld [vmem:[#allocation10 + $0x60] sm:$0xff]
    %v5213 = vld [vmem:[#allocation10 + $0x68] sm:$0xff]
    %v5214 = vld [vmem:[#allocation10 + $0x70] sm:$0xff]
    %v5215 = vld [vmem:[#allocation10 + $0x78] sm:$0xff]
    %v5216 = vld [vmem:[#allocation10 + $0x80] sm:$0xff]
    %v5217 = vld [vmem:[#allocation10 + $0x88] sm:$0xff]
    %v5218 = vld [vmem:[#allocation10 + $0x90] sm:$0xff]
    %v5219 = vld [vmem:[#allocation10 + $0x98] sm:$0xff]
    %v5220 = vld [vmem:[#allocation10 + $0xa0] sm:$0xff]
    %v5221 = vld [vmem:[#allocation10 + $0xa8] sm:$0xff]
    %v5222 = vld [vmem:[#allocation10 + $0xb0] sm:$0xff]
    %v5223 = vld [vmem:[#allocation10 + $0xb8] sm:$0xff]
    %v5224 = vld [vmem:[#allocation10 + $0xc0] sm:$0xff]
    %v5225 = vld [vmem:[#allocation10 + $0xc8] sm:$0xff]
    %v5226 = vld [vmem:[#allocation10 + $0xd0] sm:$0xff]
    %v5227 = vld [vmem:[#allocation10 + $0xd8] sm:$0xff]
    %v5228 = vld [vmem:[#allocation10 + $0xe0] sm:$0xff]
    %v5229 = vld [vmem:[#allocation10 + $0xe8] sm:$0xff]
    %v5230 = vld [vmem:[#allocation10 + $0xf0] sm:$0xff]
    %v5231 = vld [vmem:[#allocation10 + $0xf8] sm:$0xff]
    %v5232 = vld [vmem:[#allocation10 + $0x100] sm:$0xff]
    %v5233 = vld [vmem:[#allocation10 + $0x108] sm:$0xff]
    %v5234 = vld [vmem:[#allocation10 + $0x110] sm:$0xff]
    %v5235 = vld [vmem:[#allocation10 + $0x118] sm:$0xff]
    %v5236 = vld [vmem:[#allocation10 + $0x120] sm:$0xff]
    %v5237 = vld [vmem:[#allocation10 + $0x128] sm:$0xff]
    %v5238 = vld [vmem:[#allocation10 + $0x130] sm:$0xff]
    %v5239 = vld [vmem:[#allocation10 + $0x138] sm:$0xff]
    %v5240 = vld [vmem:[#allocation10 + $0x140] sm:$0xff]
    %v5241 = vld [vmem:[#allocation10 + $0x148] sm:$0xff]
    %v5242 = vld [vmem:[#allocation10 + $0x150] sm:$0xff]
    %v5243 = vld [vmem:[#allocation10 + $0x158] sm:$0xff]
    %v5244 = vld [vmem:[#allocation10 + $0x160] sm:$0xff]
    %v5245 = vld [vmem:[#allocation10 + $0x168] sm:$0xff]
    %v5246 = vld [vmem:[#allocation10 + $0x170] sm:$0xff]
    %v5247 = vld [vmem:[#allocation10 + $0x178] sm:$0xff]
    %v5248 = vld [vmem:[#allocation13 + $0x27] sm:$0x3]
    %v5250 = vlaneseq
    %v5251 = vshrl.u32 %v5250, 7
    %v5252 = vsub.s32 0, %v5251
    %v5253 = vrot.slane %v5248, %v5252
    %v5254 = vlaneseq
    %v5255 = vshrl.u32 %v5254, 7
    %v5256 = vsub.s32 1, %v5255
    %v5257 = vrot.slane %v5248, %v5256
    %v5308 = vunpack.c.l.b16 %v5200
    %v5309 = vunpack.c.h.b16 %v5200
    %v5310 = vunpack.c.l.b16 %v5201
    %v5311 = vunpack.c.h.b16 %v5201
    %v5312 = vunpack.c.l.b16 %v5202
    %v5313 = vunpack.c.h.b16 %v5202
    %v5314 = vunpack.c.l.b16 %v5203
    %v5315 = vunpack.c.h.b16 %v5203
    %v5316 = vunpack.c.l.b16 %v5204
    %v5317 = vunpack.c.h.b16 %v5204
    %v5318 = vunpack.c.l.b16 %v5205
    %v5319 = vunpack.c.h.b16 %v5205
    %v5320 = vunpack.c.l.b16 %v5206
    %v5321 = vunpack.c.h.b16 %v5206
    %v5322 = vunpack.c.l.b16 %v5207
    %v5323 = vunpack.c.h.b16 %v5207
    %v5324 = vunpack.c.l.b16 %v5208
    %v5325 = vunpack.c.h.b16 %v5208
    %v5326 = vunpack.c.l.b16 %v5209
    %v5327 = vunpack.c.h.b16 %v5209
    %v5328 = vunpack.c.l.b16 %v5210
    %v5329 = vunpack.c.h.b16 %v5210
    %v5330 = vunpack.c.l.b16 %v5211
    %v5331 = vunpack.c.h.b16 %v5211
    %v5332 = vunpack.c.l.b16 %v5212
    %v5333 = vunpack.c.h.b16 %v5212
    %v5334 = vunpack.c.l.b16 %v5213
    %v5335 = vunpack.c.h.b16 %v5213
    %v5336 = vunpack.c.l.b16 %v5214
    %v5337 = vunpack.c.h.b16 %v5214
    %v5338 = vunpack.c.l.b16 %v5215
    %v5339 = vunpack.c.h.b16 %v5215
    %v5340 = vunpack.c.l.b16 %v5216
    %v5341 = vunpack.c.h.b16 %v5216
    %v5342 = vunpack.c.l.b16 %v5217
    %v5343 = vunpack.c.h.b16 %v5217
    %v5344 = vunpack.c.l.b16 %v5218
    %v5345 = vunpack.c.h.b16 %v5218
    %v5346 = vunpack.c.l.b16 %v5219
    %v5347 = vunpack.c.h.b16 %v5219
    %v5348 = vunpack.c.l.b16 %v5220
    %v5349 = vunpack.c.h.b16 %v5220
    %v5350 = vunpack.c.l.b16 %v5221
    %v5351 = vunpack.c.h.b16 %v5221
    %v5352 = vunpack.c.l.b16 %v5222
    %v5353 = vunpack.c.h.b16 %v5222
    %v5354 = vunpack.c.l.b16 %v5223
    %v5355 = vunpack.c.h.b16 %v5223
    %v5356 = vunpack.c.l.b16 %v5224
    %v5357 = vunpack.c.h.b16 %v5224
    %v5358 = vunpack.c.l.b16 %v5225
    %v5359 = vunpack.c.h.b16 %v5225
    %v5360 = vunpack.c.l.b16 %v5226
    %v5361 = vunpack.c.h.b16 %v5226
    %v5362 = vunpack.c.l.b16 %v5227
    %v5363 = vunpack.c.h.b16 %v5227
    %v5364 = vunpack.c.l.b16 %v5228
    %v5365 = vunpack.c.h.b16 %v5228
    %v5366 = vunpack.c.l.b16 %v5229
    %v5367 = vunpack.c.h.b16 %v5229
    %v5368 = vunpack.c.l.b16 %v5230
    %v5369 = vunpack.c.h.b16 %v5230
    %v5370 = vunpack.c.l.b16 %v5231
    %v5371 = vunpack.c.h.b16 %v5231
    %v5372 = vunpack.c.l.b16 %v5232
    %v5373 = vunpack.c.h.b16 %v5232
    %v5374 = vunpack.c.l.b16 %v5233
    %v5375 = vunpack.c.h.b16 %v5233
    %v5376 = vunpack.c.l.b16 %v5234
    %v5377 = vunpack.c.h.b16 %v5234
    %v5378 = vunpack.c.l.b16 %v5235
    %v5379 = vunpack.c.h.b16 %v5235
    %v5380 = vunpack.c.l.b16 %v5236
    %v5381 = vunpack.c.h.b16 %v5236
    %v5382 = vunpack.c.l.b16 %v5237
    %v5383 = vunpack.c.h.b16 %v5237
    %v5384 = vunpack.c.l.b16 %v5238
    %v5385 = vunpack.c.h.b16 %v5238
    %v5386 = vunpack.c.l.b16 %v5239
    %v5387 = vunpack.c.h.b16 %v5239
    %v5388 = vunpack.c.l.b16 %v5240
    %v5389 = vunpack.c.h.b16 %v5240
    %v5390 = vunpack.c.l.b16 %v5241
    %v5391 = vunpack.c.h.b16 %v5241
    %v5392 = vunpack.c.l.b16 %v5242
    %v5393 = vunpack.c.h.b16 %v5242
    %v5394 = vunpack.c.l.b16 %v5243
    %v5395 = vunpack.c.h.b16 %v5243
    %v5396 = vunpack.c.l.b16 %v5244
    %v5397 = vunpack.c.h.b16 %v5244
    %v5398 = vunpack.c.l.b16 %v5245
    %v5399 = vunpack.c.h.b16 %v5245
    %v5400 = vunpack.c.l.b16 %v5246
    %v5401 = vunpack.c.h.b16 %v5246
    %v5402 = vunpack.c.l.b16 %v5247
    %v5403 = vunpack.c.h.b16 %v5247
    %v5404 = vpack.c.b16 %v5310, %v5308
    %v5405 = vpack.c.b16 %v5311, %v5309
    %v5406 = vpack.c.b16 %v5314, %v5312
    %v5407 = vpack.c.b16 %v5315, %v5313
    %v5408 = vpack.c.b16 %v5318, %v5316
    %v5409 = vpack.c.b16 %v5319, %v5317
    %v5410 = vpack.c.b16 %v5322, %v5320
    %v5411 = vpack.c.b16 %v5323, %v5321
    %v5412 = vpack.c.b16 %v5326, %v5324
    %v5413 = vpack.c.b16 %v5327, %v5325
    %v5414 = vpack.c.b16 %v5330, %v5328
    %v5415 = vpack.c.b16 %v5331, %v5329
    %v5416 = vpack.c.b16 %v5334, %v5332
    %v5417 = vpack.c.b16 %v5335, %v5333
    %v5418 = vpack.c.b16 %v5338, %v5336
    %v5419 = vpack.c.b16 %v5339, %v5337
    %v5420 = vpack.c.b16 %v5342, %v5340
    %v5421 = vpack.c.b16 %v5343, %v5341
    %v5422 = vpack.c.b16 %v5346, %v5344
    %v5423 = vpack.c.b16 %v5347, %v5345
    %v5424 = vpack.c.b16 %v5350, %v5348
    %v5425 = vpack.c.b16 %v5351, %v5349
    %v5426 = vpack.c.b16 %v5354, %v5352
    %v5427 = vpack.c.b16 %v5355, %v5353
    %v5428 = vpack.c.b16 %v5358, %v5356
    %v5429 = vpack.c.b16 %v5359, %v5357
    %v5430 = vpack.c.b16 %v5362, %v5360
    %v5431 = vpack.c.b16 %v5363, %v5361
    %v5432 = vpack.c.b16 %v5366, %v5364
    %v5433 = vpack.c.b16 %v5367, %v5365
    %v5434 = vpack.c.b16 %v5370, %v5368
    %v5435 = vpack.c.b16 %v5371, %v5369
    %v5436 = vpack.c.b16 %v5374, %v5372
    %v5437 = vpack.c.b16 %v5375, %v5373
    %v5438 = vpack.c.b16 %v5378, %v5376
    %v5439 = vpack.c.b16 %v5379, %v5377
    %v5440 = vpack.c.b16 %v5382, %v5380
    %v5441 = vpack.c.b16 %v5383, %v5381
    %v5442 = vpack.c.b16 %v5386, %v5384
    %v5443 = vpack.c.b16 %v5387, %v5385
    %v5444 = vpack.c.b16 %v5390, %v5388
    %v5445 = vpack.c.b16 %v5391, %v5389
    %v5446 = vpack.c.b16 %v5394, %v5392
    %v5447 = vpack.c.b16 %v5395, %v5393
    %v5448 = vpack.c.b16 %v5398, %v5396
    %v5449 = vpack.c.b16 %v5399, %v5397
    %v5450 = vpack.c.b16 %v5402, %v5400
    %v5451 = vpack.c.b16 %v5403, %v5401
    %5500 = vmatprep.subr.bf16.mxu0 %v5405
    %5501 = vmatpush1.bf16.msra.mxu0 %v5404
    %5502 = vmatprep.subr.bf16.mxu0 %v5407
    %5503 = vmatpush1.bf16.msra.mxu0 %v5406
    %5504 = vmatprep.subr.bf16.mxu0 %v5409
    %5505 = vmatpush1.bf16.msra.mxu0 %v5408
    %5506 = vmatprep.subr.bf16.mxu0 %v5411
    %5507 = vmatpush1.bf16.msra.mxu0 %v5410
    %5508 = vmatprep.subr.bf16.mxu0 %v5413
    %5509 = vmatpush1.bf16.msra.mxu0 %v5412
    %5510 = vmatprep.subr.bf16.mxu0 %v5415
    %5511 = vmatpush1.bf16.msra.mxu0 %v5414
    %5512 = vmatprep.subr.bf16.mxu0 %v5417
    %5513 = vmatpush1.bf16.msra.mxu0 %v5416
    %5514 = vmatprep.subr.bf16.mxu0 %v5419
    %5515 = vmatpush1.bf16.msra.mxu0 %v5418
    %5516 = vmatprep.subr.bf16.mxu0 %v5421
    %5517 = vmatpush1.bf16.msra.mxu0 %v5420
    %5518 = vmatprep.subr.bf16.mxu0 %v5423
    %5519 = vmatpush1.bf16.msra.mxu0 %v5422
    %5520 = vmatprep.subr.bf16.mxu0 %v5425
    %5521 = vmatpush1.bf16.msra.mxu0 %v5424
    %5522 = vmatprep.subr.bf16.mxu0 %v5427
    %5523 = vmatpush1.bf16.msra.mxu0 %v5426
    %5524 = vmatprep.subr.bf16.mxu0 %v5429
    %5525 = vmatpush1.bf16.msra.mxu0 %v5428
    %5526 = vmatprep.subr.bf16.mxu0 %v5431
    %5527 = vmatpush1.bf16.msra.mxu0 %v5430
    %5528 = vmatprep.subr.bf16.mxu0 %v5433
    %5529 = vmatpush1.bf16.msra.mxu0 %v5432
    %5530 = vmatprep.subr.bf16.mxu0 %v5435
    %5531 = vmatpush1.bf16.msra.mxu0 %v5434
    %5532 = vmatprep.mubr.bf16.mxu0 %v5198
    %5533 = vmatmul.mubr.bf16.gmra.mrb[0].mxu0 %v5197
    %v5534 = vpop.f32.mrb[0].mxu0
    %v5535 = vadd.f32 %v5253, %v5534
    %v5536 = vpop.f32.mrb[0].mxu0
    %v5537 = vadd.f32 %v5257, %v5536
    %v5538 = vpop.f32.mrb[0].mxu0
    %v5539 = vpop.f32.mrb[0].mxu0
    %5540 = vdwg.mxu0
    %5541 = vmatprep.subr.bf16.mxu0 %v5437
    %5542 = vmatpush1.bf16.msra.mxu0 %v5436
    %5543 = vmatprep.subr.bf16.mxu0 %v5439
    %5544 = vmatpush1.bf16.msra.mxu0 %v5438
    %5545 = vmatprep.subr.bf16.mxu0 %v5441
    %5546 = vmatpush1.bf16.msra.mxu0 %v5440
    %5547 = vmatprep.subr.bf16.mxu0 %v5443
    %5548 = vmatpush1.bf16.msra.mxu0 %v5442
    %5549 = vmatprep.subr.bf16.mxu0 %v5445
    %5550 = vmatpush1.bf16.msra.mxu0 %v5444
    %5551 = vmatprep.subr.bf16.mxu0 %v5447
    %5552 = vmatpush1.bf16.msra.mxu0 %v5446
    %5553 = vmatprep.subr.bf16.mxu0 %v5449
    %5554 = vmatpush1.bf16.msra.mxu0 %v5448
    %5555 = vmatprep.subr.bf16.mxu0 %v5451
    %5556 = vmatpush1.bf16.msra.mxu0 %v5450
    %5557 = vmatprep.subr.bf16.mxu0 0
    %5558 = vmatpush1.bf16.msra.mxu0 0
    %5559 = vmatprep.subr.bf16.mxu0 0
    %5560 = vmatpush1.bf16.msra.mxu0 0
    %5561 = vmatprep.subr.bf16.mxu0 0
    %5562 = vmatpush1.bf16.msra.mxu0 0
    %5563 = vmatprep.subr.bf16.mxu0 0
    %5564 = vmatpush1.bf16.msra.mxu0 0
    %5565 = vmatprep.subr.bf16.mxu0 0
    %5566 = vmatpush1.bf16.msra.mxu0 0
    %5567 = vmatprep.subr.bf16.mxu0 0
    %5568 = vmatpush1.bf16.msra.mxu0 0
    %5569 = vmatprep.subr.bf16.mxu0 0
    %5570 = vmatpush1.bf16.msra.mxu0 0
    %5571 = vmatprep.subr.bf16.mxu0 0
    %5572 = vmatpush1.bf16.msra.mxu0 0
    %5573 = vmatprep.mubr.bf16.mxu0 0
    %5574 = vmatmul.mubr.bf16.gmra.mrb[0].mxu0 %v5199
    %v5575 = vpop.f32.mrb[0].mxu0
    %v5576 = vadd.f32 %v5535, %v5575
    %v5577 = vpop.f32.mrb[0].mxu0
    %v5578 = vadd.f32 %v5537, %v5577
    %v5579 = vpop.f32.mrb[0].mxu0
    %v5580 = vpop.f32.mrb[0].mxu0
    %5581 = vdwg.mxu0
    %v5582 = vld [vmem:[#allocation13 + $0x29] sm:$0x3]
    %v5583 = vld [vmem:[#allocation13 + $0x2b] sm:$0x3]
    %v5584 = vadd.f32 %v5576, %v5578
    %5585 = vadd.xlane.f32.xlu0 %v5584
    %v5586 = vpop.xlane.xlu0 %5585
    %v5587 = vrcp.pop 256.0
    %v5588 = vmul.f32 %v5586, %v5587
    %v5589 = vmul.f32 %v5576, %v5576
    %v5590 = vmul.f32 %v5578, %v5578
    %v5591 = vadd.f32 %v5589, %v5590
    %5592 = vadd.xlane.f32.xlu0 %v5591
    %v5593 = vpop.xlane.xlu0 %5592
    %v5594 = vmul.f32 %v5593, %v5587
    %v5595 = vmul.f32 %v5588, %v5588
    %v5596 = vsub.f32 %v5594, %v5595
    %v5597 = vmax.f32 %v5596, 0.0
    %v5598 = vadd.f32 %v5597, 1e-05
    %v5599 = vrsqrt.pop %v5598
    %v5600 = vpack.c.bf16 %v5576, %v5576
    %v5601 = vpack.c.bf16 %v5578, %v5578
    %v5602 = vpack.c.bf16 %v5588, %v5588
    %v5603 = vpack.c.bf16 %v5599, %v5599
    %v5605 = vlaneseq
    %v5606 = vshrl.u32 %v5605, 7
    %v5607 = vsub.s32 0, %v5606
    %v5608 = vrot.slane %v5582, %v5607
    %v5609 = vlaneseq
    %v5610 = vshrl.u32 %v5609, 7
    %v5611 = vsub.s32 1, %v5610
    %v5612 = vrot.slane %v5582, %v5611
    %v5615 = vpack.c.bf16 %v5608, %v5608
    %v5616 = vpack.c.bf16 %v5612, %v5612
    %v5618 = vlaneseq
    %v5619 = vshrl.u32 %v5618, 7
    %v5620 = vsub.s32 0, %v5619
    %v5621 = vrot.slane %v5583, %v5620
    %v5622 = vlaneseq
    %v5623 = vshrl.u32 %v5622, 7
    %v5624 = vsub.s32 1, %v5623
    %v5625 = vrot.slane %v5583, %v5624
    %v5628 = vpack.c.bf16 %v5621, %v5621
    %v5629 = vpack.c.bf16 %v5625, %v5625
    %v5630 = vsub.bf16 %v5600, %v5602
    %v5631 = vsub.bf16 %v5601, %v5602
    %v5632 = vmul.bf16 %v5630, %v5603
    %v5633 = vmul.bf16 %v5631, %v5603
    %v5635 = vpack.i.b16 %v5615, %v5615
    %v5637 = vlaneseq
    %v5638 = vshrl.u32 %v5637, 7
    %v5639 = vsub.s32 0, %v5638
    %v5640 = vrot.slane %v5635, %v5639
    %v5642 = vpack.i.b16 %v5616, %v5616
    %v5644 = vlaneseq
    %v5645 = vshrl.u32 %v5644, 7
    %v5646 = vsub.s32 0, %v5645
    %v5647 = vrot.slane %v5642, %v5646
    %v5648 = vmul.bf16 %v5632, %v5640
    %v5649 = vmul.bf16 %v5633, %v5647
    %v5651 = vpack.i.b16 %v5628, %v5628
    %v5653 = vlaneseq
    %v5654 = vshrl.u32 %v5653, 7
    %v5655 = vsub.s32 0, %v5654
    %v5656 = vrot.slane %v5651, %v5655
    %v5658 = vpack.i.b16 %v5629, %v5629
    %v5660 = vlaneseq
    %v5661 = vshrl.u32 %v5660, 7
    %v5662 = vsub.s32 0, %v5661
    %v5663 = vrot.slane %v5658, %v5662
    %v5664 = vadd.bf16 %v5648, %v5656
    %v5665 = vadd.bf16 %v5649, %v5663
    %v5666 = vmax.bf16 %v5664, 0
    %v5667 = vmax.bf16 %v5665, 0
    %v5668 = vld [vmem:[#allocation12] sm:$0x3]
    %v5669 = vunpack.c.l.bf16 %v5666
    %v5670 = vunpack.c.l.bf16 %v5667
    %v5672 = vlaneseq
    %v5673 = vshrl.u32 %v5672, 7
    %v5674 = vsub.s32 0, %v5673
    %v5675 = vrot.slane %v5668, %v5674
    %v5676 = vlaneseq
    %v5677 = vshrl.u32 %v5676, 7
    %v5678 = vsub.s32 1, %v5677
    %v5679 = vrot.slane %v5668, %v5678
    %v5682 = vmul.f32 %v5669, %v5675
    %v5683 = vmul.f32 %v5670, %v5679
    %v5684 = vadd.f32 %v5682, %v5683
    %5685 = vadd.xlane.f32.xlu0 %v5684
    %v5686 = vpop.xlane.xlu0 %5685
    %v5687 = vld [vmem:[#allocation13 + $0x2d] sm:$0x1]
    %v5689 = vlaneseq
    %v5690 = vshrl.u32 %v5689, 7
    %v5691 = vsub.s32 0, %v5690
    %v5692 = vrot.slane %v5687, %v5691
    %v5694 = vadd.f32 %v5686, %v5692
    %vm5695 = vcmask 7168
    %5696 = vst.msk [vmem:[%s9] sm:$0xff] %vm5695, %v5694
    // Predicated region
    $region70: #{critic_forward.1} parent=1 // pred_check
      _
    $region71: #{critic_forward.1} parent=1 // pred_check_branch
      %5698 = sbr.rel (0) target = $region73
    $region72: #{critic_forward.1} parent=1 // pred_region
      _
    $region73: #{critic_forward.1} parent=1 // pred_fallthru
      _
    // Predicated region
    $region74: #{critic_forward.1} parent=1 // pred_check
      _
    $region75: #{critic_forward.1} parent=1 // pred_check_branch
      %5700 = sbr.rel (0) target = $region77
    $region76: #{critic_forward.1} parent=1 // pred_region
      _
    $region77: #{critic_forward.1} parent=1 // pred_fallthru
      _
    %5701 = vsyncpa [#allocation3], 1
    %5702 = vsyncpa [#allocation5], 1
    %5703 = vsyncpa [#allocation8], 1
    %5704 = vsyncpa [#allocation11], 1
    %5705 = vsyncpa [#allocation14], 1

</llo_original>
